<compile_context>
chip_gen: v7x
topology: tpu7x:2x2x1
jax: 0.10.0
libtpu: 0.0.40
codegen_flags: <defaults>
</compile_context>

<pallas_src>
import numpy as np
import jax
import jax.numpy as jnp
from jax.experimental import pallas as pl
from jax.experimental.pallas import tpu as pltpu

# ---- small, module-consistent sizes (orig: N=36, VF=2048, QF=1024, MID=1024, AVM=64) ----
B = 4          # batch
N_OBJ = 8      # num_obj                    (orig 36)
VF = 32        # vision_features            (orig 2048)
QF = 16        # question_features          (orig 1024)
MID = 32       # Attention_Horizontal mid   (orig 1024)
G = 2          # glimpses
AVM = 16       # Attention_Vertical mid/out (orig 64)
CLS_MID = 32   # Classifier mid_features    (orig 1024)
ANS = 10       # config.max_answers
ANS_PAD = 128  # lane-dense padded logits width (sliced back to ANS in the wrapper)
D_IN = VF * G + N_OBJ * AVM     # classifier lin11 input (orig 2048*2 + 36*64)
QCAT = MID + AVM + CLS_MID      # fused question-branch output width


# --------------------------- constant-pack layout ---------------------------
def _round_up(x, m):
    return (x + m - 1) // m * m


def _build_layout(entries):
    """entries: [(name, rows, cols)] -> ({name: (col_off, rows, cols)}, rows_pad, cols_total)."""
    layout, off, max_rows = {}, 0, 1
    for name, rows, cols in entries:
        layout[name] = (off, rows, cols)
        off += _round_up(cols, 128)          # lane-aligned slots; generalizes to cols > 128
        max_rows = max(max_rows, rows)
    return layout, _round_up(max_rows, 8), off


WEIGHT_ENTRIES = [
    ('gcn_w1',  VF,          VF),
    ('gcn_w2',  VF,          VF),
    ('a1_wv',   VF,          MID),
    ('q_cat',   QF,          QCAT),        # [a1_wq | a2_wq | c_w12] fused
    ('a1_wl',   MID,         G),
    ('a2_wv_t', AVM,         N_OBJ),       # a2_wv transposed host-side
    ('a2_wl_t', AVM,         AVM),         # a2_wl transposed host-side
    ('c_w11a',  VF * G,      CLS_MID),     # rows permuted host-side to glimpse-major
    ('c_w11b',  N_OBJ * AVM, CLS_MID),
    ('c_w2',    CLS_MID,     CLS_MID),
    ('c_w3',    CLS_MID,     ANS_PAD),     # zero-padded to a lane-dense 128-wide output
]
BIAS_ENTRIES = [
    ('a1_bv', 1, MID), ('a1_bq', 1, MID), ('a1_bl', 1, G),
    ('a2_bv', 1, AVM), ('a2_bq', 1, AVM), ('a2_bl', 1, AVM),
    ('c_b11', 1, CLS_MID), ('c_b12', 1, CLS_MID), ('c_b2', 1, CLS_MID),
    ('c_b3', 1, ANS_PAD),
]
WEIGHT_LAYOUT, W_ROWS, W_COLS = _build_layout(WEIGHT_ENTRIES)
BIAS_LAYOUT, _, B_COLS = _build_layout(BIAS_ENTRIES)


# ----------------------------- Pallas kernel -----------------------------
def net_kernel(v_ref, q_ref, w_ref, b_ref, out_ref):
    f32 = jnp.float32
    mmdt = w_ref.dtype                         # matmul operand dtype (f32 or bf16)
    BB = v_ref.shape[0]

    def W(name):                               # zero-cost static ref slice
        off, rows, cols = WEIGHT_LAYOUT[name]
        return w_ref[0:rows, off:off + cols]

    def Bv(name):
        off, _rows, cols = BIAS_LAYOUT[name]
        return b_ref[:, off:off + cols]

    v = v_ref[...]                             # (BB, N, VF)  f32
    q = q_ref[...]                             # (BB, QF)     f32

    # config.v_feat_norm: L2-normalize visual features (EUP rsqrt, no divide)
    v = v * jax.lax.rsqrt(jnp.sum(v * v, axis=-1, keepdims=True) + 1e-24)
    vm = v.astype(mmdt)

    # CosineSimilarity(v): after L2 norm diag(S)==1, so the diagonal rescale is the
    # identity and is dropped (removes an XLU reduce, an outer product and a divide).
    S = jnp.einsum('bnd,bmd->bnm', vm, vm, preferred_element_type=f32)   # (BB, N, N)
    adj = 0.5 * (S + 1.0)
    adjm = adj.astype(mmdt)

    # GCN: relu(adj @ v @ W1) -> adj @ h @ W2  (weight matmuls with batch fused in M)
    av = jnp.einsum('bnm,bmd->bnd', adjm, vm, preferred_element_type=f32)
    h = jnp.maximum(
        jnp.dot(av.reshape(BB * N_OBJ, VF).astype(mmdt), W('gcn_w1'),
                preferred_element_type=f32), 0.0)
    ah = jnp.einsum('bnm,bmd->bnd', adjm, h.reshape(BB, N_OBJ, VF).astype(mmdt),
                    preferred_element_type=f32)
    vh_flat = jnp.dot(ah.reshape(BB * N_OBJ, VF).astype(mmdt), W('gcn_w2'),
                      preferred_element_type=f32)                        # (BB*N, VF) f32
    v_head = vh_flat.reshape(BB, N_OBJ, VF)
    vhm = v_head.astype(mmdt)                                            # reused 4x
    vh_flat_m = vhm.reshape(BB * N_OBJ, VF)

    # Fused question branch: ONE matmul, three static slices
    qcat = jnp.dot(q.astype(mmdt), W('q_cat'), preferred_element_type=f32)   # (BB, QCAT)
    lq  = jnp.maximum(qcat[:, :MID] + Bv('a1_bq'), 0.0)                      # (BB, MID)
    lq2 = jnp.maximum(qcat[:, MID:MID + AVM] + Bv('a2_bq'), 0.0)             # (BB, AVM)
    c2  = jnp.maximum(qcat[:, MID + AVM:] + Bv('c_b12'), 0.0)                # (BB, CLS_MID)

    # Attention_Horizontal: softmax over num_obj
    lv = jnp.maximum(jnp.dot(vh_flat_m, W('a1_wv'), preferred_element_type=f32)
                     + Bv('a1_bv'), 0.0).reshape(BB, N_OBJ, MID)
    x1 = (jnp.dot((lv * lq[:, None, :]).reshape(BB * N_OBJ, MID).astype(mmdt),
                  W('a1_wl'), preferred_element_type=f32)
          + Bv('a1_bl')).reshape(BB, N_OBJ, G)
    x1 = x1 - jnp.max(x1, axis=1, keepdims=True)
    e1 = jnp.exp(x1)
    att1 = e1 * pl.reciprocal(jnp.sum(e1, axis=1, keepdims=True), approx=True)
    # apply: v_head^T @ att1, computed WITHOUT transposing v_head — only the tiny
    # (N,G) attention map is transposed; the result is glimpse-major and c_w11a's
    # rows were permuted host-side to match.
    att1_t = jnp.swapaxes(att1, 1, 2).astype(mmdt)                        # (BB, G, N)
    v_head1 = jnp.einsum('bgn,bnd->bgd', att1_t, vhm,
                         preferred_element_type=f32)                      # (BB, G, VF)
    vh1 = v_head1.reshape(BB, G * VF)

    # Attention_Vertical: computed in transposed (AVM-major) layout so v_head never
    # needs an explicit transpose; a2_wv/a2_wl are stored pre-transposed.
    wv_t = jnp.broadcast_to(W('a2_wv_t'), (BB, AVM, N_OBJ))
    lv2 = jnp.maximum(jnp.einsum('ban,bnd->bad', wv_t, vhm, preferred_element_type=f32)
                      + Bv('a2_bv')[:, :, None], 0.0)                     # (BB, AVM, VF)
    y2 = (lv2 * lq2[:, :, None]).astype(mmdt)
    wl_t = jnp.broadcast_to(W('a2_wl_t'), (BB, AVM, AVM))
    x2 = (jnp.einsum('bca,bad->bcd', wl_t, y2, preferred_element_type=f32)
          + Bv('a2_bl')[:, :, None])                                      # (BB, AVM, VF)
    x2 = x2 - jnp.max(x2, axis=-1, keepdims=True)                         # softmax over VF
    e2 = jnp.exp(x2)
    att2 = e2 * pl.reciprocal(jnp.sum(e2, axis=-1, keepdims=True), approx=True)
    v_head2 = jnp.einsum('bnd,bcd->bnc', vhm, att2.astype(mmdt),
                         preferred_element_type=f32)                      # (BB, N, AVM)
    vh2 = v_head2.reshape(BB, N_OBJ * AVM)

    # Classifier (c_w11 split + row-permuted host-side: no slicing of loaded weights)
    c1 = jnp.maximum(
        jnp.dot(vh1.astype(mmdt), W('c_w11a'), preferred_element_type=f32)
        + jnp.dot(vh2.astype(mmdt), W('c_w11b'), preferred_element_type=f32)
        + Bv('c_b11'), 0.0)
    c = jnp.maximum(jnp.dot((c1 * c2).astype(mmdt), W('c_w2'),
                            preferred_element_type=f32) + Bv('c_b2'), 0.0)
    logits = jnp.dot(c.astype(mmdt), W('c_w3'), preferred_element_type=f32) + Bv('c_b3')
    out_ref[...] = logits                                                 # (BB, ANS_PAD)


# ------------------------------- host-side packing -------------------------------
def pack_weights(p, dtype):
    # derived / re-laid-out weights
    w11a = p['c_w11'][:VF * G]                         # rows indexed d*G + g (feature-major)
    w11a_gm = w11a.reshape(VF, G, CLS_MID).transpose(1, 0, 2).reshape(G * VF, CLS_MID)
    derived = {
        'gcn_w1': p['gcn_w1'], 'gcn_w2': p['gcn_w2'], 'a1_wv': p['a1_wv'],
        'q_cat': jnp.concatenate([p['a1_wq'], p['a2_wq'], p['c_w12']], axis=1),
        'a1_wl': p['a1_wl'],
        'a2_wv_t': p['a2_wv'].T, 'a2_wl_t': p['a2_wl'].T,
        'c_w11a': w11a_gm, 'c_w11b': p['c_w11'][VF * G:],
        'c_w2': p['c_w2'],
        'c_w3': jnp.pad(p['c_w3'], ((0, 0), (0, ANS_PAD - ANS))),
    }
    buf = jnp.zeros((W_ROWS, W_COLS), jnp.float32)
    for name, (off, rows, cols) in WEIGHT_LAYOUT.items():
        buf = buf.at[:rows, off:off + cols].set(derived[name])
    return buf.astype(dtype)


def pack_biases(p):
    derived = {
        'a1_bv': p['a1_bv'], 'a1_bq': p['a1_bq'], 'a1_bl': p['a1_bl'],
        'a2_bv': p['a2_bv'], 'a2_bq': p['a2_bq'], 'a2_bl': p['a2_bl'],
        'c_b11': p['c_b11'], 'c_b12': p['c_b12'], 'c_b2': p['c_b2'],
        'c_b3': jnp.pad(p['c_b3'], ((0, 0), (0, ANS_PAD - ANS))),
    }
    buf = jnp.zeros((1, B_COLS), jnp.float32)
    for name, (off, _rows, cols) in BIAS_LAYOUT.items():
        buf = buf.at[:, off:off + cols].set(derived[name])
    return buf


# ------------------------------- wrapper -------------------------------
def net_forward(v, q_feat, params, *, block_b=None, matmul_dtype=jnp.bfloat16):
    """block_b=None -> one grid step (best on single-TC v5e/v6e; on v7x a 2-step
    'parallel' split across TensorCores can be benchmarked by passing
    block_b = batch // 2, provided block_b is a multiple of 8 or equals batch)."""
    batch = v.shape[0]
    if block_b is None:
        block_b = batch
    assert batch % block_b == 0, "batch must be a multiple of the batch block"
    assert block_b == batch or block_b % 8 == 0, \
        "sub-batch blocks must keep the 2-D q/out blocks (8,128)-legal"

    wpack = pack_weights(params, matmul_dtype)   # ONE constant-weight input spec
    bpack = pack_biases(params)                  # ONE bias input spec (f32)

    in_specs = [
        pl.BlockSpec((block_b, N_OBJ, VF), lambda b: (b, 0, 0)),
        pl.BlockSpec((block_b, QF), lambda b: (b, 0)),
        pl.BlockSpec((W_ROWS, W_COLS), lambda b: (0, 0)),
        pl.BlockSpec((1, B_COLS), lambda b: (0, 0)),
    ]

    out = pl.pallas_call(
        net_kernel,
        out_shape=jax.ShapeDtypeStruct((batch, ANS_PAD), jnp.float32),
        grid_spec=pltpu.PrefetchScalarGridSpec(
            num_scalar_prefetch=0,
            grid=(batch // block_b,),
            in_specs=in_specs,
            out_specs=pl.BlockSpec((block_b, ANS_PAD), lambda b: (b, 0)),
        ),
        # batch blocks are independent; no vmem_limit override needed (~1 MiB footprint,
        # well under every generation's default scoped-VMEM limit).
        compiler_params=pltpu.CompilerParams(dimension_semantics=("parallel",)),
    )(v, q_feat, wpack, bpack)
    return out[:, :ANS]


# --------------------------- plain-JAX reference ---------------------------
def reference(v, qf, p):
    v = v / (jnp.linalg.norm(v, axis=2, keepdims=True) + 1e-12)
    S = v @ jnp.swapaxes(v, 1, 2)
    a = jnp.sqrt(jnp.diagonal(S, axis1=1, axis2=2))[..., None]
    adj = (S / (a @ jnp.swapaxes(a, 1, 2)) + 1.0) / 2.0
    h = jax.nn.relu(adj @ v @ p['gcn_w1'])
    vh = adj @ h @ p['gcn_w2']
    lv = jax.nn.relu(vh @ p['a1_wv'] + p['a1_bv'])
    lq = jax.nn.relu(qf @ p['a1_wq'] + p['a1_bq'])
    a1 = jax.nn.softmax((lv * lq[:, None, :]) @ p['a1_wl'] + p['a1_bl'], axis=1)
    vh1 = (jnp.swapaxes(vh, 1, 2) @ a1).reshape(v.shape[0], -1)
    vt = jnp.swapaxes(vh, 1, 2)
    lv2 = jax.nn.relu(vt @ p['a2_wv'] + p['a2_bv'])
    lq2 = jax.nn.relu(qf @ p['a2_wq'] + p['a2_bq'])
    a2 = jax.nn.softmax((lv2 * lq2[:, None, :]) @ p['a2_wl'] + p['a2_bl'], axis=1)
    vh2 = (vh @ a2).reshape(v.shape[0], -1)
    vc = jnp.concatenate([vh1, vh2], axis=1)
    c1 = jax.nn.relu(vc @ p['c_w11'] + p['c_b11'])
    c2 = jax.nn.relu(qf @ p['c_w12'] + p['c_b12'])
    c = jax.nn.relu((c1 * c2) @ p['c_w2'] + p['c_b2'])
    return c @ p['c_w3'] + p['c_b3']


# ------------------------------- parameters -------------------------------
def init_params(key):
    ks = jax.random.split(key, 30)
    it = iter(range(30))

    def xavier(k, shape, gain=1.0):
        bound = gain * np.sqrt(6.0 / (shape[0] + shape[1]))
        return jax.random.uniform(k, shape, jnp.float32, -bound, bound)

    def bias(k, dim):
        return jax.random.uniform(k, (1, dim), jnp.float32, -0.05, 0.05)

    p = {}
    p['gcn_w1'] = xavier(ks[next(it)], (VF, VF), 1.414)
    p['gcn_w2'] = xavier(ks[next(it)], (VF, VF), 1.414)
    p['a1_wv'] = xavier(ks[next(it)], (VF, MID));    p['a1_bv'] = bias(ks[next(it)], MID)
    p['a1_wq'] = xavier(ks[next(it)], (QF, MID));    p['a1_bq'] = bias(ks[next(it)], MID)
    p['a1_wl'] = xavier(ks[next(it)], (MID, G));     p['a1_bl'] = bias(ks[next(it)], G)
    p['a2_wv'] = xavier(ks[next(it)], (N_OBJ, AVM)); p['a2_bv'] = bias(ks[next(it)], AVM)
    p['a2_wq'] = xavier(ks[next(it)], (QF, AVM));    p['a2_bq'] = bias(ks[next(it)], AVM)
    p['a2_wl'] = xavier(ks[next(it)], (AVM, AVM));   p['a2_bl'] = bias(ks[next(it)], AVM)
    p['c_w11'] = xavier(ks[next(it)], (D_IN, CLS_MID));    p['c_b11'] = bias(ks[next(it)], CLS_MID)
    p['c_w12'] = xavier(ks[next(it)], (QF, CLS_MID));      p['c_b12'] = bias(ks[next(it)], CLS_MID)
    p['c_w2'] = xavier(ks[next(it)], (CLS_MID, CLS_MID));  p['c_b2'] = bias(ks[next(it)], CLS_MID)
    p['c_w3'] = xavier(ks[next(it)], (CLS_MID, ANS));      p['c_b3'] = bias(ks[next(it)], ANS)
    return p


if __name__ == "__main__":
    key = jax.random.PRNGKey(0)
    kv, kq, kp, kb = jax.random.split(key, 4)
    v = jax.random.normal(kv, (B, N_OBJ, VF), jnp.float32)
    bbox = jax.random.uniform(kb, (B, N_OBJ, 4), jnp.float32)   # part of Net signature; unused downstream
    # TODO(synk): word_embedding.TextProcessor (embedding + LSTM question encoder) has no clean
    # Pallas equivalent here; the encoded question features q_feat are fed to the kernel directly.
    q_feat = jax.random.normal(kq, (B, QF), jnp.float32)
    params = init_params(kp)

    ref = reference(v, q_feat, params)

    # f32-matmul path: tight check against the float32 JAX reference
    out_f32 = jax.block_until_ready(net_forward(v, q_feat, params, matmul_dtype=jnp.float32))
    assert out_f32.shape == (B, ANS)
    assert np.allclose(np.asarray(out_f32), np.asarray(ref), rtol=1e-2, atol=1e-2), \
        "Pallas kernel (f32 matmuls) mismatch vs JAX reference"

    # default bf16-matmul-operand path (perf variant): f32 accumulate, looser tolerance
    out_bf16 = jax.block_until_ready(net_forward(v, q_feat, params))
    assert out_bf16.shape == (B, ANS)
    assert np.allclose(np.asarray(out_bf16), np.asarray(ref), rtol=1e-1, atol=1e-1), \
        "Pallas kernel (bf16 matmuls) mismatch vs JAX reference"

    print("KERNEL_OK")
</pallas_src>

<mosaic_0001>
module attributes {stable_mosaic.version = 11 : i64} {
  func.func @net_kernel(%arg0: i32, %arg1: memref<4x8x32xf32, #tpu.memory_space<vmem>>, %arg2: memref<4x16xf32, #tpu.memory_space<vmem>>, %arg3: memref<128x1408xf32, #tpu.memory_space<vmem>>, %arg4: memref<1x1280xf32, #tpu.memory_space<vmem>>, %arg5: memref<4x128xf32, #tpu.memory_space<vmem>>) attributes {dimension_semantics = [#tpu.dimension_semantics<parallel>], iteration_bounds = array<i64: 1>, scalar_prefetch = 0 : i64, scratch_operands = 0 : i64, tpu.core_type = #tpu.core_type<tc>, window_params = [{transform_indices = @transform_0, window_bounds = array<i64: 4, 8, 32>}, {transform_indices = @transform_1, window_bounds = array<i64: 4, 16>}, {pipeline_mode = #tpu.pipeline_mode<synchronous>, transform_indices = @transform_2, window_bounds = array<i64: 128, 1408>}, {pipeline_mode = #tpu.pipeline_mode<synchronous>, transform_indices = @transform_3, window_bounds = array<i64: 1, 1280>}, {transform_indices = @transform_4, window_bounds = array<i64: 4, 128>}]} {
    %c0 = arith.constant 0 : index
    %c0_0 = arith.constant 0 : index
    %c0_1 = arith.constant 0 : index
    %0 = vector.load %arg1[%c0, %c0_0, %c0_1] : memref<4x8x32xf32, #tpu.memory_space<vmem>>, vector<4x8x32xf32>
    %c0_2 = arith.constant 0 : index
    %c0_3 = arith.constant 0 : index
    %1 = vector.load %arg2[%c0_2, %c0_3] : memref<4x16xf32, #tpu.memory_space<vmem>>, vector<4x16xf32>
    %2 = arith.mulf %0, %0 : vector<4x8x32xf32>
    %cst = arith.constant dense<0.000000e+00> : vector<4x8xf32>
    %3 = vector.multi_reduction <add>, %2, %cst [2] : vector<4x8x32xf32> to vector<4x8xf32>
    %4 = vector.shape_cast %3 : vector<4x8xf32> to vector<4x8x1xf32>
    %cst_4 = arith.constant 1.000000e-24 : f32
    %5 = vector.broadcast %cst_4 : f32 to vector<4x8x1xf32>
    %6 = arith.addf %4, %5 : vector<4x8x1xf32>
    %7 = math.rsqrt %6 : vector<4x8x1xf32>
    %8 = vector.broadcast %7 : vector<4x8x1xf32> to vector<4x8x32xf32>
    %9 = arith.mulf %0, %8 : vector<4x8x32xf32>
    "tpu.trace_start"() <{level = 10 : i32, message = "bnd,bmd->bnm"}> : () -> ()
    %cst_5 = arith.constant dense<0.000000e+00> : vector<4x8x8xf32>
    %10 = tpu.matmul %9, %9, %cst_5 {dimension_numbers = #tpu.dot_dimension_numbers<[2], [2], [1], [1], [0, 0, 0, 1, 1, 1], [0], [0]>} : vector<4x8x32xf32>, vector<4x8x32xf32>, vector<4x8x8xf32> -> vector<4x8x8xf32>
    "tpu.trace_stop"() : () -> ()
    %cst_6 = arith.constant 1.000000e+00 : f32
    %11 = vector.broadcast %cst_6 : f32 to vector<4x8x8xf32>
    %12 = arith.addf %10, %11 : vector<4x8x8xf32>
    %cst_7 = arith.constant 5.000000e-01 : f32
    %13 = vector.broadcast %cst_7 : f32 to vector<4x8x8xf32>
    %14 = arith.mulf %13, %12 : vector<4x8x8xf32>
    "tpu.trace_start"() <{level = 10 : i32, message = "bnm,bmd->bnd"}> : () -> ()
    %cst_8 = arith.constant dense<0.000000e+00> : vector<4x8x32xf32>
    %15 = tpu.matmul %14, %9, %cst_8 {dimension_numbers = #tpu.dot_dimension_numbers<[2], [1], [1], [2], [0, 0, 0, 1, 1, 2], [0], [0]>} : vector<4x8x8xf32>, vector<4x8x32xf32>, vector<4x8x32xf32> -> vector<4x8x32xf32>
    "tpu.trace_stop"() : () -> ()
    %16 = vector.shape_cast %15 : vector<4x8x32xf32> to vector<32x32xf32>
    %c0_9 = arith.constant 0 : index
    %c0_10 = arith.constant 0 : index
    %17 = vector.load %arg3[%c0_9, %c0_10] : memref<128x1408xf32, #tpu.memory_space<vmem>>, vector<32x32xf32>
    %cst_11 = arith.constant dense<0.000000e+00> : vector<32x32xf32>
    %18 = tpu.matmul %16, %17, %cst_11 {dimension_numbers = #tpu.dot_dimension_numbers<[1], [0], [0], [1], [0, 0, 1, 1], [], []>} : vector<32x32xf32>, vector<32x32xf32>, vector<32x32xf32> -> vector<32x32xf32>
    %cst_12 = arith.constant 0.000000e+00 : f32
    %19 = vector.broadcast %cst_12 : f32 to vector<32x32xf32>
    %20 = arith.maximumf %18, %19 : vector<32x32xf32>
    %21 = vector.shape_cast %20 : vector<32x32xf32> to vector<4x8x32xf32>
    "tpu.trace_start"() <{level = 10 : i32, message = "bnm,bmd->bnd"}> : () -> ()
    %cst_13 = arith.constant dense<0.000000e+00> : vector<4x8x32xf32>
    %22 = tpu.matmul %14, %21, %cst_13 {dimension_numbers = #tpu.dot_dimension_numbers<[2], [1], [1], [2], [0, 0, 0, 1, 1, 2], [0], [0]>} : vector<4x8x8xf32>, vector<4x8x32xf32>, vector<4x8x32xf32> -> vector<4x8x32xf32>
    "tpu.trace_stop"() : () -> ()
    %23 = vector.shape_cast %22 : vector<4x8x32xf32> to vector<32x32xf32>
    %c0_14 = arith.constant 0 : index
    %c128 = arith.constant 128 : index
    %24 = vector.load %arg3[%c0_14, %c128] : memref<128x1408xf32, #tpu.memory_space<vmem>>, vector<32x32xf32>
    %cst_15 = arith.constant dense<0.000000e+00> : vector<32x32xf32>
    %25 = tpu.matmul %23, %24, %cst_15 {dimension_numbers = #tpu.dot_dimension_numbers<[1], [0], [0], [1], [0, 0, 1, 1], [], []>} : vector<32x32xf32>, vector<32x32xf32>, vector<32x32xf32> -> vector<32x32xf32>
    %26 = vector.shape_cast %25 : vector<32x32xf32> to vector<4x8x32xf32>
    %27 = vector.shape_cast %26 : vector<4x8x32xf32> to vector<32x32xf32>
    %c0_16 = arith.constant 0 : index
    %c384 = arith.constant 384 : index
    %28 = vector.load %arg3[%c0_16, %c384] : memref<128x1408xf32, #tpu.memory_space<vmem>>, vector<16x80xf32>
    %cst_17 = arith.constant dense<0.000000e+00> : vector<4x80xf32>
    %29 = tpu.matmul %1, %28, %cst_17 {dimension_numbers = #tpu.dot_dimension_numbers<[1], [0], [0], [1], [0, 0, 1, 1], [], []>} : vector<4x16xf32>, vector<16x80xf32>, vector<4x80xf32> -> vector<4x80xf32>
    %30 = vector.extract_strided_slice %29 {offsets = [0, 0], sizes = [4, 32], strides = [1, 1]} : vector<4x80xf32> to vector<4x32xf32>
    %c0_18 = arith.constant 0 : index
    %c128_19 = arith.constant 128 : index
    %31 = vector.load %arg4[%c0_18, %c128_19] : memref<1x1280xf32, #tpu.memory_space<vmem>>, vector<1x32xf32>
    %32 = vector.broadcast %31 : vector<1x32xf32> to vector<4x32xf32>
    %33 = arith.addf %30, %32 : vector<4x32xf32>
    %cst_20 = arith.constant 0.000000e+00 : f32
    %34 = vector.broadcast %cst_20 : f32 to vector<4x32xf32>
    %35 = arith.maximumf %33, %34 : vector<4x32xf32>
    %36 = vector.extract_strided_slice %29 {offsets = [0, 32], sizes = [4, 16], strides = [1, 1]} : vector<4x80xf32> to vector<4x16xf32>
    %c0_21 = arith.constant 0 : index
    %c512 = arith.constant 512 : index
    %37 = vector.load %arg4[%c0_21, %c512] : memref<1x1280xf32, #tpu.memory_space<vmem>>, vector<1x16xf32>
    %38 = vector.broadcast %37 : vector<1x16xf32> to vector<4x16xf32>
    %39 = arith.addf %36, %38 : vector<4x16xf32>
    %cst_22 = arith.constant 0.000000e+00 : f32
    %40 = vector.broadcast %cst_22 : f32 to vector<4x16xf32>
    %41 = arith.maximumf %39, %40 : vector<4x16xf32>
    %42 = vector.extract_strided_slice %29 {offsets = [0, 48], sizes = [4, 32], strides = [1, 1]} : vector<4x80xf32> to vector<4x32xf32>
    %c0_23 = arith.constant 0 : index
    %c896 = arith.constant 896 : index
    %43 = vector.load %arg4[%c0_23, %c896] : memref<1x1280xf32, #tpu.memory_space<vmem>>, vector<1x32xf32>
    %44 = vector.broadcast %43 : vector<1x32xf32> to vector<4x32xf32>
    %45 = arith.addf %42, %44 : vector<4x32xf32>
    %cst_24 = arith.constant 0.000000e+00 : f32
    %46 = vector.broadcast %cst_24 : f32 to vector<4x32xf32>
    %47 = arith.maximumf %45, %46 : vector<4x32xf32>
    %c0_25 = arith.constant 0 : index
    %c256 = arith.constant 256 : index
    %48 = vector.load %arg3[%c0_25, %c256] : memref<128x1408xf32, #tpu.memory_space<vmem>>, vector<32x32xf32>
    %cst_26 = arith.constant dense<0.000000e+00> : vector<32x32xf32>
    %49 = tpu.matmul %27, %48, %cst_26 {dimension_numbers = #tpu.dot_dimension_numbers<[1], [0], [0], [1], [0, 0, 1, 1], [], []>} : vector<32x32xf32>, vector<32x32xf32>, vector<32x32xf32> -> vector<32x32xf32>
    %c0_27 = arith.constant 0 : index
    %c0_28 = arith.constant 0 : index
    %50 = vector.load %arg4[%c0_27, %c0_28] : memref<1x1280xf32, #tpu.memory_space<vmem>>, vector<1x32xf32>
    %51 = vector.broadcast %50 : vector<1x32xf32> to vector<32x32xf32>
    %52 = arith.addf %49, %51 : vector<32x32xf32>
    %cst_29 = arith.constant 0.000000e+00 : f32
    %53 = vector.broadcast %cst_29 : f32 to vector<32x32xf32>
    %54 = arith.maximumf %52, %53 : vector<32x32xf32>
    %55 = vector.shape_cast %54 : vector<32x32xf32> to vector<4x8x32xf32>
    %56 = vector.shape_cast %35 : vector<4x32xf32> to vector<4x1x32xf32>
    %57 = vector.broadcast %56 : vector<4x1x32xf32> to vector<4x8x32xf32>
    %58 = arith.mulf %55, %57 : vector<4x8x32xf32>
    %59 = vector.shape_cast %58 : vector<4x8x32xf32> to vector<32x32xf32>
    %c0_30 = arith.constant 0 : index
    %c512_31 = arith.constant 512 : index
    %60 = vector.load %arg3[%c0_30, %c512_31] : memref<128x1408xf32, #tpu.memory_space<vmem>>, vector<32x2xf32>
    %cst_32 = arith.constant dense<0.000000e+00> : vector<32x2xf32>
    %61 = tpu.matmul %59, %60, %cst_32 {dimension_numbers = #tpu.dot_dimension_numbers<[1], [0], [0], [1], [0, 0, 1, 1], [], []>} : vector<32x32xf32>, vector<32x2xf32>, vector<32x2xf32> -> vector<32x2xf32>
    %c0_33 = arith.constant 0 : index
    %c256_34 = arith.constant 256 : index
    %62 = vector.load %arg4[%c0_33, %c256_34] : memref<1x1280xf32, #tpu.memory_space<vmem>>, vector<1x2xf32>
    %63 = vector.broadcast %62 : vector<1x2xf32> to vector<32x2xf32>
    %64 = arith.addf %61, %63 : vector<32x2xf32>
    %65 = vector.shape_cast %64 : vector<32x2xf32> to vector<4x8x2xf32>
    %cst_35 = arith.constant dense<0xFF800000> : vector<4x2xf32>
    %66 = vector.multi_reduction <maximumf>, %65, %cst_35 [1] : vector<4x8x2xf32> to vector<4x2xf32>
    %67 = vector.shape_cast %66 : vector<4x2xf32> to vector<4x1x2xf32>
    %68 = vector.broadcast %67 : vector<4x1x2xf32> to vector<4x8x2xf32>
    %69 = arith.subf %65, %68 : vector<4x8x2xf32>
    %70 = math.exp %69 : vector<4x8x2xf32>
    %cst_36 = arith.constant dense<0.000000e+00> : vector<4x2xf32>
    %71 = vector.multi_reduction <add>, %70, %cst_36 [1] : vector<4x8x2xf32> to vector<4x2xf32>
    %72 = vector.shape_cast %71 : vector<4x2xf32> to vector<4x1x2xf32>
    %73 = tpu.reciprocal %72 {approx = true} : vector<4x1x2xf32> -> vector<4x1x2xf32>
    %74 = vector.broadcast %73 : vector<4x1x2xf32> to vector<4x8x2xf32>
    %75 = arith.mulf %70, %74 : vector<4x8x2xf32>
    %76 = tpu.transpose %75, [0, 2, 1] : vector<4x8x2xf32> -> vector<4x2x8xf32>
    "tpu.trace_start"() <{level = 10 : i32, message = "bgn,bnd->bgd"}> : () -> ()
    %cst_37 = arith.constant dense<0.000000e+00> : vector<4x2x32xf32>
    %77 = tpu.matmul %76, %26, %cst_37 {dimension_numbers = #tpu.dot_dimension_numbers<[2], [1], [1], [2], [0, 0, 0, 1, 1, 2], [0], [0]>} : vector<4x2x8xf32>, vector<4x8x32xf32>, vector<4x2x32xf32> -> vector<4x2x32xf32>
    "tpu.trace_stop"() : () -> ()
    %78 = vector.shape_cast %77 : vector<4x2x32xf32> to vector<4x64xf32>
    %c0_38 = arith.constant 0 : index
    %c640 = arith.constant 640 : index
    %79 = vector.load %arg3[%c0_38, %c640] : memref<128x1408xf32, #tpu.memory_space<vmem>>, vector<16x8xf32>
    %80 = vector.shape_cast %79 : vector<16x8xf32> to vector<1x16x8xf32>
    %81 = vector.broadcast %80 : vector<1x16x8xf32> to vector<4x16x8xf32>
    "tpu.trace_start"() <{level = 10 : i32, message = "ban,bnd->bad"}> : () -> ()
    %cst_39 = arith.constant dense<0.000000e+00> : vector<4x16x32xf32>
    %82 = tpu.matmul %81, %26, %cst_39 {dimension_numbers = #tpu.dot_dimension_numbers<[2], [1], [1], [2], [0, 0, 0, 1, 1, 2], [0], [0]>} : vector<4x16x8xf32>, vector<4x8x32xf32>, vector<4x16x32xf32> -> vector<4x16x32xf32>
    "tpu.trace_stop"() : () -> ()
    %c0_40 = arith.constant 0 : index
    %c384_41 = arith.constant 384 : index
    %83 = vector.load %arg4[%c0_40, %c384_41] : memref<1x1280xf32, #tpu.memory_space<vmem>>, vector<1x16xf32>
    %84 = vector.shape_cast %83 : vector<1x16xf32> to vector<1x16x1xf32>
    %85 = vector.broadcast %84 : vector<1x16x1xf32> to vector<4x16x32xf32>
    %86 = arith.addf %82, %85 : vector<4x16x32xf32>
    %cst_42 = arith.constant 0.000000e+00 : f32
    %87 = vector.broadcast %cst_42 : f32 to vector<4x16x32xf32>
    %88 = arith.maximumf %86, %87 : vector<4x16x32xf32>
    %89 = vector.shape_cast %41 : vector<4x16xf32> to vector<4x16x1xf32>
    %90 = vector.broadcast %89 : vector<4x16x1xf32> to vector<4x16x32xf32>
    %91 = arith.mulf %88, %90 : vector<4x16x32xf32>
    %c0_43 = arith.constant 0 : index
    %c768 = arith.constant 768 : index
    %92 = vector.load %arg3[%c0_43, %c768] : memref<128x1408xf32, #tpu.memory_space<vmem>>, vector<16x16xf32>
    %93 = vector.shape_cast %92 : vector<16x16xf32> to vector<1x16x16xf32>
    %94 = vector.broadcast %93 : vector<1x16x16xf32> to vector<4x16x16xf32>
    "tpu.trace_start"() <{level = 10 : i32, message = "bca,bad->bcd"}> : () -> ()
    %cst_44 = arith.constant dense<0.000000e+00> : vector<4x16x32xf32>
    %95 = tpu.matmul %94, %91, %cst_44 {dimension_numbers = #tpu.dot_dimension_numbers<[2], [1], [1], [2], [0, 0, 0, 1, 1, 2], [0], [0]>} : vector<4x16x16xf32>, vector<4x16x32xf32>, vector<4x16x32xf32> -> vector<4x16x32xf32>
    "tpu.trace_stop"() : () -> ()
    %c0_45 = arith.constant 0 : index
    %c640_46 = arith.constant 640 : index
    %96 = vector.load %arg4[%c0_45, %c640_46] : memref<1x1280xf32, #tpu.memory_space<vmem>>, vector<1x16xf32>
    %97 = vector.shape_cast %96 : vector<1x16xf32> to vector<1x16x1xf32>
    %98 = vector.broadcast %97 : vector<1x16x1xf32> to vector<4x16x32xf32>
    %99 = arith.addf %95, %98 : vector<4x16x32xf32>
    %cst_47 = arith.constant dense<0xFF800000> : vector<4x16xf32>
    %100 = vector.multi_reduction <maximumf>, %99, %cst_47 [2] : vector<4x16x32xf32> to vector<4x16xf32>
    %101 = vector.shape_cast %100 : vector<4x16xf32> to vector<4x16x1xf32>
    %102 = vector.broadcast %101 : vector<4x16x1xf32> to vector<4x16x32xf32>
    %103 = arith.subf %99, %102 : vector<4x16x32xf32>
    %104 = math.exp %103 : vector<4x16x32xf32>
    %cst_48 = arith.constant dense<0.000000e+00> : vector<4x16xf32>
    %105 = vector.multi_reduction <add>, %104, %cst_48 [2] : vector<4x16x32xf32> to vector<4x16xf32>
    %106 = vector.shape_cast %105 : vector<4x16xf32> to vector<4x16x1xf32>
    %107 = tpu.reciprocal %106 {approx = true} : vector<4x16x1xf32> -> vector<4x16x1xf32>
    %108 = vector.broadcast %107 : vector<4x16x1xf32> to vector<4x16x32xf32>
    %109 = arith.mulf %104, %108 : vector<4x16x32xf32>
    "tpu.trace_start"() <{level = 10 : i32, message = "bnd,bcd->bnc"}> : () -> ()
    %cst_49 = arith.constant dense<0.000000e+00> : vector<4x8x16xf32>
    %110 = tpu.matmul %26, %109, %cst_49 {dimension_numbers = #tpu.dot_dimension_numbers<[2], [2], [1], [1], [0, 0, 0, 1, 1, 1], [0], [0]>} : vector<4x8x32xf32>, vector<4x16x32xf32>, vector<4x8x16xf32> -> vector<4x8x16xf32>
    "tpu.trace_stop"() : () -> ()
    %111 = vector.shape_cast %110 : vector<4x8x16xf32> to vector<4x128xf32>
    %c0_50 = arith.constant 0 : index
    %c896_51 = arith.constant 896 : index
    %112 = vector.load %arg3[%c0_50, %c896_51] : memref<128x1408xf32, #tpu.memory_space<vmem>>, vector<64x32xf32>
    %cst_52 = arith.constant dense<0.000000e+00> : vector<4x32xf32>
    %113 = tpu.matmul %78, %112, %cst_52 {dimension_numbers = #tpu.dot_dimension_numbers<[1], [0], [0], [1], [0, 0, 1, 1], [], []>} : vector<4x64xf32>, vector<64x32xf32>, vector<4x32xf32> -> vector<4x32xf32>
    %c0_53 = arith.constant 0 : index
    %c1024 = arith.constant 1024 : index
    %114 = vector.load %arg3[%c0_53, %c1024] : memref<128x1408xf32, #tpu.memory_space<vmem>>, vector<128x32xf32>
    %cst_54 = arith.constant dense<0.000000e+00> : vector<4x32xf32>
    %115 = tpu.matmul %111, %114, %cst_54 {dimension_numbers = #tpu.dot_dimension_numbers<[1], [0], [0], [1], [0, 0, 1, 1], [], []>} : vector<4x128xf32>, vector<128x32xf32>, vector<4x32xf32> -> vector<4x32xf32>
    %116 = arith.addf %113, %115 : vector<4x32xf32>
    %c0_55 = arith.constant 0 : index
    %c768_56 = arith.constant 768 : index
    %117 = vector.load %arg4[%c0_55, %c768_56] : memref<1x1280xf32, #tpu.memory_space<vmem>>, vector<1x32xf32>
    %118 = vector.broadcast %117 : vector<1x32xf32> to vector<4x32xf32>
    %119 = arith.addf %116, %118 : vector<4x32xf32>
    %cst_57 = arith.constant 0.000000e+00 : f32
    %120 = vector.broadcast %cst_57 : f32 to vector<4x32xf32>
    %121 = arith.maximumf %119, %120 : vector<4x32xf32>
    %122 = arith.mulf %121, %47 : vector<4x32xf32>
    %c0_58 = arith.constant 0 : index
    %c1152 = arith.constant 1152 : index
    %123 = vector.load %arg3[%c0_58, %c1152] : memref<128x1408xf32, #tpu.memory_space<vmem>>, vector<32x32xf32>
    %cst_59 = arith.constant dense<0.000000e+00> : vector<4x32xf32>
    %124 = tpu.matmul %122, %123, %cst_59 {dimension_numbers = #tpu.dot_dimension_numbers<[1], [0], [0], [1], [0, 0, 1, 1], [], []>} : vector<4x32xf32>, vector<32x32xf32>, vector<4x32xf32> -> vector<4x32xf32>
    %c0_60 = arith.constant 0 : index
    %c1024_61 = arith.constant 1024 : index
    %125 = vector.load %arg4[%c0_60, %c1024_61] : memref<1x1280xf32, #tpu.memory_space<vmem>>, vector<1x32xf32>
    %126 = vector.broadcast %125 : vector<1x32xf32> to vector<4x32xf32>
    %127 = arith.addf %124, %126 : vector<4x32xf32>
    %cst_62 = arith.constant 0.000000e+00 : f32
    %128 = vector.broadcast %cst_62 : f32 to vector<4x32xf32>
    %129 = arith.maximumf %127, %128 : vector<4x32xf32>
    %c0_63 = arith.constant 0 : index
    %c1280 = arith.constant 1280 : index
    %130 = vector.load %arg3[%c0_63, %c1280] : memref<128x1408xf32, #tpu.memory_space<vmem>>, vector<32x128xf32>
    %cst_64 = arith.constant dense<0.000000e+00> : vector<4x128xf32>
    %131 = tpu.matmul %129, %130, %cst_64 {dimension_numbers = #tpu.dot_dimension_numbers<[1], [0], [0], [1], [0, 0, 1, 1], [], []>} : vector<4x32xf32>, vector<32x128xf32>, vector<4x128xf32> -> vector<4x128xf32>
    %c0_65 = arith.constant 0 : index
    %c1152_66 = arith.constant 1152 : index
    %132 = vector.load %arg4[%c0_65, %c1152_66] : memref<1x1280xf32, #tpu.memory_space<vmem>>, vector<1x128xf32>
    %133 = vector.broadcast %132 : vector<1x128xf32> to vector<4x128xf32>
    %134 = arith.addf %131, %133 : vector<4x128xf32>
    %c0_67 = arith.constant 0 : index
    %c0_68 = arith.constant 0 : index
    %135 = vector.load %arg5[%c0_67, %c0_68] : memref<4x128xf32, #tpu.memory_space<vmem>>, vector<4x128xf32>
    tpu.vector_store %arg5[%c0_67, %c0_68], %134 {strides = array<i32>} : memref<4x128xf32, #tpu.memory_space<vmem>>, vector<4x128xf32>,
    return
  }
  func.func @transform_0(%arg0: i32) -> (i32, i32, i32) {
    %c0_i32 = arith.constant 0 : i32
    %c0_i32_0 = arith.constant 0 : i32
    %c0_i32_1 = arith.constant 0 : i32
    return %arg0, %c0_i32, %c0_i32_0 : i32, i32, i32
  }
  func.func @transform_1(%arg0: i32) -> (i32, i32) {
    %c0_i32 = arith.constant 0 : i32
    %c0_i32_0 = arith.constant 0 : i32
    return %arg0, %c0_i32 : i32, i32
  }
  func.func @transform_2(%arg0: i32) -> (i32, i32) {
    %c0_i32 = arith.constant 0 : i32
    %c0_i32_0 = arith.constant 0 : i32
    %c0_i32_1 = arith.constant 0 : i32
    return %c0_i32, %c0_i32_0 : i32, i32
  }
  func.func @transform_3(%arg0: i32) -> (i32, i32) {
    %c0_i32 = arith.constant 0 : i32
    %c0_i32_0 = arith.constant 0 : i32
    %c0_i32_1 = arith.constant 0 : i32
    return %c0_i32, %c0_i32_0 : i32, i32
  }
  func.func @transform_4(%arg0: i32) -> (i32, i32) {
    %c0_i32 = arith.constant 0 : i32
    %c0_i32_0 = arith.constant 0 : i32
    return %arg0, %c0_i32 : i32, i32
  }
}

</mosaic_0001>

<llo_original>
// kernel: tpu_custom_call.1
$region0: #{tpu_custom_call.1}
  #allocation0 [shape = 'u32[]', space=smem, size = 0x4, offset = 0x4, fixed_abs, tag = 'smem constant byte address 0x4 - core index']
  #allocation1 [shape = 'u32[144,128]{1,0:T(1,128)}', space=vmem, size = 0x12000, scoped, tag = 'internal scratch']
  %s0 = inlined_call_operand.hbm [shape: f32[4,8,32], index: 0, kind: input, shape index: {}]
  %s1 = inlined_call_operand.hbm [shape: f32[4,16], index: 1, kind: input, shape index: {}]
  %s2 = inlined_call_operand.hbm [shape: f32[128,1408], index: 2, kind: input, shape index: {}]
  %s3 = inlined_call_operand.vmem [shape: f32[1,1280], index: 3, kind: input, shape index: {}]
  %s4 = inlined_call_operand.hbm [shape: f32[4,128], index: 4, kind: output, shape index: {}]
  %s5 = sld [smem:[#allocation0]]
  $region38: #{tpu_custom_call.1} parent=0
    _
  %s7 = ssub.s32 1, %s5
  %s8 = scalar_select 0, %s7, %s5
  $region1: #{tpu_custom_call.1} parent=0
    #allocation2 [shape = 'u8[16384]{0}', space=vmem, size = 0x4000, scoped, tag = 'input window, operand 0, single buffered']
    #allocation3 [shape = 's32[1]{0}', space=sflag, size = 0x4, scoped, tag = 'scoped memory for tpu_custom_call.1']
    #allocation4 [shape = 's32[1]{0}', space=sflag, size = 0x4, scoped, tag = 'scoped memory for tpu_custom_call.1']
    #allocation5 [shape = 'u8[2048]{0}', space=vmem, size = 0x800, scoped, tag = 'input window, operand 1, single buffered']
    #allocation6 [shape = 's32[1]{0}', space=sflag, size = 0x4, scoped, tag = 'scoped memory for tpu_custom_call.1']
    #allocation7 [shape = 'u8[720896]{0}', space=vmem, size = 0xb0000, scoped, tag = 'input window, operand 2, single buffered']
    #allocation8 [shape = 'u8[2048]{0}', space=vmem, size = 0x800, scoped, tag = 'output window, operand 0, single buffered']
    %9 = vsyncpa [#allocation3], 0
    %10 = vsyncpa [#allocation6], 0
    %11 = vsyncpa [#allocation4], 0
    // Predicated region
    $region2: #{tpu_custom_call.1} parent=1 // pred_check
      _
    $region3: #{tpu_custom_call.1} parent=1 // pred_check_branch
      %13 = sbr.rel (0) target = $region5
    $region4: #{tpu_custom_call.1} parent=1 // pred_region
      %s15 = ssub.s32 512, 512
      %16 = vsyncadd [#allocation3], %s15
      %s17 = sshll.u32 [#allocation2], 4
      %s18 = int_to_ptr.vmem [resolvable:$true] %s17
      %23 = dma.hbm_to_vmem [thread:$0]  %s0, 512, %s18, [#allocation3], 128, 128, 8
    $region5: #{tpu_custom_call.1} parent=1 // pred_fallthru
      _
    // Predicated region
    $region6: #{tpu_custom_call.1} parent=1 // pred_check
      _
    $region7: #{tpu_custom_call.1} parent=1 // pred_check_branch
      %25 = sbr.rel (0) target = $region9
    $region8: #{tpu_custom_call.1} parent=1 // pred_region
      %s27 = ssub.s32 64, 64
      %28 = vsyncadd [#allocation6], %s27
      %s30 = sshll.u32 [#allocation5], 4
      %s31 = int_to_ptr.vmem [resolvable:$true] %s30
      %33 = dma.hbm_to_vmem [thread:$0]  %s1, 64, %s31, [#allocation6]
    $region9: #{tpu_custom_call.1} parent=1 // pred_fallthru
      _
    // Predicated region
    $region10: #{tpu_custom_call.1} parent=1 // pred_check
      _
    $region11: #{tpu_custom_call.1} parent=1 // pred_check_branch
      %35 = sbr.rel (0) target = $region13
    $region12: #{tpu_custom_call.1} parent=1 // pred_region
      %s37 = ssub.s32 22528, 22528
      %38 = vsyncadd [#allocation6], %s37
      %s39 = sshll.u32 [#allocation7], 4
      %s40 = int_to_ptr.vmem [resolvable:$true] %s39
      %45 = dma.hbm_to_vmem [thread:$0]  %s2, 22528, %s40, [#allocation6], 1408, 1408, 88
    $region13: #{tpu_custom_call.1} parent=1 // pred_fallthru
      _
    // Predicated region
    $region14: #{tpu_custom_call.1} parent=1 // pred_check
      _
    $region15: #{tpu_custom_call.1} parent=1 // pred_check_branch
      %47 = sbr.rel (0) target = $region17
    $region16: #{tpu_custom_call.1} parent=1 // pred_region
      _
    $region17: #{tpu_custom_call.1} parent=1 // pred_fallthru
      _
    // Predicated region
    $region18: #{tpu_custom_call.1} parent=1 // pred_check
      _
    $region19: #{tpu_custom_call.1} parent=1 // pred_check_branch
      %49 = sbr.rel (0) target = $region21
    $region20: #{tpu_custom_call.1} parent=1 // pred_region
      %50 = dma.done [#allocation3], 512
    $region21: #{tpu_custom_call.1} parent=1 // pred_fallthru
      _
    // Predicated region
    $region22: #{tpu_custom_call.1} parent=1 // pred_check
      _
    $region23: #{tpu_custom_call.1} parent=1 // pred_check_branch
      %52 = sbr.rel (0) target = $region25
    $region24: #{tpu_custom_call.1} parent=1 // pred_region
      %53 = dma.done [#allocation6], 64
    $region25: #{tpu_custom_call.1} parent=1 // pred_fallthru
      _
    // Predicated region
    $region26: #{tpu_custom_call.1} parent=1 // pred_check
      _
    $region27: #{tpu_custom_call.1} parent=1 // pred_check_branch
      %55 = sbr.rel (0) target = $region29
    $region28: #{tpu_custom_call.1} parent=1 // pred_region
      %56 = dma.done [#allocation6], 22528
    $region29: #{tpu_custom_call.1} parent=1 // pred_fallthru
      _
    %v57 = vld [vmem:[#allocation2] sm:$0xff]
    %v58 = vld [vmem:[#allocation2 + $0x8] sm:$0xff]
    %v59 = vld [vmem:[#allocation2 + $0x10] sm:$0xff]
    %v60 = vld [vmem:[#allocation2 + $0x18] sm:$0xff]
    %v61 = vld [vmem:[#allocation5] sm:$0xf]
    %v62 = vmul.f32 %v57, %v57
    %v63 = vmul.f32 %v58, %v58
    %v64 = vmul.f32 %v59, %v59
    %v65 = vmul.f32 %v60, %v60
    %vm66 = vcmask 261120
    %v67 = vsel %vm66, %v62, 0.0
    %68 = vadd.xlane.f32.xlu0 %v67
    %v69 = vpop.xlane.xlu0 %68
    %v70 = vsel %vm66, %v63, 0.0
    %71 = vadd.xlane.f32.xlu0 %v70
    %v72 = vpop.xlane.xlu0 %71
    %v73 = vsel %vm66, %v64, 0.0
    %74 = vadd.xlane.f32.xlu0 %v73
    %v75 = vpop.xlane.xlu0 %74
    %v76 = vsel %vm66, %v65, 0.0
    %77 = vadd.xlane.f32.xlu0 %v76
    %v78 = vpop.xlane.xlu0 %77
    %v79 = vadd.f32 %v69, 1e-24
    %v80 = vadd.f32 %v72, 1e-24
    %v81 = vadd.f32 %v75, 1e-24
    %v82 = vadd.f32 %v78, 1e-24
    %v83 = vrsqrt.pop %v79
    %v84 = vrsqrt.pop %v80
    %v85 = vrsqrt.pop %v81
    %v86 = vrsqrt.pop %v82
    %v87 = vmul.f32 %v57, %v83
    %v88 = vmul.f32 %v58, %v84
    %v89 = vmul.f32 %v59, %v85
    %v90 = vmul.f32 %v60, %v86
    %v92 = vsel %vm66, %v87, 0
    %94 = vmatprep.subr.mxu0 0.0
    %95 = vmatpush1.xpose.msra.mxu0 %v92
    %96 = vmatprep.subr.mxu0 0.0
    %97 = vmatpush1.xpose.msra.mxu0 0.0
    %98 = vmatprep.subr.mxu0 0.0
    %99 = vmatpush1.xpose.msra.mxu0 0.0
    %100 = vmatprep.subr.mxu0 0.0
    %101 = vmatpush1.xpose.msra.mxu0 0.0
    %102 = vmatprep.subr.mxu0 0.0
    %103 = vmatpush1.xpose.msra.mxu0 0.0
    %104 = vmatprep.subr.mxu0 0.0
    %105 = vmatpush1.xpose.msra.mxu0 0.0
    %106 = vmatprep.subr.mxu0 0.0
    %107 = vmatpush1.xpose.msra.mxu0 0.0
    %108 = vmatprep.subr.mxu0 0.0
    %109 = vmatpush1.xpose.msra.mxu0 0.0
    %110 = vmatprep.subr.mxu0 0.0
    %111 = vmatpush1.xpose.msra.mxu0 0.0
    %112 = vmatprep.subr.mxu0 0.0
    %113 = vmatpush1.xpose.msra.mxu0 0.0
    %114 = vmatprep.subr.mxu0 0.0
    %115 = vmatpush1.xpose.msra.mxu0 0.0
    %116 = vmatprep.subr.mxu0 0.0
    %117 = vmatpush1.xpose.msra.mxu0 0.0
    %118 = vmatprep.subr.mxu0 0.0
    %119 = vmatpush1.xpose.msra.mxu0 0.0
    %120 = vmatprep.subr.mxu0 0.0
    %121 = vmatpush1.xpose.msra.mxu0 0.0
    %122 = vmatprep.subr.mxu0 0.0
    %123 = vmatpush1.xpose.msra.mxu0 0.0
    %124 = vmatprep.subr.mxu0 0.0
    %125 = vmatpush1.xpose.msra.mxu0 0.0
    %126 = vmatprep.subr.mxu0 0.0
    %127 = vmatpush1.xpose.msra.mxu0 0.0
    %128 = vmatprep.subr.mxu0 0.0
    %129 = vmatpush1.xpose.msra.mxu0 0.0
    %130 = vmatprep.subr.mxu0 0.0
    %131 = vmatpush1.xpose.msra.mxu0 0.0
    %132 = vmatprep.subr.mxu0 0.0
    %133 = vmatpush1.xpose.msra.mxu0 0.0
    %134 = vmatprep.subr.mxu0 0.0
    %135 = vmatpush1.xpose.msra.mxu0 0.0
    %136 = vmatprep.subr.mxu0 0.0
    %137 = vmatpush1.xpose.msra.mxu0 0.0
    %138 = vmatprep.subr.mxu0 0.0
    %139 = vmatpush1.xpose.msra.mxu0 0.0
    %140 = vmatprep.subr.mxu0 0.0
    %141 = vmatpush1.xpose.msra.mxu0 0.0
    %142 = vmatprep.subr.mxu0 0.0
    %143 = vmatpush1.xpose.msra.mxu0 0.0
    %144 = vmatprep.subr.mxu0 0.0
    %145 = vmatpush1.xpose.msra.mxu0 0.0
    %146 = vmatprep.subr.mxu0 0.0
    %147 = vmatpush1.xpose.msra.mxu0 0.0
    %148 = vmatprep.subr.mxu0 0.0
    %149 = vmatpush1.xpose.msra.mxu0 0.0
    %150 = vmatprep.subr.mxu0 0.0
    %151 = vmatpush1.xpose.msra.mxu0 0.0
    %152 = vmatprep.subr.mxu0 0.0
    %153 = vmatpush1.xpose.msra.mxu0 0.0
    %154 = vmatprep.subr.mxu0 0.0
    %155 = vmatpush1.xpose.msra.mxu0 0.0
    %156 = vmatprep.subr.mxu0 0.0
    %157 = vmatpush1.xpose.msra.mxu0 0.0
    %158 = vmatprep.mubr.f32.mxu0 0.0
    %159 = vmatmul.mubr.f32.gmra.mrb[0].mxu0 %v92
    %v160 = vpop.f32.mrb[0].mxu0
    %v161 = vadd.f32 1.0, %v160
    %v162 = vpop.f32.mrb[0].mxu0
    %163 = vdwg.mxu0
    %v165 = vsel %vm66, %v88, 0
    %167 = vmatprep.subr.mxu0 0.0
    %168 = vmatpush1.xpose.msra.mxu0 %v165
    %169 = vmatprep.subr.mxu0 0.0
    %170 = vmatpush1.xpose.msra.mxu0 0.0
    %171 = vmatprep.subr.mxu0 0.0
    %172 = vmatpush1.xpose.msra.mxu0 0.0
    %173 = vmatprep.subr.mxu0 0.0
    %174 = vmatpush1.xpose.msra.mxu0 0.0
    %175 = vmatprep.subr.mxu0 0.0
    %176 = vmatpush1.xpose.msra.mxu0 0.0
    %177 = vmatprep.subr.mxu0 0.0
    %178 = vmatpush1.xpose.msra.mxu0 0.0
    %179 = vmatprep.subr.mxu0 0.0
    %180 = vmatpush1.xpose.msra.mxu0 0.0
    %181 = vmatprep.subr.mxu0 0.0
    %182 = vmatpush1.xpose.msra.mxu0 0.0
    %183 = vmatprep.subr.mxu0 0.0
    %184 = vmatpush1.xpose.msra.mxu0 0.0
    %185 = vmatprep.subr.mxu0 0.0
    %186 = vmatpush1.xpose.msra.mxu0 0.0
    %187 = vmatprep.subr.mxu0 0.0
    %188 = vmatpush1.xpose.msra.mxu0 0.0
    %189 = vmatprep.subr.mxu0 0.0
    %190 = vmatpush1.xpose.msra.mxu0 0.0
    %191 = vmatprep.subr.mxu0 0.0
    %192 = vmatpush1.xpose.msra.mxu0 0.0
    %193 = vmatprep.subr.mxu0 0.0
    %194 = vmatpush1.xpose.msra.mxu0 0.0
    %195 = vmatprep.subr.mxu0 0.0
    %196 = vmatpush1.xpose.msra.mxu0 0.0
    %197 = vmatprep.subr.mxu0 0.0
    %198 = vmatpush1.xpose.msra.mxu0 0.0
    %199 = vmatprep.subr.mxu0 0.0
    %200 = vmatpush1.xpose.msra.mxu0 0.0
    %201 = vmatprep.subr.mxu0 0.0
    %202 = vmatpush1.xpose.msra.mxu0 0.0
    %203 = vmatprep.subr.mxu0 0.0
    %204 = vmatpush1.xpose.msra.mxu0 0.0
    %205 = vmatprep.subr.mxu0 0.0
    %206 = vmatpush1.xpose.msra.mxu0 0.0
    %207 = vmatprep.subr.mxu0 0.0
    %208 = vmatpush1.xpose.msra.mxu0 0.0
    %209 = vmatprep.subr.mxu0 0.0
    %210 = vmatpush1.xpose.msra.mxu0 0.0
    %211 = vmatprep.subr.mxu0 0.0
    %212 = vmatpush1.xpose.msra.mxu0 0.0
    %213 = vmatprep.subr.mxu0 0.0
    %214 = vmatpush1.xpose.msra.mxu0 0.0
    %215 = vmatprep.subr.mxu0 0.0
    %216 = vmatpush1.xpose.msra.mxu0 0.0
    %217 = vmatprep.subr.mxu0 0.0
    %218 = vmatpush1.xpose.msra.mxu0 0.0
    %219 = vmatprep.subr.mxu0 0.0
    %220 = vmatpush1.xpose.msra.mxu0 0.0
    %221 = vmatprep.subr.mxu0 0.0
    %222 = vmatpush1.xpose.msra.mxu0 0.0
    %223 = vmatprep.subr.mxu0 0.0
    %224 = vmatpush1.xpose.msra.mxu0 0.0
    %225 = vmatprep.subr.mxu0 0.0
    %226 = vmatpush1.xpose.msra.mxu0 0.0
    %227 = vmatprep.subr.mxu0 0.0
    %228 = vmatpush1.xpose.msra.mxu0 0.0
    %229 = vmatprep.subr.mxu0 0.0
    %230 = vmatpush1.xpose.msra.mxu0 0.0
    %231 = vmatprep.mubr.f32.mxu0 0.0
    %232 = vmatmul.mubr.f32.gmra.mrb[0].mxu0 %v165
    %v233 = vpop.f32.mrb[0].mxu0
    %v234 = vadd.f32 1.0, %v233
    %v235 = vpop.f32.mrb[0].mxu0
    %236 = vdwg.mxu0
    %v238 = vsel %vm66, %v89, 0
    %240 = vmatprep.subr.mxu0 0.0
    %241 = vmatpush1.xpose.msra.mxu0 %v238
    %242 = vmatprep.subr.mxu0 0.0
    %243 = vmatpush1.xpose.msra.mxu0 0.0
    %244 = vmatprep.subr.mxu0 0.0
    %245 = vmatpush1.xpose.msra.mxu0 0.0
    %246 = vmatprep.subr.mxu0 0.0
    %247 = vmatpush1.xpose.msra.mxu0 0.0
    %248 = vmatprep.subr.mxu0 0.0
    %249 = vmatpush1.xpose.msra.mxu0 0.0
    %250 = vmatprep.subr.mxu0 0.0
    %251 = vmatpush1.xpose.msra.mxu0 0.0
    %252 = vmatprep.subr.mxu0 0.0
    %253 = vmatpush1.xpose.msra.mxu0 0.0
    %254 = vmatprep.subr.mxu0 0.0
    %255 = vmatpush1.xpose.msra.mxu0 0.0
    %256 = vmatprep.subr.mxu0 0.0
    %257 = vmatpush1.xpose.msra.mxu0 0.0
    %258 = vmatprep.subr.mxu0 0.0
    %259 = vmatpush1.xpose.msra.mxu0 0.0
    %260 = vmatprep.subr.mxu0 0.0
    %261 = vmatpush1.xpose.msra.mxu0 0.0
    %262 = vmatprep.subr.mxu0 0.0
    %263 = vmatpush1.xpose.msra.mxu0 0.0
    %264 = vmatprep.subr.mxu0 0.0
    %265 = vmatpush1.xpose.msra.mxu0 0.0
    %266 = vmatprep.subr.mxu0 0.0
    %267 = vmatpush1.xpose.msra.mxu0 0.0
    %268 = vmatprep.subr.mxu0 0.0
    %269 = vmatpush1.xpose.msra.mxu0 0.0
    %270 = vmatprep.subr.mxu0 0.0
    %271 = vmatpush1.xpose.msra.mxu0 0.0
    %272 = vmatprep.subr.mxu0 0.0
    %273 = vmatpush1.xpose.msra.mxu0 0.0
    %274 = vmatprep.subr.mxu0 0.0
    %275 = vmatpush1.xpose.msra.mxu0 0.0
    %276 = vmatprep.subr.mxu0 0.0
    %277 = vmatpush1.xpose.msra.mxu0 0.0
    %278 = vmatprep.subr.mxu0 0.0
    %279 = vmatpush1.xpose.msra.mxu0 0.0
    %280 = vmatprep.subr.mxu0 0.0
    %281 = vmatpush1.xpose.msra.mxu0 0.0
    %282 = vmatprep.subr.mxu0 0.0
    %283 = vmatpush1.xpose.msra.mxu0 0.0
    %284 = vmatprep.subr.mxu0 0.0
    %285 = vmatpush1.xpose.msra.mxu0 0.0
    %286 = vmatprep.subr.mxu0 0.0
    %287 = vmatpush1.xpose.msra.mxu0 0.0
    %288 = vmatprep.subr.mxu0 0.0
    %289 = vmatpush1.xpose.msra.mxu0 0.0
    %290 = vmatprep.subr.mxu0 0.0
    %291 = vmatpush1.xpose.msra.mxu0 0.0
    %292 = vmatprep.subr.mxu0 0.0
    %293 = vmatpush1.xpose.msra.mxu0 0.0
    %294 = vmatprep.subr.mxu0 0.0
    %295 = vmatpush1.xpose.msra.mxu0 0.0
    %296 = vmatprep.subr.mxu0 0.0
    %297 = vmatpush1.xpose.msra.mxu0 0.0
    %298 = vmatprep.subr.mxu0 0.0
    %299 = vmatpush1.xpose.msra.mxu0 0.0
    %300 = vmatprep.subr.mxu0 0.0
    %301 = vmatpush1.xpose.msra.mxu0 0.0
    %302 = vmatprep.subr.mxu0 0.0
    %303 = vmatpush1.xpose.msra.mxu0 0.0
    %304 = vmatprep.mubr.f32.mxu0 0.0
    %305 = vmatmul.mubr.f32.gmra.mrb[0].mxu0 %v238
    %v306 = vpop.f32.mrb[0].mxu0
    %v307 = vadd.f32 1.0, %v306
    %v308 = vpop.f32.mrb[0].mxu0
    %309 = vdwg.mxu0
    %v311 = vsel %vm66, %v90, 0
    %313 = vmatprep.subr.mxu0 0.0
    %314 = vmatpush1.xpose.msra.mxu0 %v311
    %315 = vmatprep.subr.mxu0 0.0
    %316 = vmatpush1.xpose.msra.mxu0 0.0
    %317 = vmatprep.subr.mxu0 0.0
    %318 = vmatpush1.xpose.msra.mxu0 0.0
    %319 = vmatprep.subr.mxu0 0.0
    %320 = vmatpush1.xpose.msra.mxu0 0.0
    %321 = vmatprep.subr.mxu0 0.0
    %322 = vmatpush1.xpose.msra.mxu0 0.0
    %323 = vmatprep.subr.mxu0 0.0
    %324 = vmatpush1.xpose.msra.mxu0 0.0
    %325 = vmatprep.subr.mxu0 0.0
    %326 = vmatpush1.xpose.msra.mxu0 0.0
    %327 = vmatprep.subr.mxu0 0.0
    %328 = vmatpush1.xpose.msra.mxu0 0.0
    %329 = vmatprep.subr.mxu0 0.0
    %330 = vmatpush1.xpose.msra.mxu0 0.0
    %331 = vmatprep.subr.mxu0 0.0
    %332 = vmatpush1.xpose.msra.mxu0 0.0
    %333 = vmatprep.subr.mxu0 0.0
    %334 = vmatpush1.xpose.msra.mxu0 0.0
    %335 = vmatprep.subr.mxu0 0.0
    %336 = vmatpush1.xpose.msra.mxu0 0.0
    %337 = vmatprep.subr.mxu0 0.0
    %338 = vmatpush1.xpose.msra.mxu0 0.0
    %339 = vmatprep.subr.mxu0 0.0
    %340 = vmatpush1.xpose.msra.mxu0 0.0
    %341 = vmatprep.subr.mxu0 0.0
    %342 = vmatpush1.xpose.msra.mxu0 0.0
    %343 = vmatprep.subr.mxu0 0.0
    %344 = vmatpush1.xpose.msra.mxu0 0.0
    %345 = vmatprep.subr.mxu0 0.0
    %346 = vmatpush1.xpose.msra.mxu0 0.0
    %347 = vmatprep.subr.mxu0 0.0
    %348 = vmatpush1.xpose.msra.mxu0 0.0
    %349 = vmatprep.subr.mxu0 0.0
    %350 = vmatpush1.xpose.msra.mxu0 0.0
    %351 = vmatprep.subr.mxu0 0.0
    %352 = vmatpush1.xpose.msra.mxu0 0.0
    %353 = vmatprep.subr.mxu0 0.0
    %354 = vmatpush1.xpose.msra.mxu0 0.0
    %355 = vmatprep.subr.mxu0 0.0
    %356 = vmatpush1.xpose.msra.mxu0 0.0
    %357 = vmatprep.subr.mxu0 0.0
    %358 = vmatpush1.xpose.msra.mxu0 0.0
    %359 = vmatprep.subr.mxu0 0.0
    %360 = vmatpush1.xpose.msra.mxu0 0.0
    %361 = vmatprep.subr.mxu0 0.0
    %362 = vmatpush1.xpose.msra.mxu0 0.0
    %363 = vmatprep.subr.mxu0 0.0
    %364 = vmatpush1.xpose.msra.mxu0 0.0
    %365 = vmatprep.subr.mxu0 0.0
    %366 = vmatpush1.xpose.msra.mxu0 0.0
    %367 = vmatprep.subr.mxu0 0.0
    %368 = vmatpush1.xpose.msra.mxu0 0.0
    %369 = vmatprep.subr.mxu0 0.0
    %370 = vmatpush1.xpose.msra.mxu0 0.0
    %371 = vmatprep.subr.mxu0 0.0
    %372 = vmatpush1.xpose.msra.mxu0 0.0
    %373 = vmatprep.subr.mxu0 0.0
    %374 = vmatpush1.xpose.msra.mxu0 0.0
    %375 = vmatprep.subr.mxu0 0.0
    %376 = vmatpush1.xpose.msra.mxu0 0.0
    %377 = vmatprep.mubr.f32.mxu0 0.0
    %378 = vmatmul.mubr.f32.gmra.mrb[0].mxu0 %v311
    %v379 = vpop.f32.mrb[0].mxu0
    %v380 = vadd.f32 1.0, %v379
    %v381 = vpop.f32.mrb[0].mxu0
    %382 = vdwg.mxu0
    %v383 = vmul.f32 %v161, 0.5
    %v384 = vmul.f32 %v234, 0.5
    %v385 = vmul.f32 %v307, 0.5
    %v386 = vmul.f32 %v380, 0.5
    %vm387 = vcmask 64512
    %v389 = vsel %vm387, %v383, 0
    %391 = vmatprep.subr.mxu0 0.0
    %392 = vmatpush1.msra.mxu0 %v87
    %393 = vmatprep.subr.mxu0 0.0
    %394 = vmatpush1.msra.mxu0 0.0
    %395 = vmatprep.subr.mxu0 0.0
    %396 = vmatpush1.msra.mxu0 0.0
    %397 = vmatprep.subr.mxu0 0.0
    %398 = vmatpush1.msra.mxu0 0.0
    %399 = vmatprep.subr.mxu0 0.0
    %400 = vmatpush1.msra.mxu0 0.0
    %401 = vmatprep.subr.mxu0 0.0
    %402 = vmatpush1.msra.mxu0 0.0
    %403 = vmatprep.subr.mxu0 0.0
    %404 = vmatpush1.msra.mxu0 0.0
    %405 = vmatprep.subr.mxu0 0.0
    %406 = vmatpush1.msra.mxu0 0.0
    %407 = vmatprep.subr.mxu0 0.0
    %408 = vmatpush1.msra.mxu0 0.0
    %409 = vmatprep.subr.mxu0 0.0
    %410 = vmatpush1.msra.mxu0 0.0
    %411 = vmatprep.subr.mxu0 0.0
    %412 = vmatpush1.msra.mxu0 0.0
    %413 = vmatprep.subr.mxu0 0.0
    %414 = vmatpush1.msra.mxu0 0.0
    %415 = vmatprep.subr.mxu0 0.0
    %416 = vmatpush1.msra.mxu0 0.0
    %417 = vmatprep.subr.mxu0 0.0
    %418 = vmatpush1.msra.mxu0 0.0
    %419 = vmatprep.subr.mxu0 0.0
    %420 = vmatpush1.msra.mxu0 0.0
    %421 = vmatprep.subr.mxu0 0.0
    %422 = vmatpush1.msra.mxu0 0.0
    %423 = vmatprep.subr.mxu0 0.0
    %424 = vmatpush1.msra.mxu0 0.0
    %425 = vmatprep.subr.mxu0 0.0
    %426 = vmatpush1.msra.mxu0 0.0
    %427 = vmatprep.subr.mxu0 0.0
    %428 = vmatpush1.msra.mxu0 0.0
    %429 = vmatprep.subr.mxu0 0.0
    %430 = vmatpush1.msra.mxu0 0.0
    %431 = vmatprep.subr.mxu0 0.0
    %432 = vmatpush1.msra.mxu0 0.0
    %433 = vmatprep.subr.mxu0 0.0
    %434 = vmatpush1.msra.mxu0 0.0
    %435 = vmatprep.subr.mxu0 0.0
    %436 = vmatpush1.msra.mxu0 0.0
    %437 = vmatprep.subr.mxu0 0.0
    %438 = vmatpush1.msra.mxu0 0.0
    %439 = vmatprep.subr.mxu0 0.0
    %440 = vmatpush1.msra.mxu0 0.0
    %441 = vmatprep.subr.mxu0 0.0
    %442 = vmatpush1.msra.mxu0 0.0
    %443 = vmatprep.subr.mxu0 0.0
    %444 = vmatpush1.msra.mxu0 0.0
    %445 = vmatprep.subr.mxu0 0.0
    %446 = vmatpush1.msra.mxu0 0.0
    %447 = vmatprep.subr.mxu0 0.0
    %448 = vmatpush1.msra.mxu0 0.0
    %449 = vmatprep.subr.mxu0 0.0
    %450 = vmatpush1.msra.mxu0 0.0
    %451 = vmatprep.subr.mxu0 0.0
    %452 = vmatpush1.msra.mxu0 0.0
    %453 = vmatprep.subr.mxu0 0.0
    %454 = vmatpush1.msra.mxu0 0.0
    %455 = vmatprep.mubr.f32.mxu0 0.0
    %456 = vmatmul.mubr.f32.gmra.mrb[0].mxu0 %v389
    %v457 = vpop.f32.mrb[0].mxu0
    %v458 = vadd.f32 0.0, %v457
    %v459 = vpop.f32.mrb[0].mxu0
    %460 = vdwg.mxu0
    %v462 = vsel %vm387, %v384, 0
    %464 = vmatprep.subr.mxu0 0.0
    %465 = vmatpush1.msra.mxu0 %v88
    %466 = vmatprep.subr.mxu0 0.0
    %467 = vmatpush1.msra.mxu0 0.0
    %468 = vmatprep.subr.mxu0 0.0
    %469 = vmatpush1.msra.mxu0 0.0
    %470 = vmatprep.subr.mxu0 0.0
    %471 = vmatpush1.msra.mxu0 0.0
    %472 = vmatprep.subr.mxu0 0.0
    %473 = vmatpush1.msra.mxu0 0.0
    %474 = vmatprep.subr.mxu0 0.0
    %475 = vmatpush1.msra.mxu0 0.0
    %476 = vmatprep.subr.mxu0 0.0
    %477 = vmatpush1.msra.mxu0 0.0
    %478 = vmatprep.subr.mxu0 0.0
    %479 = vmatpush1.msra.mxu0 0.0
    %480 = vmatprep.subr.mxu0 0.0
    %481 = vmatpush1.msra.mxu0 0.0
    %482 = vmatprep.subr.mxu0 0.0
    %483 = vmatpush1.msra.mxu0 0.0
    %484 = vmatprep.subr.mxu0 0.0
    %485 = vmatpush1.msra.mxu0 0.0
    %486 = vmatprep.subr.mxu0 0.0
    %487 = vmatpush1.msra.mxu0 0.0
    %488 = vmatprep.subr.mxu0 0.0
    %489 = vmatpush1.msra.mxu0 0.0
    %490 = vmatprep.subr.mxu0 0.0
    %491 = vmatpush1.msra.mxu0 0.0
    %492 = vmatprep.subr.mxu0 0.0
    %493 = vmatpush1.msra.mxu0 0.0
    %494 = vmatprep.subr.mxu0 0.0
    %495 = vmatpush1.msra.mxu0 0.0
    %496 = vmatprep.subr.mxu0 0.0
    %497 = vmatpush1.msra.mxu0 0.0
    %498 = vmatprep.subr.mxu0 0.0
    %499 = vmatpush1.msra.mxu0 0.0
    %500 = vmatprep.subr.mxu0 0.0
    %501 = vmatpush1.msra.mxu0 0.0
    %502 = vmatprep.subr.mxu0 0.0
    %503 = vmatpush1.msra.mxu0 0.0
    %504 = vmatprep.subr.mxu0 0.0
    %505 = vmatpush1.msra.mxu0 0.0
    %506 = vmatprep.subr.mxu0 0.0
    %507 = vmatpush1.msra.mxu0 0.0
    %508 = vmatprep.subr.mxu0 0.0
    %509 = vmatpush1.msra.mxu0 0.0
    %510 = vmatprep.subr.mxu0 0.0
    %511 = vmatpush1.msra.mxu0 0.0
    %512 = vmatprep.subr.mxu0 0.0
    %513 = vmatpush1.msra.mxu0 0.0
    %514 = vmatprep.subr.mxu0 0.0
    %515 = vmatpush1.msra.mxu0 0.0
    %516 = vmatprep.subr.mxu0 0.0
    %517 = vmatpush1.msra.mxu0 0.0
    %518 = vmatprep.subr.mxu0 0.0
    %519 = vmatpush1.msra.mxu0 0.0
    %520 = vmatprep.subr.mxu0 0.0
    %521 = vmatpush1.msra.mxu0 0.0
    %522 = vmatprep.subr.mxu0 0.0
    %523 = vmatpush1.msra.mxu0 0.0
    %524 = vmatprep.subr.mxu0 0.0
    %525 = vmatpush1.msra.mxu0 0.0
    %526 = vmatprep.subr.mxu0 0.0
    %527 = vmatpush1.msra.mxu0 0.0
    %528 = vmatprep.mubr.f32.mxu0 0.0
    %529 = vmatmul.mubr.f32.gmra.mrb[0].mxu0 %v462
    %v530 = vpop.f32.mrb[0].mxu0
    %v531 = vadd.f32 0.0, %v530
    %v532 = vpop.f32.mrb[0].mxu0
    %533 = vdwg.mxu0
    %v535 = vsel %vm387, %v385, 0
    %537 = vmatprep.subr.mxu0 0.0
    %538 = vmatpush1.msra.mxu0 %v89
    %539 = vmatprep.subr.mxu0 0.0
    %540 = vmatpush1.msra.mxu0 0.0
    %541 = vmatprep.subr.mxu0 0.0
    %542 = vmatpush1.msra.mxu0 0.0
    %543 = vmatprep.subr.mxu0 0.0
    %544 = vmatpush1.msra.mxu0 0.0
    %545 = vmatprep.subr.mxu0 0.0
    %546 = vmatpush1.msra.mxu0 0.0
    %547 = vmatprep.subr.mxu0 0.0
    %548 = vmatpush1.msra.mxu0 0.0
    %549 = vmatprep.subr.mxu0 0.0
    %550 = vmatpush1.msra.mxu0 0.0
    %551 = vmatprep.subr.mxu0 0.0
    %552 = vmatpush1.msra.mxu0 0.0
    %553 = vmatprep.subr.mxu0 0.0
    %554 = vmatpush1.msra.mxu0 0.0
    %555 = vmatprep.subr.mxu0 0.0
    %556 = vmatpush1.msra.mxu0 0.0
    %557 = vmatprep.subr.mxu0 0.0
    %558 = vmatpush1.msra.mxu0 0.0
    %559 = vmatprep.subr.mxu0 0.0
    %560 = vmatpush1.msra.mxu0 0.0
    %561 = vmatprep.subr.mxu0 0.0
    %562 = vmatpush1.msra.mxu0 0.0
    %563 = vmatprep.subr.mxu0 0.0
    %564 = vmatpush1.msra.mxu0 0.0
    %565 = vmatprep.subr.mxu0 0.0
    %566 = vmatpush1.msra.mxu0 0.0
    %567 = vmatprep.subr.mxu0 0.0
    %568 = vmatpush1.msra.mxu0 0.0
    %569 = vmatprep.subr.mxu0 0.0
    %570 = vmatpush1.msra.mxu0 0.0
    %571 = vmatprep.subr.mxu0 0.0
    %572 = vmatpush1.msra.mxu0 0.0
    %573 = vmatprep.subr.mxu0 0.0
    %574 = vmatpush1.msra.mxu0 0.0
    %575 = vmatprep.subr.mxu0 0.0
    %576 = vmatpush1.msra.mxu0 0.0
    %577 = vmatprep.subr.mxu0 0.0
    %578 = vmatpush1.msra.mxu0 0.0
    %579 = vmatprep.subr.mxu0 0.0
    %580 = vmatpush1.msra.mxu0 0.0
    %581 = vmatprep.subr.mxu0 0.0
    %582 = vmatpush1.msra.mxu0 0.0
    %583 = vmatprep.subr.mxu0 0.0
    %584 = vmatpush1.msra.mxu0 0.0
    %585 = vmatprep.subr.mxu0 0.0
    %586 = vmatpush1.msra.mxu0 0.0
    %587 = vmatprep.subr.mxu0 0.0
    %588 = vmatpush1.msra.mxu0 0.0
    %589 = vmatprep.subr.mxu0 0.0
    %590 = vmatpush1.msra.mxu0 0.0
    %591 = vmatprep.subr.mxu0 0.0
    %592 = vmatpush1.msra.mxu0 0.0
    %593 = vmatprep.subr.mxu0 0.0
    %594 = vmatpush1.msra.mxu0 0.0
    %595 = vmatprep.subr.mxu0 0.0
    %596 = vmatpush1.msra.mxu0 0.0
    %597 = vmatprep.subr.mxu0 0.0
    %598 = vmatpush1.msra.mxu0 0.0
    %599 = vmatprep.subr.mxu0 0.0
    %600 = vmatpush1.msra.mxu0 0.0
    %601 = vmatprep.mubr.f32.mxu0 0.0
    %602 = vmatmul.mubr.f32.gmra.mrb[0].mxu0 %v535
    %v603 = vpop.f32.mrb[0].mxu0
    %v604 = vadd.f32 0.0, %v603
    %v605 = vpop.f32.mrb[0].mxu0
    %606 = vdwg.mxu0
    %v608 = vsel %vm387, %v386, 0
    %610 = vmatprep.subr.mxu0 0.0
    %611 = vmatpush1.msra.mxu0 %v90
    %612 = vmatprep.subr.mxu0 0.0
    %613 = vmatpush1.msra.mxu0 0.0
    %614 = vmatprep.subr.mxu0 0.0
    %615 = vmatpush1.msra.mxu0 0.0
    %616 = vmatprep.subr.mxu0 0.0
    %617 = vmatpush1.msra.mxu0 0.0
    %618 = vmatprep.subr.mxu0 0.0
    %619 = vmatpush1.msra.mxu0 0.0
    %620 = vmatprep.subr.mxu0 0.0
    %621 = vmatpush1.msra.mxu0 0.0
    %622 = vmatprep.subr.mxu0 0.0
    %623 = vmatpush1.msra.mxu0 0.0
    %624 = vmatprep.subr.mxu0 0.0
    %625 = vmatpush1.msra.mxu0 0.0
    %626 = vmatprep.subr.mxu0 0.0
    %627 = vmatpush1.msra.mxu0 0.0
    %628 = vmatprep.subr.mxu0 0.0
    %629 = vmatpush1.msra.mxu0 0.0
    %630 = vmatprep.subr.mxu0 0.0
    %631 = vmatpush1.msra.mxu0 0.0
    %632 = vmatprep.subr.mxu0 0.0
    %633 = vmatpush1.msra.mxu0 0.0
    %634 = vmatprep.subr.mxu0 0.0
    %635 = vmatpush1.msra.mxu0 0.0
    %636 = vmatprep.subr.mxu0 0.0
    %637 = vmatpush1.msra.mxu0 0.0
    %638 = vmatprep.subr.mxu0 0.0
    %639 = vmatpush1.msra.mxu0 0.0
    %640 = vmatprep.subr.mxu0 0.0
    %641 = vmatpush1.msra.mxu0 0.0
    %642 = vmatprep.subr.mxu0 0.0
    %643 = vmatpush1.msra.mxu0 0.0
    %644 = vmatprep.subr.mxu0 0.0
    %645 = vmatpush1.msra.mxu0 0.0
    %646 = vmatprep.subr.mxu0 0.0
    %647 = vmatpush1.msra.mxu0 0.0
    %648 = vmatprep.subr.mxu0 0.0
    %649 = vmatpush1.msra.mxu0 0.0
    %650 = vmatprep.subr.mxu0 0.0
    %651 = vmatpush1.msra.mxu0 0.0
    %652 = vmatprep.subr.mxu0 0.0
    %653 = vmatpush1.msra.mxu0 0.0
    %654 = vmatprep.subr.mxu0 0.0
    %655 = vmatpush1.msra.mxu0 0.0
    %656 = vmatprep.subr.mxu0 0.0
    %657 = vmatpush1.msra.mxu0 0.0
    %658 = vmatprep.subr.mxu0 0.0
    %659 = vmatpush1.msra.mxu0 0.0
    %660 = vmatprep.subr.mxu0 0.0
    %661 = vmatpush1.msra.mxu0 0.0
    %662 = vmatprep.subr.mxu0 0.0
    %663 = vmatpush1.msra.mxu0 0.0
    %664 = vmatprep.subr.mxu0 0.0
    %665 = vmatpush1.msra.mxu0 0.0
    %666 = vmatprep.subr.mxu0 0.0
    %667 = vmatpush1.msra.mxu0 0.0
    %668 = vmatprep.subr.mxu0 0.0
    %669 = vmatpush1.msra.mxu0 0.0
    %670 = vmatprep.subr.mxu0 0.0
    %671 = vmatpush1.msra.mxu0 0.0
    %672 = vmatprep.subr.mxu0 0.0
    %673 = vmatpush1.msra.mxu0 0.0
    %674 = vmatprep.mubr.f32.mxu0 0.0
    %675 = vmatmul.mubr.f32.gmra.mrb[0].mxu0 %v608
    %v676 = vpop.f32.mrb[0].mxu0
    %v677 = vadd.f32 0.0, %v676
    %v678 = vpop.f32.mrb[0].mxu0
    %679 = vdwg.mxu0
    %v680 = vld [vmem:[#allocation7] sm:$0xff]
    %v681 = vld [vmem:[#allocation7 + $0x58] sm:$0xff]
    %v682 = vld [vmem:[#allocation7 + $0xb0] sm:$0xff]
    %v683 = vld [vmem:[#allocation7 + $0x108] sm:$0xff]
    %v685 = vsel %vm66, %v458, 0
    %v688 = vsel %vm66, %v531, 0
    %v691 = vsel %vm66, %v604, 0
    %v694 = vsel %vm66, %v677, 0
    %696 = vmatprep.subr.mxu0 0.0
    %697 = vmatpush1.msra.mxu0 %v680
    %698 = vmatprep.subr.mxu0 0.0
    %699 = vmatpush1.msra.mxu0 %v681
    %700 = vmatprep.subr.mxu0 0.0
    %701 = vmatpush1.msra.mxu0 %v682
    %702 = vmatprep.subr.mxu0 0.0
    %703 = vmatpush1.msra.mxu0 %v683
    %704 = vmatprep.subr.mxu0 0.0
    %705 = vmatpush1.msra.mxu0 0.0
    %706 = vmatprep.subr.mxu0 0.0
    %707 = vmatpush1.msra.mxu0 0.0
    %708 = vmatprep.subr.mxu0 0.0
    %709 = vmatpush1.msra.mxu0 0.0
    %710 = vmatprep.subr.mxu0 0.0
    %711 = vmatpush1.msra.mxu0 0.0
    %712 = vmatprep.subr.mxu0 0.0
    %713 = vmatpush1.msra.mxu0 0.0
    %714 = vmatprep.subr.mxu0 0.0
    %715 = vmatpush1.msra.mxu0 0.0
    %716 = vmatprep.subr.mxu0 0.0
    %717 = vmatpush1.msra.mxu0 0.0
    %718 = vmatprep.subr.mxu0 0.0
    %719 = vmatpush1.msra.mxu0 0.0
    %720 = vmatprep.subr.mxu0 0.0
    %721 = vmatpush1.msra.mxu0 0.0
    %722 = vmatprep.subr.mxu0 0.0
    %723 = vmatpush1.msra.mxu0 0.0
    %724 = vmatprep.subr.mxu0 0.0
    %725 = vmatpush1.msra.mxu0 0.0
    %726 = vmatprep.subr.mxu0 0.0
    %727 = vmatpush1.msra.mxu0 0.0
    %728 = vmatprep.subr.mxu0 0.0
    %729 = vmatpush1.msra.mxu0 0.0
    %730 = vmatprep.subr.mxu0 0.0
    %731 = vmatpush1.msra.mxu0 0.0
    %732 = vmatprep.subr.mxu0 0.0
    %733 = vmatpush1.msra.mxu0 0.0
    %734 = vmatprep.subr.mxu0 0.0
    %735 = vmatpush1.msra.mxu0 0.0
    %736 = vmatprep.subr.mxu0 0.0
    %737 = vmatpush1.msra.mxu0 0.0
    %738 = vmatprep.subr.mxu0 0.0
    %739 = vmatpush1.msra.mxu0 0.0
    %740 = vmatprep.subr.mxu0 0.0
    %741 = vmatpush1.msra.mxu0 0.0
    %742 = vmatprep.subr.mxu0 0.0
    %743 = vmatpush1.msra.mxu0 0.0
    %744 = vmatprep.subr.mxu0 0.0
    %745 = vmatpush1.msra.mxu0 0.0
    %746 = vmatprep.subr.mxu0 0.0
    %747 = vmatpush1.msra.mxu0 0.0
    %748 = vmatprep.subr.mxu0 0.0
    %749 = vmatpush1.msra.mxu0 0.0
    %750 = vmatprep.subr.mxu0 0.0
    %751 = vmatpush1.msra.mxu0 0.0
    %752 = vmatprep.subr.mxu0 0.0
    %753 = vmatpush1.msra.mxu0 0.0
    %754 = vmatprep.subr.mxu0 0.0
    %755 = vmatpush1.msra.mxu0 0.0
    %756 = vmatprep.subr.mxu0 0.0
    %757 = vmatpush1.msra.mxu0 0.0
    %758 = vmatprep.subr.mxu0 0.0
    %759 = vmatpush1.msra.mxu0 0.0
    %760 = vmatprep.mubr.f32.mxu0 0.0
    %761 = vmatmul.mubr.f32.gmra.mrb[0].mxu0 %v685
    %v762 = vpop.f32.mrb[0].mxu0
    %v763 = vadd.f32 0.0, %v762
    %v764 = vpop.f32.mrb[0].mxu0
    %765 = vmatprep.mubr.f32.mxu0 0.0
    %766 = vmatmul.mubr.f32.gmra.mrb[0].mxu0 %v688
    %v767 = vpop.f32.mrb[0].mxu0
    %v768 = vadd.f32 0.0, %v767
    %v769 = vpop.f32.mrb[0].mxu0
    %770 = vmatprep.mubr.f32.mxu0 0.0
    %771 = vmatmul.mubr.f32.gmra.mrb[0].mxu0 %v691
    %v772 = vpop.f32.mrb[0].mxu0
    %v773 = vadd.f32 0.0, %v772
    %v774 = vpop.f32.mrb[0].mxu0
    %775 = vmatprep.mubr.f32.mxu0 0.0
    %776 = vmatmul.mubr.f32.gmra.mrb[0].mxu0 %v694
    %v777 = vpop.f32.mrb[0].mxu0
    %v778 = vadd.f32 0.0, %v777
    %v779 = vpop.f32.mrb[0].mxu0
    %780 = vdwg.mxu0
    %v781 = vmax.f32 %v763, 0.0
    %v782 = vmax.f32 %v768, 0.0
    %v783 = vmax.f32 %v773, 0.0
    %v784 = vmax.f32 %v778, 0.0
    %785 = vmatprep.subr.mxu0 0.0
    %786 = vmatpush1.msra.mxu0 %v781
    %787 = vmatprep.subr.mxu0 0.0
    %788 = vmatpush1.msra.mxu0 0.0
    %789 = vmatprep.subr.mxu0 0.0
    %790 = vmatpush1.msra.mxu0 0.0
    %791 = vmatprep.subr.mxu0 0.0
    %792 = vmatpush1.msra.mxu0 0.0
    %793 = vmatprep.subr.mxu0 0.0
    %794 = vmatpush1.msra.mxu0 0.0
    %795 = vmatprep.subr.mxu0 0.0
    %796 = vmatpush1.msra.mxu0 0.0
    %797 = vmatprep.subr.mxu0 0.0
    %798 = vmatpush1.msra.mxu0 0.0
    %799 = vmatprep.subr.mxu0 0.0
    %800 = vmatpush1.msra.mxu0 0.0
    %801 = vmatprep.subr.mxu0 0.0
    %802 = vmatpush1.msra.mxu0 0.0
    %803 = vmatprep.subr.mxu0 0.0
    %804 = vmatpush1.msra.mxu0 0.0
    %805 = vmatprep.subr.mxu0 0.0
    %806 = vmatpush1.msra.mxu0 0.0
    %807 = vmatprep.subr.mxu0 0.0
    %808 = vmatpush1.msra.mxu0 0.0
    %809 = vmatprep.subr.mxu0 0.0
    %810 = vmatpush1.msra.mxu0 0.0
    %811 = vmatprep.subr.mxu0 0.0
    %812 = vmatpush1.msra.mxu0 0.0
    %813 = vmatprep.subr.mxu0 0.0
    %814 = vmatpush1.msra.mxu0 0.0
    %815 = vmatprep.subr.mxu0 0.0
    %816 = vmatpush1.msra.mxu0 0.0
    %817 = vmatprep.subr.mxu0 0.0
    %818 = vmatpush1.msra.mxu0 0.0
    %819 = vmatprep.subr.mxu0 0.0
    %820 = vmatpush1.msra.mxu0 0.0
    %821 = vmatprep.subr.mxu0 0.0
    %822 = vmatpush1.msra.mxu0 0.0
    %823 = vmatprep.subr.mxu0 0.0
    %824 = vmatpush1.msra.mxu0 0.0
    %825 = vmatprep.subr.mxu0 0.0
    %826 = vmatpush1.msra.mxu0 0.0
    %827 = vmatprep.subr.mxu0 0.0
    %828 = vmatpush1.msra.mxu0 0.0
    %829 = vmatprep.subr.mxu0 0.0
    %830 = vmatpush1.msra.mxu0 0.0
    %831 = vmatprep.subr.mxu0 0.0
    %832 = vmatpush1.msra.mxu0 0.0
    %833 = vmatprep.subr.mxu0 0.0
    %834 = vmatpush1.msra.mxu0 0.0
    %835 = vmatprep.subr.mxu0 0.0
    %836 = vmatpush1.msra.mxu0 0.0
    %837 = vmatprep.subr.mxu0 0.0
    %838 = vmatpush1.msra.mxu0 0.0
    %839 = vmatprep.subr.mxu0 0.0
    %840 = vmatpush1.msra.mxu0 0.0
    %841 = vmatprep.subr.mxu0 0.0
    %842 = vmatpush1.msra.mxu0 0.0
    %843 = vmatprep.subr.mxu0 0.0
    %844 = vmatpush1.msra.mxu0 0.0
    %845 = vmatprep.subr.mxu0 0.0
    %846 = vmatpush1.msra.mxu0 0.0
    %847 = vmatprep.subr.mxu0 0.0
    %848 = vmatpush1.msra.mxu0 0.0
    %849 = vmatprep.mubr.f32.mxu0 0.0
    %850 = vmatmul.mubr.f32.gmra.mrb[0].mxu0 %v389
    %v851 = vpop.f32.mrb[0].mxu0
    %v852 = vadd.f32 0.0, %v851
    %v853 = vpop.f32.mrb[0].mxu0
    %854 = vdwg.mxu0
    %855 = vmatprep.subr.mxu0 0.0
    %856 = vmatpush1.msra.mxu0 %v782
    %857 = vmatprep.subr.mxu0 0.0
    %858 = vmatpush1.msra.mxu0 0.0
    %859 = vmatprep.subr.mxu0 0.0
    %860 = vmatpush1.msra.mxu0 0.0
    %861 = vmatprep.subr.mxu0 0.0
    %862 = vmatpush1.msra.mxu0 0.0
    %863 = vmatprep.subr.mxu0 0.0
    %864 = vmatpush1.msra.mxu0 0.0
    %865 = vmatprep.subr.mxu0 0.0
    %866 = vmatpush1.msra.mxu0 0.0
    %867 = vmatprep.subr.mxu0 0.0
    %868 = vmatpush1.msra.mxu0 0.0
    %869 = vmatprep.subr.mxu0 0.0
    %870 = vmatpush1.msra.mxu0 0.0
    %871 = vmatprep.subr.mxu0 0.0
    %872 = vmatpush1.msra.mxu0 0.0
    %873 = vmatprep.subr.mxu0 0.0
    %874 = vmatpush1.msra.mxu0 0.0
    %875 = vmatprep.subr.mxu0 0.0
    %876 = vmatpush1.msra.mxu0 0.0
    %877 = vmatprep.subr.mxu0 0.0
    %878 = vmatpush1.msra.mxu0 0.0
    %879 = vmatprep.subr.mxu0 0.0
    %880 = vmatpush1.msra.mxu0 0.0
    %881 = vmatprep.subr.mxu0 0.0
    %882 = vmatpush1.msra.mxu0 0.0
    %883 = vmatprep.subr.mxu0 0.0
    %884 = vmatpush1.msra.mxu0 0.0
    %885 = vmatprep.subr.mxu0 0.0
    %886 = vmatpush1.msra.mxu0 0.0
    %887 = vmatprep.subr.mxu0 0.0
    %888 = vmatpush1.msra.mxu0 0.0
    %889 = vmatprep.subr.mxu0 0.0
    %890 = vmatpush1.msra.mxu0 0.0
    %891 = vmatprep.subr.mxu0 0.0
    %892 = vmatpush1.msra.mxu0 0.0
    %893 = vmatprep.subr.mxu0 0.0
    %894 = vmatpush1.msra.mxu0 0.0
    %895 = vmatprep.subr.mxu0 0.0
    %896 = vmatpush1.msra.mxu0 0.0
    %897 = vmatprep.subr.mxu0 0.0
    %898 = vmatpush1.msra.mxu0 0.0
    %899 = vmatprep.subr.mxu0 0.0
    %900 = vmatpush1.msra.mxu0 0.0
    %901 = vmatprep.subr.mxu0 0.0
    %902 = vmatpush1.msra.mxu0 0.0
    %903 = vmatprep.subr.mxu0 0.0
    %904 = vmatpush1.msra.mxu0 0.0
    %905 = vmatprep.subr.mxu0 0.0
    %906 = vmatpush1.msra.mxu0 0.0
    %907 = vmatprep.subr.mxu0 0.0
    %908 = vmatpush1.msra.mxu0 0.0
    %909 = vmatprep.subr.mxu0 0.0
    %910 = vmatpush1.msra.mxu0 0.0
    %911 = vmatprep.subr.mxu0 0.0
    %912 = vmatpush1.msra.mxu0 0.0
    %913 = vmatprep.subr.mxu0 0.0
    %914 = vmatpush1.msra.mxu0 0.0
    %915 = vmatprep.subr.mxu0 0.0
    %916 = vmatpush1.msra.mxu0 0.0
    %917 = vmatprep.subr.mxu0 0.0
    %918 = vmatpush1.msra.mxu0 0.0
    %919 = vmatprep.mubr.f32.mxu0 0.0
    %920 = vmatmul.mubr.f32.gmra.mrb[0].mxu0 %v462
    %v921 = vpop.f32.mrb[0].mxu0
    %v922 = vadd.f32 0.0, %v921
    %v923 = vpop.f32.mrb[0].mxu0
    %924 = vdwg.mxu0
    %925 = vmatprep.subr.mxu0 0.0
    %926 = vmatpush1.msra.mxu0 %v783
    %927 = vmatprep.subr.mxu0 0.0
    %928 = vmatpush1.msra.mxu0 0.0
    %929 = vmatprep.subr.mxu0 0.0
    %930 = vmatpush1.msra.mxu0 0.0
    %931 = vmatprep.subr.mxu0 0.0
    %932 = vmatpush1.msra.mxu0 0.0
    %933 = vmatprep.subr.mxu0 0.0
    %934 = vmatpush1.msra.mxu0 0.0
    %935 = vmatprep.subr.mxu0 0.0
    %936 = vmatpush1.msra.mxu0 0.0
    %937 = vmatprep.subr.mxu0 0.0
    %938 = vmatpush1.msra.mxu0 0.0
    %939 = vmatprep.subr.mxu0 0.0
    %940 = vmatpush1.msra.mxu0 0.0
    %941 = vmatprep.subr.mxu0 0.0
    %942 = vmatpush1.msra.mxu0 0.0
    %943 = vmatprep.subr.mxu0 0.0
    %944 = vmatpush1.msra.mxu0 0.0
    %945 = vmatprep.subr.mxu0 0.0
    %946 = vmatpush1.msra.mxu0 0.0
    %947 = vmatprep.subr.mxu0 0.0
    %948 = vmatpush1.msra.mxu0 0.0
    %949 = vmatprep.subr.mxu0 0.0
    %950 = vmatpush1.msra.mxu0 0.0
    %951 = vmatprep.subr.mxu0 0.0
    %952 = vmatpush1.msra.mxu0 0.0
    %953 = vmatprep.subr.mxu0 0.0
    %954 = vmatpush1.msra.mxu0 0.0
    %955 = vmatprep.subr.mxu0 0.0
    %956 = vmatpush1.msra.mxu0 0.0
    %957 = vmatprep.subr.mxu0 0.0
    %958 = vmatpush1.msra.mxu0 0.0
    %959 = vmatprep.subr.mxu0 0.0
    %960 = vmatpush1.msra.mxu0 0.0
    %961 = vmatprep.subr.mxu0 0.0
    %962 = vmatpush1.msra.mxu0 0.0
    %963 = vmatprep.subr.mxu0 0.0
    %964 = vmatpush1.msra.mxu0 0.0
    %965 = vmatprep.subr.mxu0 0.0
    %966 = vmatpush1.msra.mxu0 0.0
    %967 = vmatprep.subr.mxu0 0.0
    %968 = vmatpush1.msra.mxu0 0.0
    %969 = vmatprep.subr.mxu0 0.0
    %970 = vmatpush1.msra.mxu0 0.0
    %971 = vmatprep.subr.mxu0 0.0
    %972 = vmatpush1.msra.mxu0 0.0
    %973 = vmatprep.subr.mxu0 0.0
    %974 = vmatpush1.msra.mxu0 0.0
    %975 = vmatprep.subr.mxu0 0.0
    %976 = vmatpush1.msra.mxu0 0.0
    %977 = vmatprep.subr.mxu0 0.0
    %978 = vmatpush1.msra.mxu0 0.0
    %979 = vmatprep.subr.mxu0 0.0
    %980 = vmatpush1.msra.mxu0 0.0
    %981 = vmatprep.subr.mxu0 0.0
    %982 = vmatpush1.msra.mxu0 0.0
    %983 = vmatprep.subr.mxu0 0.0
    %984 = vmatpush1.msra.mxu0 0.0
    %985 = vmatprep.subr.mxu0 0.0
    %986 = vmatpush1.msra.mxu0 0.0
    %987 = vmatprep.subr.mxu0 0.0
    %988 = vmatpush1.msra.mxu0 0.0
    %989 = vmatprep.mubr.f32.mxu0 0.0
    %990 = vmatmul.mubr.f32.gmra.mrb[0].mxu0 %v535
    %v991 = vpop.f32.mrb[0].mxu0
    %v992 = vadd.f32 0.0, %v991
    %v993 = vpop.f32.mrb[0].mxu0
    %994 = vdwg.mxu0
    %995 = vmatprep.subr.mxu0 0.0
    %996 = vmatpush1.msra.mxu0 %v784
    %997 = vmatprep.subr.mxu0 0.0
    %998 = vmatpush1.msra.mxu0 0.0
    %999 = vmatprep.subr.mxu0 0.0
    %1000 = vmatpush1.msra.mxu0 0.0
    %1001 = vmatprep.subr.mxu0 0.0
    %1002 = vmatpush1.msra.mxu0 0.0
    %1003 = vmatprep.subr.mxu0 0.0
    %1004 = vmatpush1.msra.mxu0 0.0
    %1005 = vmatprep.subr.mxu0 0.0
    %1006 = vmatpush1.msra.mxu0 0.0
    %1007 = vmatprep.subr.mxu0 0.0
    %1008 = vmatpush1.msra.mxu0 0.0
    %1009 = vmatprep.subr.mxu0 0.0
    %1010 = vmatpush1.msra.mxu0 0.0
    %1011 = vmatprep.subr.mxu0 0.0
    %1012 = vmatpush1.msra.mxu0 0.0
    %1013 = vmatprep.subr.mxu0 0.0
    %1014 = vmatpush1.msra.mxu0 0.0
    %1015 = vmatprep.subr.mxu0 0.0
    %1016 = vmatpush1.msra.mxu0 0.0
    %1017 = vmatprep.subr.mxu0 0.0
    %1018 = vmatpush1.msra.mxu0 0.0
    %1019 = vmatprep.subr.mxu0 0.0
    %1020 = vmatpush1.msra.mxu0 0.0
    %1021 = vmatprep.subr.mxu0 0.0
    %1022 = vmatpush1.msra.mxu0 0.0
    %1023 = vmatprep.subr.mxu0 0.0
    %1024 = vmatpush1.msra.mxu0 0.0
    %1025 = vmatprep.subr.mxu0 0.0
    %1026 = vmatpush1.msra.mxu0 0.0
    %1027 = vmatprep.subr.mxu0 0.0
    %1028 = vmatpush1.msra.mxu0 0.0
    %1029 = vmatprep.subr.mxu0 0.0
    %1030 = vmatpush1.msra.mxu0 0.0
    %1031 = vmatprep.subr.mxu0 0.0
    %1032 = vmatpush1.msra.mxu0 0.0
    %1033 = vmatprep.subr.mxu0 0.0
    %1034 = vmatpush1.msra.mxu0 0.0
    %1035 = vmatprep.subr.mxu0 0.0
    %1036 = vmatpush1.msra.mxu0 0.0
    %1037 = vmatprep.subr.mxu0 0.0
    %1038 = vmatpush1.msra.mxu0 0.0
    %1039 = vmatprep.subr.mxu0 0.0
    %1040 = vmatpush1.msra.mxu0 0.0
    %1041 = vmatprep.subr.mxu0 0.0
    %1042 = vmatpush1.msra.mxu0 0.0
    %1043 = vmatprep.subr.mxu0 0.0
    %1044 = vmatpush1.msra.mxu0 0.0
    %1045 = vmatprep.subr.mxu0 0.0
    %1046 = vmatpush1.msra.mxu0 0.0
    %1047 = vmatprep.subr.mxu0 0.0
    %1048 = vmatpush1.msra.mxu0 0.0
    %1049 = vmatprep.subr.mxu0 0.0
    %1050 = vmatpush1.msra.mxu0 0.0
    %1051 = vmatprep.subr.mxu0 0.0
    %1052 = vmatpush1.msra.mxu0 0.0
    %1053 = vmatprep.subr.mxu0 0.0
    %1054 = vmatpush1.msra.mxu0 0.0
    %1055 = vmatprep.subr.mxu0 0.0
    %1056 = vmatpush1.msra.mxu0 0.0
    %1057 = vmatprep.subr.mxu0 0.0
    %1058 = vmatpush1.msra.mxu0 0.0
    %1059 = vmatprep.mubr.f32.mxu0 0.0
    %1060 = vmatmul.mubr.f32.gmra.mrb[0].mxu0 %v608
    %v1061 = vpop.f32.mrb[0].mxu0
    %v1062 = vadd.f32 0.0, %v1061
    %v1063 = vpop.f32.mrb[0].mxu0
    %1064 = vdwg.mxu0
    %v1065 = vld [vmem:[#allocation7 + $0x8] sm:$0xff]
    %v1066 = vld [vmem:[#allocation7 + $0x60] sm:$0xff]
    %v1067 = vld [vmem:[#allocation7 + $0xb8] sm:$0xff]
    %v1068 = vld [vmem:[#allocation7 + $0x110] sm:$0xff]
    %v1070 = vsel %vm66, %v852, 0
    %v1073 = vsel %vm66, %v922, 0
    %v1076 = vsel %vm66, %v992, 0
    %v1079 = vsel %vm66, %v1062, 0
    %1081 = vmatprep.subr.mxu0 0.0
    %1082 = vmatpush1.msra.mxu0 %v1065
    %1083 = vmatprep.subr.mxu0 0.0
    %1084 = vmatpush1.msra.mxu0 %v1066
    %1085 = vmatprep.subr.mxu0 0.0
    %1086 = vmatpush1.msra.mxu0 %v1067
    %1087 = vmatprep.subr.mxu0 0.0
    %1088 = vmatpush1.msra.mxu0 %v1068
    %1089 = vmatprep.subr.mxu0 0.0
    %1090 = vmatpush1.msra.mxu0 0.0
    %1091 = vmatprep.subr.mxu0 0.0
    %1092 = vmatpush1.msra.mxu0 0.0
    %1093 = vmatprep.subr.mxu0 0.0
    %1094 = vmatpush1.msra.mxu0 0.0
    %1095 = vmatprep.subr.mxu0 0.0
    %1096 = vmatpush1.msra.mxu0 0.0
    %1097 = vmatprep.subr.mxu0 0.0
    %1098 = vmatpush1.msra.mxu0 0.0
    %1099 = vmatprep.subr.mxu0 0.0
    %1100 = vmatpush1.msra.mxu0 0.0
    %1101 = vmatprep.subr.mxu0 0.0
    %1102 = vmatpush1.msra.mxu0 0.0
    %1103 = vmatprep.subr.mxu0 0.0
    %1104 = vmatpush1.msra.mxu0 0.0
    %1105 = vmatprep.subr.mxu0 0.0
    %1106 = vmatpush1.msra.mxu0 0.0
    %1107 = vmatprep.subr.mxu0 0.0
    %1108 = vmatpush1.msra.mxu0 0.0
    %1109 = vmatprep.subr.mxu0 0.0
    %1110 = vmatpush1.msra.mxu0 0.0
    %1111 = vmatprep.subr.mxu0 0.0
    %1112 = vmatpush1.msra.mxu0 0.0
    %1113 = vmatprep.subr.mxu0 0.0
    %1114 = vmatpush1.msra.mxu0 0.0
    %1115 = vmatprep.subr.mxu0 0.0
    %1116 = vmatpush1.msra.mxu0 0.0
    %1117 = vmatprep.subr.mxu0 0.0
    %1118 = vmatpush1.msra.mxu0 0.0
    %1119 = vmatprep.subr.mxu0 0.0
    %1120 = vmatpush1.msra.mxu0 0.0
    %1121 = vmatprep.subr.mxu0 0.0
    %1122 = vmatpush1.msra.mxu0 0.0
    %1123 = vmatprep.subr.mxu0 0.0
    %1124 = vmatpush1.msra.mxu0 0.0
    %1125 = vmatprep.subr.mxu0 0.0
    %1126 = vmatpush1.msra.mxu0 0.0
    %1127 = vmatprep.subr.mxu0 0.0
    %1128 = vmatpush1.msra.mxu0 0.0
    %1129 = vmatprep.subr.mxu0 0.0
    %1130 = vmatpush1.msra.mxu0 0.0
    %1131 = vmatprep.subr.mxu0 0.0
    %1132 = vmatpush1.msra.mxu0 0.0
    %1133 = vmatprep.subr.mxu0 0.0
    %1134 = vmatpush1.msra.mxu0 0.0
    %1135 = vmatprep.subr.mxu0 0.0
    %1136 = vmatpush1.msra.mxu0 0.0
    %1137 = vmatprep.subr.mxu0 0.0
    %1138 = vmatpush1.msra.mxu0 0.0
    %1139 = vmatprep.subr.mxu0 0.0
    %1140 = vmatpush1.msra.mxu0 0.0
    %1141 = vmatprep.subr.mxu0 0.0
    %1142 = vmatpush1.msra.mxu0 0.0
    %1143 = vmatprep.subr.mxu0 0.0
    %1144 = vmatpush1.msra.mxu0 0.0
    %1145 = vmatprep.mubr.f32.mxu0 0.0
    %1146 = vmatmul.mubr.f32.gmra.mrb[0].mxu0 %v1070
    %v1147 = vpop.f32.mrb[0].mxu0
    %v1148 = vadd.f32 0.0, %v1147
    %v1149 = vpop.f32.mrb[0].mxu0
    %1150 = vmatprep.mubr.f32.mxu0 0.0
    %1151 = vmatmul.mubr.f32.gmra.mrb[0].mxu0 %v1073
    %v1152 = vpop.f32.mrb[0].mxu0
    %v1153 = vadd.f32 0.0, %v1152
    %v1154 = vpop.f32.mrb[0].mxu0
    %1155 = vmatprep.mubr.f32.mxu0 0.0
    %1156 = vmatmul.mubr.f32.gmra.mrb[0].mxu0 %v1076
    %v1157 = vpop.f32.mrb[0].mxu0
    %v1158 = vadd.f32 0.0, %v1157
    %v1159 = vpop.f32.mrb[0].mxu0
    %1160 = vmatprep.mubr.f32.mxu0 0.0
    %1161 = vmatmul.mubr.f32.gmra.mrb[0].mxu0 %v1079
    %v1162 = vpop.f32.mrb[0].mxu0
    %v1163 = vadd.f32 0.0, %v1162
    %v1164 = vpop.f32.mrb[0].mxu0
    %1165 = vdwg.mxu0
    %v1166 = vld [vmem:[#allocation7 + $0x18] sm:$0xff]
    %v1167 = vld [vmem:[#allocation7 + $0x70] sm:$0xff]
    %vm1168 = vcmask 130048
    %v1170 = vsel %vm1168, %v61, 0
    %1172 = vmatprep.subr.mxu0 0.0
    %1173 = vmatpush1.msra.mxu0 %v1166
    %1174 = vmatprep.subr.mxu0 0.0
    %1175 = vmatpush1.msra.mxu0 %v1167
    %1176 = vmatprep.subr.mxu0 0.0
    %1177 = vmatpush1.msra.mxu0 0.0
    %1178 = vmatprep.subr.mxu0 0.0
    %1179 = vmatpush1.msra.mxu0 0.0
    %1180 = vmatprep.subr.mxu0 0.0
    %1181 = vmatpush1.msra.mxu0 0.0
    %1182 = vmatprep.subr.mxu0 0.0
    %1183 = vmatpush1.msra.mxu0 0.0
    %1184 = vmatprep.subr.mxu0 0.0
    %1185 = vmatpush1.msra.mxu0 0.0
    %1186 = vmatprep.subr.mxu0 0.0
    %1187 = vmatpush1.msra.mxu0 0.0
    %1188 = vmatprep.subr.mxu0 0.0
    %1189 = vmatpush1.msra.mxu0 0.0
    %1190 = vmatprep.subr.mxu0 0.0
    %1191 = vmatpush1.msra.mxu0 0.0
    %1192 = vmatprep.subr.mxu0 0.0
    %1193 = vmatpush1.msra.mxu0 0.0
    %1194 = vmatprep.subr.mxu0 0.0
    %1195 = vmatpush1.msra.mxu0 0.0
    %1196 = vmatprep.subr.mxu0 0.0
    %1197 = vmatpush1.msra.mxu0 0.0
    %1198 = vmatprep.subr.mxu0 0.0
    %1199 = vmatpush1.msra.mxu0 0.0
    %1200 = vmatprep.subr.mxu0 0.0
    %1201 = vmatpush1.msra.mxu0 0.0
    %1202 = vmatprep.subr.mxu0 0.0
    %1203 = vmatpush1.msra.mxu0 0.0
    %1204 = vmatprep.subr.mxu0 0.0
    %1205 = vmatpush1.msra.mxu0 0.0
    %1206 = vmatprep.subr.mxu0 0.0
    %1207 = vmatpush1.msra.mxu0 0.0
    %1208 = vmatprep.subr.mxu0 0.0
    %1209 = vmatpush1.msra.mxu0 0.0
    %1210 = vmatprep.subr.mxu0 0.0
    %1211 = vmatpush1.msra.mxu0 0.0
    %1212 = vmatprep.subr.mxu0 0.0
    %1213 = vmatpush1.msra.mxu0 0.0
    %1214 = vmatprep.subr.mxu0 0.0
    %1215 = vmatpush1.msra.mxu0 0.0
    %1216 = vmatprep.subr.mxu0 0.0
    %1217 = vmatpush1.msra.mxu0 0.0
    %1218 = vmatprep.subr.mxu0 0.0
    %1219 = vmatpush1.msra.mxu0 0.0
    %1220 = vmatprep.subr.mxu0 0.0
    %1221 = vmatpush1.msra.mxu0 0.0
    %1222 = vmatprep.subr.mxu0 0.0
    %1223 = vmatpush1.msra.mxu0 0.0
    %1224 = vmatprep.subr.mxu0 0.0
    %1225 = vmatpush1.msra.mxu0 0.0
    %1226 = vmatprep.subr.mxu0 0.0
    %1227 = vmatpush1.msra.mxu0 0.0
    %1228 = vmatprep.subr.mxu0 0.0
    %1229 = vmatpush1.msra.mxu0 0.0
    %1230 = vmatprep.subr.mxu0 0.0
    %1231 = vmatpush1.msra.mxu0 0.0
    %1232 = vmatprep.subr.mxu0 0.0
    %1233 = vmatpush1.msra.mxu0 0.0
    %1234 = vmatprep.subr.mxu0 0.0
    %1235 = vmatpush1.msra.mxu0 0.0
    %1236 = vmatprep.mubr.f32.mxu0 0.0
    %1237 = vmatmul.mubr.f32.gmra.mrb[0].mxu0 %v1170
    %v1238 = vpop.f32.mrb[0].mxu0
    %v1239 = vadd.f32 0.0, %v1238
    %v1240 = vpop.f32.mrb[0].mxu0
    %1241 = vdwg.mxu0
    %v1242 = vld [vmem:[%s3 + $0x1] sm:$0x1]
    %v1244 = vlaneseq
    %v1245 = vshrl.u32 %v1244, 7
    %v1246 = vsub.s32 0, %v1245
    %v1247 = vrot.slane %v1242, %v1246
    %v1249 = vadd.f32 %v1239, %v1247
    %v1250 = vmax.f32 %v1249, 0.0
    %v1251 = vld [vmem:[%s3 + $0x4] sm:$0x1]
    %v1253 = vlaneseq
    %v1254 = vshrl.u32 %v1253, 7
    %v1255 = vsub.s32 0, %v1254
    %v1256 = vrot.slane %v1251, %v1255
    %1257 = vrot.lane.b32.xlu0 %v1256, 32
    %v1258 = vpop.permute.xlu0 %1257
    %v1260 = vadd.f32 %v1239, %v1258
    %v1261 = vmax.f32 %v1260, 0.0
    %v1262 = vld [vmem:[%s3 + $0x7] sm:$0x1]
    %v1264 = vlaneseq
    %v1265 = vshrl.u32 %v1264, 7
    %v1266 = vsub.s32 0, %v1265
    %v1267 = vrot.slane %v1262, %v1266
    %1268 = vrot.lane.b32.xlu0 %v1267, 48
    %v1269 = vpop.permute.xlu0 %1268
    %v1271 = vadd.f32 %v1239, %v1269
    %v1272 = vmax.f32 %v1271, 0.0
    %v1273 = vld [vmem:[#allocation7 + $0x10] sm:$0xff]
    %v1274 = vld [vmem:[#allocation7 + $0x68] sm:$0xff]
    %v1275 = vld [vmem:[#allocation7 + $0xc0] sm:$0xff]
    %v1276 = vld [vmem:[#allocation7 + $0x118] sm:$0xff]
    %v1277 = vld [vmem:[%s3] sm:$0x1]
    %v1279 = vlaneseq
    %v1280 = vshrl.u32 %v1279, 7
    %v1281 = vsub.s32 0, %v1280
    %v1282 = vrot.slane %v1277, %v1281
    %v1285 = vsel %vm66, %v1148, 0
    %v1288 = vsel %vm66, %v1153, 0
    %v1291 = vsel %vm66, %v1158, 0
    %v1294 = vsel %vm66, %v1163, 0
    %1296 = vmatprep.subr.mxu0 0.0
    %1297 = vmatpush1.msra.mxu0 %v1273
    %1298 = vmatprep.subr.mxu0 0.0
    %1299 = vmatpush1.msra.mxu0 %v1274
    %1300 = vmatprep.subr.mxu0 0.0
    %1301 = vmatpush1.msra.mxu0 %v1275
    %1302 = vmatprep.subr.mxu0 0.0
    %1303 = vmatpush1.msra.mxu0 %v1276
    %1304 = vmatprep.subr.mxu0 0.0
    %1305 = vmatpush1.msra.mxu0 0.0
    %1306 = vmatprep.subr.mxu0 0.0
    %1307 = vmatpush1.msra.mxu0 0.0
    %1308 = vmatprep.subr.mxu0 0.0
    %1309 = vmatpush1.msra.mxu0 0.0
    %1310 = vmatprep.subr.mxu0 0.0
    %1311 = vmatpush1.msra.mxu0 0.0
    %1312 = vmatprep.subr.mxu0 0.0
    %1313 = vmatpush1.msra.mxu0 0.0
    %1314 = vmatprep.subr.mxu0 0.0
    %1315 = vmatpush1.msra.mxu0 0.0
    %1316 = vmatprep.subr.mxu0 0.0
    %1317 = vmatpush1.msra.mxu0 0.0
    %1318 = vmatprep.subr.mxu0 0.0
    %1319 = vmatpush1.msra.mxu0 0.0
    %1320 = vmatprep.subr.mxu0 0.0
    %1321 = vmatpush1.msra.mxu0 0.0
    %1322 = vmatprep.subr.mxu0 0.0
    %1323 = vmatpush1.msra.mxu0 0.0
    %1324 = vmatprep.subr.mxu0 0.0
    %1325 = vmatpush1.msra.mxu0 0.0
    %1326 = vmatprep.subr.mxu0 0.0
    %1327 = vmatpush1.msra.mxu0 0.0
    %1328 = vmatprep.subr.mxu0 0.0
    %1329 = vmatpush1.msra.mxu0 0.0
    %1330 = vmatprep.subr.mxu0 0.0
    %1331 = vmatpush1.msra.mxu0 0.0
    %1332 = vmatprep.subr.mxu0 0.0
    %1333 = vmatpush1.msra.mxu0 0.0
    %1334 = vmatprep.subr.mxu0 0.0
    %1335 = vmatpush1.msra.mxu0 0.0
    %1336 = vmatprep.subr.mxu0 0.0
    %1337 = vmatpush1.msra.mxu0 0.0
    %1338 = vmatprep.subr.mxu0 0.0
    %1339 = vmatpush1.msra.mxu0 0.0
    %1340 = vmatprep.subr.mxu0 0.0
    %1341 = vmatpush1.msra.mxu0 0.0
    %1342 = vmatprep.subr.mxu0 0.0
    %1343 = vmatpush1.msra.mxu0 0.0
    %1344 = vmatprep.subr.mxu0 0.0
    %1345 = vmatpush1.msra.mxu0 0.0
    %1346 = vmatprep.subr.mxu0 0.0
    %1347 = vmatpush1.msra.mxu0 0.0
    %1348 = vmatprep.subr.mxu0 0.0
    %1349 = vmatpush1.msra.mxu0 0.0
    %1350 = vmatprep.subr.mxu0 0.0
    %1351 = vmatpush1.msra.mxu0 0.0
    %1352 = vmatprep.subr.mxu0 0.0
    %1353 = vmatpush1.msra.mxu0 0.0
    %1354 = vmatprep.subr.mxu0 0.0
    %1355 = vmatpush1.msra.mxu0 0.0
    %1356 = vmatprep.subr.mxu0 0.0
    %1357 = vmatpush1.msra.mxu0 0.0
    %1358 = vmatprep.subr.mxu0 0.0
    %1359 = vmatpush1.msra.mxu0 0.0
    %1360 = vmatprep.mubr.f32.mxu0 0.0
    %1361 = vmatmul.mubr.f32.gmra.mrb[0].mxu0 %v1285
    %v1362 = vpop.f32.mrb[0].mxu0
    %v1363 = vadd.f32 %v1282, %v1362
    %v1364 = vpop.f32.mrb[0].mxu0
    %1365 = vmatprep.mubr.f32.mxu0 0.0
    %1366 = vmatmul.mubr.f32.gmra.mrb[0].mxu0 %v1288
    %v1367 = vpop.f32.mrb[0].mxu0
    %v1368 = vadd.f32 %v1282, %v1367
    %v1369 = vpop.f32.mrb[0].mxu0
    %1370 = vmatprep.mubr.f32.mxu0 0.0
    %1371 = vmatmul.mubr.f32.gmra.mrb[0].mxu0 %v1291
    %v1372 = vpop.f32.mrb[0].mxu0
    %v1373 = vadd.f32 %v1282, %v1372
    %v1374 = vpop.f32.mrb[0].mxu0
    %1375 = vmatprep.mubr.f32.mxu0 0.0
    %1376 = vmatmul.mubr.f32.gmra.mrb[0].mxu0 %v1294
    %v1377 = vpop.f32.mrb[0].mxu0
    %v1378 = vadd.f32 %v1282, %v1377
    %v1379 = vpop.f32.mrb[0].mxu0
    %1380 = vdwg.mxu0
    %v1381 = vmax.f32 %v1363, 0.0
    %v1382 = vmax.f32 %v1368, 0.0
    %v1383 = vmax.f32 %v1373, 0.0
    %v1384 = vmax.f32 %v1378, 0.0
    %v1387 = vunpack.c.l.s4 1966171168
    %v1388 = vunpack.c.0.s8 %v1387
    %v1389 = vlaneseq
    %v1390 = vshrl.u32 %v1389, 7
    %v1391 = vsub.s32 %v1388, %v1390
    %v1392 = vrot.slane %v1250, %v1391
    %v1393 = vcombine.high %v1392, %v1392
    %v1395 = vunpack.c.l.s4 1966171168
    %v1396 = vunpack.c.0.s8 %v1395
    %v1397 = vlaneseq
    %v1398 = vshrl.u32 %v1397, 7
    %v1399 = vsub.s32 %v1396, %v1398
    %v1400 = vrot.slane %v1392, %v1399
    %v1402 = vunpack.c.l.s4 1966171168
    %v1403 = vunpack.c.0.s8 %v1402
    %v1404 = vlaneseq
    %v1405 = vshrl.u32 %v1404, 7
    %v1406 = vsub.s32 %v1403, %v1405
    %v1407 = vrot.slane %v1393, %v1406
    %v1408 = vcombine.high %v1400, %v1400
    %v1409 = vcombine.high %v1407, %v1407
    %v1410 = vlaneseq
    %v1411 = vshrl.u32 %v1410, 7
    %v1412 = vsub.s32 0, %v1411
    %v1413 = vrot.slane %v1400, %v1412
    %v1414 = vlaneseq
    %v1415 = vshrl.u32 %v1414, 7
    %v1416 = vsub.s32 0, %v1415
    %v1417 = vrot.slane %v1407, %v1416
    %v1418 = vlaneseq
    %v1419 = vshrl.u32 %v1418, 7
    %v1420 = vsub.s32 0, %v1419
    %v1421 = vrot.slane %v1408, %v1420
    %v1422 = vlaneseq
    %v1423 = vshrl.u32 %v1422, 7
    %v1424 = vsub.s32 0, %v1423
    %v1425 = vrot.slane %v1409, %v1424
    %v1430 = vmul.f32 %v1381, %v1413
    %v1431 = vmul.f32 %v1382, %v1417
    %v1432 = vmul.f32 %v1383, %v1421
    %v1433 = vmul.f32 %v1384, %v1425
    %v1434 = vld [vmem:[#allocation7 + $0x20] sm:$0xff]
    %v1435 = vld [vmem:[#allocation7 + $0x78] sm:$0xff]
    %v1436 = vld [vmem:[#allocation7 + $0xd0] sm:$0xff]
    %v1437 = vld [vmem:[#allocation7 + $0x128] sm:$0xff]
    %v1438 = vld [vmem:[%s3 + $0x2] sm:$0x1]
    %v1440 = vlaneseq
    %v1441 = vshrl.u32 %v1440, 7
    %v1442 = vsub.s32 0, %v1441
    %v1443 = vrot.slane %v1438, %v1442
    %v1446 = vsel %vm66, %v1430, 0
    %v1449 = vsel %vm66, %v1431, 0
    %v1452 = vsel %vm66, %v1432, 0
    %v1455 = vsel %vm66, %v1433, 0
    %1457 = vmatprep.subr.mxu0 0.0
    %1458 = vmatpush1.msra.mxu0 %v1434
    %1459 = vmatprep.subr.mxu0 0.0
    %1460 = vmatpush1.msra.mxu0 %v1435
    %1461 = vmatprep.subr.mxu0 0.0
    %1462 = vmatpush1.msra.mxu0 %v1436
    %1463 = vmatprep.subr.mxu0 0.0
    %1464 = vmatpush1.msra.mxu0 %v1437
    %1465 = vmatprep.subr.mxu0 0.0
    %1466 = vmatpush1.msra.mxu0 0.0
    %1467 = vmatprep.subr.mxu0 0.0
    %1468 = vmatpush1.msra.mxu0 0.0
    %1469 = vmatprep.subr.mxu0 0.0
    %1470 = vmatpush1.msra.mxu0 0.0
    %1471 = vmatprep.subr.mxu0 0.0
    %1472 = vmatpush1.msra.mxu0 0.0
    %1473 = vmatprep.subr.mxu0 0.0
    %1474 = vmatpush1.msra.mxu0 0.0
    %1475 = vmatprep.subr.mxu0 0.0
    %1476 = vmatpush1.msra.mxu0 0.0
    %1477 = vmatprep.subr.mxu0 0.0
    %1478 = vmatpush1.msra.mxu0 0.0
    %1479 = vmatprep.subr.mxu0 0.0
    %1480 = vmatpush1.msra.mxu0 0.0
    %1481 = vmatprep.subr.mxu0 0.0
    %1482 = vmatpush1.msra.mxu0 0.0
    %1483 = vmatprep.subr.mxu0 0.0
    %1484 = vmatpush1.msra.mxu0 0.0
    %1485 = vmatprep.subr.mxu0 0.0
    %1486 = vmatpush1.msra.mxu0 0.0
    %1487 = vmatprep.subr.mxu0 0.0
    %1488 = vmatpush1.msra.mxu0 0.0
    %1489 = vmatprep.subr.mxu0 0.0
    %1490 = vmatpush1.msra.mxu0 0.0
    %1491 = vmatprep.subr.mxu0 0.0
    %1492 = vmatpush1.msra.mxu0 0.0
    %1493 = vmatprep.subr.mxu0 0.0
    %1494 = vmatpush1.msra.mxu0 0.0
    %1495 = vmatprep.subr.mxu0 0.0
    %1496 = vmatpush1.msra.mxu0 0.0
    %1497 = vmatprep.subr.mxu0 0.0
    %1498 = vmatpush1.msra.mxu0 0.0
    %1499 = vmatprep.subr.mxu0 0.0
    %1500 = vmatpush1.msra.mxu0 0.0
    %1501 = vmatprep.subr.mxu0 0.0
    %1502 = vmatpush1.msra.mxu0 0.0
    %1503 = vmatprep.subr.mxu0 0.0
    %1504 = vmatpush1.msra.mxu0 0.0
    %1505 = vmatprep.subr.mxu0 0.0
    %1506 = vmatpush1.msra.mxu0 0.0
    %1507 = vmatprep.subr.mxu0 0.0
    %1508 = vmatpush1.msra.mxu0 0.0
    %1509 = vmatprep.subr.mxu0 0.0
    %1510 = vmatpush1.msra.mxu0 0.0
    %1511 = vmatprep.subr.mxu0 0.0
    %1512 = vmatpush1.msra.mxu0 0.0
    %1513 = vmatprep.subr.mxu0 0.0
    %1514 = vmatpush1.msra.mxu0 0.0
    %1515 = vmatprep.subr.mxu0 0.0
    %1516 = vmatpush1.msra.mxu0 0.0
    %1517 = vmatprep.subr.mxu0 0.0
    %1518 = vmatpush1.msra.mxu0 0.0
    %1519 = vmatprep.subr.mxu0 0.0
    %1520 = vmatpush1.msra.mxu0 0.0
    %1521 = vmatprep.mubr.f32.mxu0 0.0
    %1522 = vmatmul.mubr.f32.gmra.mrb[0].mxu0 %v1446
    %v1523 = vpop.f32.mrb[0].mxu0
    %v1524 = vadd.f32 %v1443, %v1523
    %v1525 = vpop.f32.mrb[0].mxu0
    %1526 = vmatprep.mubr.f32.mxu0 0.0
    %1527 = vmatmul.mubr.f32.gmra.mrb[0].mxu0 %v1449
    %v1528 = vpop.f32.mrb[0].mxu0
    %v1529 = vadd.f32 %v1443, %v1528
    %v1530 = vpop.f32.mrb[0].mxu0
    %1531 = vmatprep.mubr.f32.mxu0 0.0
    %1532 = vmatmul.mubr.f32.gmra.mrb[0].mxu0 %v1452
    %v1533 = vpop.f32.mrb[0].mxu0
    %v1534 = vadd.f32 %v1443, %v1533
    %v1535 = vpop.f32.mrb[0].mxu0
    %1536 = vmatprep.mubr.f32.mxu0 0.0
    %1537 = vmatmul.mubr.f32.gmra.mrb[0].mxu0 %v1455
    %v1538 = vpop.f32.mrb[0].mxu0
    %v1539 = vadd.f32 %v1443, %v1538
    %v1540 = vpop.f32.mrb[0].mxu0
    %1541 = vdwg.mxu0
    %vm1542 = vcmask 15360
    %v1543 = vsel %vm1542, %v1524, -inf
    %v1544 = vrot.slane %v1543, 4
    %v1545 = vmax.f32 %v1543, %v1544
    %v1546 = vrot.slane %v1545, 2
    %v1547 = vmax.f32 %v1545, %v1546
    %v1548 = vrot.slane %v1547, 1
    %v1549 = vmax.f32 %v1547, %v1548
    %v1550 = vsel %vm1542, %v1529, -inf
    %v1551 = vrot.slane %v1550, 4
    %v1552 = vmax.f32 %v1550, %v1551
    %v1553 = vrot.slane %v1552, 2
    %v1554 = vmax.f32 %v1552, %v1553
    %v1555 = vrot.slane %v1554, 1
    %v1556 = vmax.f32 %v1554, %v1555
    %v1557 = vsel %vm1542, %v1534, -inf
    %v1558 = vrot.slane %v1557, 4
    %v1559 = vmax.f32 %v1557, %v1558
    %v1560 = vrot.slane %v1559, 2
    %v1561 = vmax.f32 %v1559, %v1560
    %v1562 = vrot.slane %v1561, 1
    %v1563 = vmax.f32 %v1561, %v1562
    %v1564 = vsel %vm1542, %v1539, -inf
    %v1565 = vrot.slane %v1564, 4
    %v1566 = vmax.f32 %v1564, %v1565
    %v1567 = vrot.slane %v1566, 2
    %v1568 = vmax.f32 %v1566, %v1567
    %v1569 = vrot.slane %v1568, 1
    %v1570 = vmax.f32 %v1568, %v1569
    %v1571 = vsub.f32 %v1524, %v1549
    %v1572 = vsub.f32 %v1529, %v1556
    %v1573 = vsub.f32 %v1534, %v1563
    %v1574 = vsub.f32 %v1539, %v1570
    %v1575 = vmul.f32 %v1571, 1.442695
    %v1576 = vpow.pop %v1575
    %v1577 = vmul.f32 %v1572, 1.442695
    %v1578 = vpow.pop %v1577
    %v1579 = vmul.f32 %v1573, 1.442695
    %v1580 = vpow.pop %v1579
    %v1581 = vmul.f32 %v1574, 1.442695
    %v1582 = vpow.pop %v1581
    %v1583 = vsel %vm1542, %v1576, 0.0
    %v1584 = vrot.slane %v1583, 4
    %v1585 = vadd.f32 %v1583, %v1584
    %v1586 = vrot.slane %v1585, 2
    %v1587 = vadd.f32 %v1585, %v1586
    %v1588 = vrot.slane %v1587, 1
    %v1589 = vadd.f32 %v1587, %v1588
    %v1590 = vsel %vm1542, %v1578, 0.0
    %v1591 = vrot.slane %v1590, 4
    %v1592 = vadd.f32 %v1590, %v1591
    %v1593 = vrot.slane %v1592, 2
    %v1594 = vadd.f32 %v1592, %v1593
    %v1595 = vrot.slane %v1594, 1
    %v1596 = vadd.f32 %v1594, %v1595
    %v1597 = vsel %vm1542, %v1580, 0.0
    %v1598 = vrot.slane %v1597, 4
    %v1599 = vadd.f32 %v1597, %v1598
    %v1600 = vrot.slane %v1599, 2
    %v1601 = vadd.f32 %v1599, %v1600
    %v1602 = vrot.slane %v1601, 1
    %v1603 = vadd.f32 %v1601, %v1602
    %v1604 = vsel %vm1542, %v1582, 0.0
    %v1605 = vrot.slane %v1604, 4
    %v1606 = vadd.f32 %v1604, %v1605
    %v1607 = vrot.slane %v1606, 2
    %v1608 = vadd.f32 %v1606, %v1607
    %v1609 = vrot.slane %v1608, 1
    %v1610 = vadd.f32 %v1608, %v1609
    %v1611 = vrcp.pop %v1589
    %v1612 = vrcp.pop %v1596
    %v1613 = vrcp.pop %v1603
    %v1614 = vrcp.pop %v1610
    %v1615 = vmul.f32 %v1576, %v1611
    %v1616 = vmul.f32 %v1578, %v1612
    %v1617 = vmul.f32 %v1580, %v1613
    %v1618 = vmul.f32 %v1582, %v1614
    %1619 = vxpose.xlu0.b32.start [1/16] %v1615, 128
    %1620 = vxpose.xlu0.b32.cont [2/16] 0.0, 128
    %1621 = vxpose.xlu0.b32.cont [3/16] 0.0, 128
    %1622 = vxpose.xlu0.b32.cont [4/16] 0.0, 128
    %1623 = vxpose.xlu0.b32.cont [5/16] 0.0, 128
    %1624 = vxpose.xlu0.b32.cont [6/16] 0.0, 128
    %1625 = vxpose.xlu0.b32.cont [7/16] 0.0, 128
    %1626 = vxpose.xlu0.b32.cont [8/16] 0.0, 128
    %1627 = vxpose.xlu0.b32.cont [9/16] 0.0, 128
    %1628 = vxpose.xlu0.b32.cont [10/16] 0.0, 128
    %1629 = vxpose.xlu0.b32.cont [11/16] 0.0, 128
    %1630 = vxpose.xlu0.b32.cont [12/16] 0.0, 128
    %1631 = vxpose.xlu0.b32.cont [13/16] 0.0, 128
    %1632 = vxpose.xlu0.b32.cont [14/16] 0.0, 128
    %1633 = vxpose.xlu0.b32.cont [15/16] 0.0, 128
    %1634 = vxpose.xlu0.b32.end [16/16] 0.0, 128
    %v1635 = vpop.trf.xlu0
    %v1636 = vpop.trf.xlu0
    %v1637 = vpop.trf.xlu0
    %v1638 = vpop.trf.xlu0
    %v1639 = vpop.trf.xlu0
    %v1640 = vpop.trf.xlu0
    %v1641 = vpop.trf.xlu0
    %v1642 = vpop.trf.xlu0
    %v1643 = vpop.trf.xlu0
    %v1644 = vpop.trf.xlu0
    %v1645 = vpop.trf.xlu0
    %v1646 = vpop.trf.xlu0
    %v1647 = vpop.trf.xlu0
    %v1648 = vpop.trf.xlu0
    %v1649 = vpop.trf.xlu0
    %v1650 = vpop.trf.xlu0
    %1651 = vxpose.xlu0.b32.start [1/16] %v1616, 128
    %1652 = vxpose.xlu0.b32.cont [2/16] 0.0, 128
    %1653 = vxpose.xlu0.b32.cont [3/16] 0.0, 128
    %1654 = vxpose.xlu0.b32.cont [4/16] 0.0, 128
    %1655 = vxpose.xlu0.b32.cont [5/16] 0.0, 128
    %1656 = vxpose.xlu0.b32.cont [6/16] 0.0, 128
    %1657 = vxpose.xlu0.b32.cont [7/16] 0.0, 128
    %1658 = vxpose.xlu0.b32.cont [8/16] 0.0, 128
    %1659 = vxpose.xlu0.b32.cont [9/16] 0.0, 128
    %1660 = vxpose.xlu0.b32.cont [10/16] 0.0, 128
    %1661 = vxpose.xlu0.b32.cont [11/16] 0.0, 128
    %1662 = vxpose.xlu0.b32.cont [12/16] 0.0, 128
    %1663 = vxpose.xlu0.b32.cont [13/16] 0.0, 128
    %1664 = vxpose.xlu0.b32.cont [14/16] 0.0, 128
    %1665 = vxpose.xlu0.b32.cont [15/16] 0.0, 128
    %1666 = vxpose.xlu0.b32.end [16/16] 0.0, 128
    %v1667 = vpop.trf.xlu0
    %v1668 = vpop.trf.xlu0
    %v1669 = vpop.trf.xlu0
    %v1670 = vpop.trf.xlu0
    %v1671 = vpop.trf.xlu0
    %v1672 = vpop.trf.xlu0
    %v1673 = vpop.trf.xlu0
    %v1674 = vpop.trf.xlu0
    %v1675 = vpop.trf.xlu0
    %v1676 = vpop.trf.xlu0
    %v1677 = vpop.trf.xlu0
    %v1678 = vpop.trf.xlu0
    %v1679 = vpop.trf.xlu0
    %v1680 = vpop.trf.xlu0
    %v1681 = vpop.trf.xlu0
    %v1682 = vpop.trf.xlu0
    %1683 = vxpose.xlu0.b32.start [1/16] %v1617, 128
    %1684 = vxpose.xlu0.b32.cont [2/16] 0.0, 128
    %1685 = vxpose.xlu0.b32.cont [3/16] 0.0, 128
    %1686 = vxpose.xlu0.b32.cont [4/16] 0.0, 128
    %1687 = vxpose.xlu0.b32.cont [5/16] 0.0, 128
    %1688 = vxpose.xlu0.b32.cont [6/16] 0.0, 128
    %1689 = vxpose.xlu0.b32.cont [7/16] 0.0, 128
    %1690 = vxpose.xlu0.b32.cont [8/16] 0.0, 128
    %1691 = vxpose.xlu0.b32.cont [9/16] 0.0, 128
    %1692 = vxpose.xlu0.b32.cont [10/16] 0.0, 128
    %1693 = vxpose.xlu0.b32.cont [11/16] 0.0, 128
    %1694 = vxpose.xlu0.b32.cont [12/16] 0.0, 128
    %1695 = vxpose.xlu0.b32.cont [13/16] 0.0, 128
    %1696 = vxpose.xlu0.b32.cont [14/16] 0.0, 128
    %1697 = vxpose.xlu0.b32.cont [15/16] 0.0, 128
    %1698 = vxpose.xlu0.b32.end [16/16] 0.0, 128
    %v1699 = vpop.trf.xlu0
    %v1700 = vpop.trf.xlu0
    %v1701 = vpop.trf.xlu0
    %v1702 = vpop.trf.xlu0
    %v1703 = vpop.trf.xlu0
    %v1704 = vpop.trf.xlu0
    %v1705 = vpop.trf.xlu0
    %v1706 = vpop.trf.xlu0
    %v1707 = vpop.trf.xlu0
    %v1708 = vpop.trf.xlu0
    %v1709 = vpop.trf.xlu0
    %v1710 = vpop.trf.xlu0
    %v1711 = vpop.trf.xlu0
    %v1712 = vpop.trf.xlu0
    %v1713 = vpop.trf.xlu0
    %v1714 = vpop.trf.xlu0
    %1715 = vxpose.xlu0.b32.start [1/16] %v1618, 128
    %1716 = vxpose.xlu0.b32.cont [2/16] 0.0, 128
    %1717 = vxpose.xlu0.b32.cont [3/16] 0.0, 128
    %1718 = vxpose.xlu0.b32.cont [4/16] 0.0, 128
    %1719 = vxpose.xlu0.b32.cont [5/16] 0.0, 128
    %1720 = vxpose.xlu0.b32.cont [6/16] 0.0, 128
    %1721 = vxpose.xlu0.b32.cont [7/16] 0.0, 128
    %1722 = vxpose.xlu0.b32.cont [8/16] 0.0, 128
    %1723 = vxpose.xlu0.b32.cont [9/16] 0.0, 128
    %1724 = vxpose.xlu0.b32.cont [10/16] 0.0, 128
    %1725 = vxpose.xlu0.b32.cont [11/16] 0.0, 128
    %1726 = vxpose.xlu0.b32.cont [12/16] 0.0, 128
    %1727 = vxpose.xlu0.b32.cont [13/16] 0.0, 128
    %1728 = vxpose.xlu0.b32.cont [14/16] 0.0, 128
    %1729 = vxpose.xlu0.b32.cont [15/16] 0.0, 128
    %1730 = vxpose.xlu0.b32.end [16/16] 0.0, 128
    %v1731 = vpop.trf.xlu0
    %v1732 = vpop.trf.xlu0
    %v1733 = vpop.trf.xlu0
    %v1734 = vpop.trf.xlu0
    %v1735 = vpop.trf.xlu0
    %v1736 = vpop.trf.xlu0
    %v1737 = vpop.trf.xlu0
    %v1738 = vpop.trf.xlu0
    %v1739 = vpop.trf.xlu0
    %v1740 = vpop.trf.xlu0
    %v1741 = vpop.trf.xlu0
    %v1742 = vpop.trf.xlu0
    %v1743 = vpop.trf.xlu0
    %v1744 = vpop.trf.xlu0
    %v1745 = vpop.trf.xlu0
    %v1746 = vpop.trf.xlu0
    %v1748 = vsel %vm387, %v1635, 0
    %1750 = vmatprep.subr.mxu0 0.0
    %1751 = vmatpush1.msra.mxu0 %v1148
    %1752 = vmatprep.subr.mxu0 0.0
    %1753 = vmatpush1.msra.mxu0 0.0
    %1754 = vmatprep.subr.mxu0 0.0
    %1755 = vmatpush1.msra.mxu0 0.0
    %1756 = vmatprep.subr.mxu0 0.0
    %1757 = vmatpush1.msra.mxu0 0.0
    %1758 = vmatprep.subr.mxu0 0.0
    %1759 = vmatpush1.msra.mxu0 0.0
    %1760 = vmatprep.subr.mxu0 0.0
    %1761 = vmatpush1.msra.mxu0 0.0
    %1762 = vmatprep.subr.mxu0 0.0
    %1763 = vmatpush1.msra.mxu0 0.0
    %1764 = vmatprep.subr.mxu0 0.0
    %1765 = vmatpush1.msra.mxu0 0.0
    %1766 = vmatprep.subr.mxu0 0.0
    %1767 = vmatpush1.msra.mxu0 0.0
    %1768 = vmatprep.subr.mxu0 0.0
    %1769 = vmatpush1.msra.mxu0 0.0
    %1770 = vmatprep.subr.mxu0 0.0
    %1771 = vmatpush1.msra.mxu0 0.0
    %1772 = vmatprep.subr.mxu0 0.0
    %1773 = vmatpush1.msra.mxu0 0.0
    %1774 = vmatprep.subr.mxu0 0.0
    %1775 = vmatpush1.msra.mxu0 0.0
    %1776 = vmatprep.subr.mxu0 0.0
    %1777 = vmatpush1.msra.mxu0 0.0
    %1778 = vmatprep.subr.mxu0 0.0
    %1779 = vmatpush1.msra.mxu0 0.0
    %1780 = vmatprep.subr.mxu0 0.0
    %1781 = vmatpush1.msra.mxu0 0.0
    %1782 = vmatprep.subr.mxu0 0.0
    %1783 = vmatpush1.msra.mxu0 0.0
    %1784 = vmatprep.subr.mxu0 0.0
    %1785 = vmatpush1.msra.mxu0 0.0
    %1786 = vmatprep.subr.mxu0 0.0
    %1787 = vmatpush1.msra.mxu0 0.0
    %1788 = vmatprep.subr.mxu0 0.0
    %1789 = vmatpush1.msra.mxu0 0.0
    %1790 = vmatprep.subr.mxu0 0.0
    %1791 = vmatpush1.msra.mxu0 0.0
    %1792 = vmatprep.subr.mxu0 0.0
    %1793 = vmatpush1.msra.mxu0 0.0
    %1794 = vmatprep.subr.mxu0 0.0
    %1795 = vmatpush1.msra.mxu0 0.0
    %1796 = vmatprep.subr.mxu0 0.0
    %1797 = vmatpush1.msra.mxu0 0.0
    %1798 = vmatprep.subr.mxu0 0.0
    %1799 = vmatpush1.msra.mxu0 0.0
    %1800 = vmatprep.subr.mxu0 0.0
    %1801 = vmatpush1.msra.mxu0 0.0
    %1802 = vmatprep.subr.mxu0 0.0
    %1803 = vmatpush1.msra.mxu0 0.0
    %1804 = vmatprep.subr.mxu0 0.0
    %1805 = vmatpush1.msra.mxu0 0.0
    %1806 = vmatprep.subr.mxu0 0.0
    %1807 = vmatpush1.msra.mxu0 0.0
    %1808 = vmatprep.subr.mxu0 0.0
    %1809 = vmatpush1.msra.mxu0 0.0
    %1810 = vmatprep.subr.mxu0 0.0
    %1811 = vmatpush1.msra.mxu0 0.0
    %1812 = vmatprep.subr.mxu0 0.0
    %1813 = vmatpush1.msra.mxu0 0.0
    %1814 = vmatprep.mubr.f32.mxu0 0.0
    %1815 = vmatmul.mubr.f32.gmra.mrb[0].mxu0 %v1748
    %v1816 = vpop.f32.mrb[0].mxu0
    %v1817 = vadd.f32 0.0, %v1816
    %v1818 = vpop.f32.mrb[0].mxu0
    %1819 = vdwg.mxu0
    %v1821 = vsel %vm387, %v1667, 0
    %1823 = vmatprep.subr.mxu0 0.0
    %1824 = vmatpush1.msra.mxu0 %v1153
    %1825 = vmatprep.subr.mxu0 0.0
    %1826 = vmatpush1.msra.mxu0 0.0
    %1827 = vmatprep.subr.mxu0 0.0
    %1828 = vmatpush1.msra.mxu0 0.0
    %1829 = vmatprep.subr.mxu0 0.0
    %1830 = vmatpush1.msra.mxu0 0.0
    %1831 = vmatprep.subr.mxu0 0.0
    %1832 = vmatpush1.msra.mxu0 0.0
    %1833 = vmatprep.subr.mxu0 0.0
    %1834 = vmatpush1.msra.mxu0 0.0
    %1835 = vmatprep.subr.mxu0 0.0
    %1836 = vmatpush1.msra.mxu0 0.0
    %1837 = vmatprep.subr.mxu0 0.0
    %1838 = vmatpush1.msra.mxu0 0.0
    %1839 = vmatprep.subr.mxu0 0.0
    %1840 = vmatpush1.msra.mxu0 0.0
    %1841 = vmatprep.subr.mxu0 0.0
    %1842 = vmatpush1.msra.mxu0 0.0
    %1843 = vmatprep.subr.mxu0 0.0
    %1844 = vmatpush1.msra.mxu0 0.0
    %1845 = vmatprep.subr.mxu0 0.0
    %1846 = vmatpush1.msra.mxu0 0.0
    %1847 = vmatprep.subr.mxu0 0.0
    %1848 = vmatpush1.msra.mxu0 0.0
    %1849 = vmatprep.subr.mxu0 0.0
    %1850 = vmatpush1.msra.mxu0 0.0
    %1851 = vmatprep.subr.mxu0 0.0
    %1852 = vmatpush1.msra.mxu0 0.0
    %1853 = vmatprep.subr.mxu0 0.0
    %1854 = vmatpush1.msra.mxu0 0.0
    %1855 = vmatprep.subr.mxu0 0.0
    %1856 = vmatpush1.msra.mxu0 0.0
    %1857 = vmatprep.subr.mxu0 0.0
    %1858 = vmatpush1.msra.mxu0 0.0
    %1859 = vmatprep.subr.mxu0 0.0
    %1860 = vmatpush1.msra.mxu0 0.0
    %1861 = vmatprep.subr.mxu0 0.0
    %1862 = vmatpush1.msra.mxu0 0.0
    %1863 = vmatprep.subr.mxu0 0.0
    %1864 = vmatpush1.msra.mxu0 0.0
    %1865 = vmatprep.subr.mxu0 0.0
    %1866 = vmatpush1.msra.mxu0 0.0
    %1867 = vmatprep.subr.mxu0 0.0
    %1868 = vmatpush1.msra.mxu0 0.0
    %1869 = vmatprep.subr.mxu0 0.0
    %1870 = vmatpush1.msra.mxu0 0.0
    %1871 = vmatprep.subr.mxu0 0.0
    %1872 = vmatpush1.msra.mxu0 0.0
    %1873 = vmatprep.subr.mxu0 0.0
    %1874 = vmatpush1.msra.mxu0 0.0
    %1875 = vmatprep.subr.mxu0 0.0
    %1876 = vmatpush1.msra.mxu0 0.0
    %1877 = vmatprep.subr.mxu0 0.0
    %1878 = vmatpush1.msra.mxu0 0.0
    %1879 = vmatprep.subr.mxu0 0.0
    %1880 = vmatpush1.msra.mxu0 0.0
    %1881 = vmatprep.subr.mxu0 0.0
    %1882 = vmatpush1.msra.mxu0 0.0
    %1883 = vmatprep.subr.mxu0 0.0
    %1884 = vmatpush1.msra.mxu0 0.0
    %1885 = vmatprep.subr.mxu0 0.0
    %1886 = vmatpush1.msra.mxu0 0.0
    %1887 = vmatprep.mubr.f32.mxu0 0.0
    %1888 = vmatmul.mubr.f32.gmra.mrb[0].mxu0 %v1821
    %v1889 = vpop.f32.mrb[0].mxu0
    %v1890 = vadd.f32 0.0, %v1889
    %v1891 = vpop.f32.mrb[0].mxu0
    %1892 = vdwg.mxu0
    %v1894 = vsel %vm387, %v1699, 0
    %1896 = vmatprep.subr.mxu0 0.0
    %1897 = vmatpush1.msra.mxu0 %v1158
    %1898 = vmatprep.subr.mxu0 0.0
    %1899 = vmatpush1.msra.mxu0 0.0
    %1900 = vmatprep.subr.mxu0 0.0
    %1901 = vmatpush1.msra.mxu0 0.0
    %1902 = vmatprep.subr.mxu0 0.0
    %1903 = vmatpush1.msra.mxu0 0.0
    %1904 = vmatprep.subr.mxu0 0.0
    %1905 = vmatpush1.msra.mxu0 0.0
    %1906 = vmatprep.subr.mxu0 0.0
    %1907 = vmatpush1.msra.mxu0 0.0
    %1908 = vmatprep.subr.mxu0 0.0
    %1909 = vmatpush1.msra.mxu0 0.0
    %1910 = vmatprep.subr.mxu0 0.0
    %1911 = vmatpush1.msra.mxu0 0.0
    %1912 = vmatprep.subr.mxu0 0.0
    %1913 = vmatpush1.msra.mxu0 0.0
    %1914 = vmatprep.subr.mxu0 0.0
    %1915 = vmatpush1.msra.mxu0 0.0
    %1916 = vmatprep.subr.mxu0 0.0
    %1917 = vmatpush1.msra.mxu0 0.0
    %1918 = vmatprep.subr.mxu0 0.0
    %1919 = vmatpush1.msra.mxu0 0.0
    %1920 = vmatprep.subr.mxu0 0.0
    %1921 = vmatpush1.msra.mxu0 0.0
    %1922 = vmatprep.subr.mxu0 0.0
    %1923 = vmatpush1.msra.mxu0 0.0
    %1924 = vmatprep.subr.mxu0 0.0
    %1925 = vmatpush1.msra.mxu0 0.0
    %1926 = vmatprep.subr.mxu0 0.0
    %1927 = vmatpush1.msra.mxu0 0.0
    %1928 = vmatprep.subr.mxu0 0.0
    %1929 = vmatpush1.msra.mxu0 0.0
    %1930 = vmatprep.subr.mxu0 0.0
    %1931 = vmatpush1.msra.mxu0 0.0
    %1932 = vmatprep.subr.mxu0 0.0
    %1933 = vmatpush1.msra.mxu0 0.0
    %1934 = vmatprep.subr.mxu0 0.0
    %1935 = vmatpush1.msra.mxu0 0.0
    %1936 = vmatprep.subr.mxu0 0.0
    %1937 = vmatpush1.msra.mxu0 0.0
    %1938 = vmatprep.subr.mxu0 0.0
    %1939 = vmatpush1.msra.mxu0 0.0
    %1940 = vmatprep.subr.mxu0 0.0
    %1941 = vmatpush1.msra.mxu0 0.0
    %1942 = vmatprep.subr.mxu0 0.0
    %1943 = vmatpush1.msra.mxu0 0.0
    %1944 = vmatprep.subr.mxu0 0.0
    %1945 = vmatpush1.msra.mxu0 0.0
    %1946 = vmatprep.subr.mxu0 0.0
    %1947 = vmatpush1.msra.mxu0 0.0
    %1948 = vmatprep.subr.mxu0 0.0
    %1949 = vmatpush1.msra.mxu0 0.0
    %1950 = vmatprep.subr.mxu0 0.0
    %1951 = vmatpush1.msra.mxu0 0.0
    %1952 = vmatprep.subr.mxu0 0.0
    %1953 = vmatpush1.msra.mxu0 0.0
    %1954 = vmatprep.subr.mxu0 0.0
    %1955 = vmatpush1.msra.mxu0 0.0
    %1956 = vmatprep.subr.mxu0 0.0
    %1957 = vmatpush1.msra.mxu0 0.0
    %1958 = vmatprep.subr.mxu0 0.0
    %1959 = vmatpush1.msra.mxu0 0.0
    %1960 = vmatprep.mubr.f32.mxu0 0.0
    %1961 = vmatmul.mubr.f32.gmra.mrb[0].mxu0 %v1894
    %v1962 = vpop.f32.mrb[0].mxu0
    %v1963 = vadd.f32 0.0, %v1962
    %v1964 = vpop.f32.mrb[0].mxu0
    %1965 = vdwg.mxu0
    %v1967 = vsel %vm387, %v1731, 0
    %1969 = vmatprep.subr.mxu0 0.0
    %1970 = vmatpush1.msra.mxu0 %v1163
    %1971 = vmatprep.subr.mxu0 0.0
    %1972 = vmatpush1.msra.mxu0 0.0
    %1973 = vmatprep.subr.mxu0 0.0
    %1974 = vmatpush1.msra.mxu0 0.0
    %1975 = vmatprep.subr.mxu0 0.0
    %1976 = vmatpush1.msra.mxu0 0.0
    %1977 = vmatprep.subr.mxu0 0.0
    %1978 = vmatpush1.msra.mxu0 0.0
    %1979 = vmatprep.subr.mxu0 0.0
    %1980 = vmatpush1.msra.mxu0 0.0
    %1981 = vmatprep.subr.mxu0 0.0
    %1982 = vmatpush1.msra.mxu0 0.0
    %1983 = vmatprep.subr.mxu0 0.0
    %1984 = vmatpush1.msra.mxu0 0.0
    %1985 = vmatprep.subr.mxu0 0.0
    %1986 = vmatpush1.msra.mxu0 0.0
    %1987 = vmatprep.subr.mxu0 0.0
    %1988 = vmatpush1.msra.mxu0 0.0
    %1989 = vmatprep.subr.mxu0 0.0
    %1990 = vmatpush1.msra.mxu0 0.0
    %1991 = vmatprep.subr.mxu0 0.0
    %1992 = vmatpush1.msra.mxu0 0.0
    %1993 = vmatprep.subr.mxu0 0.0
    %1994 = vmatpush1.msra.mxu0 0.0
    %1995 = vmatprep.subr.mxu0 0.0
    %1996 = vmatpush1.msra.mxu0 0.0
    %1997 = vmatprep.subr.mxu0 0.0
    %1998 = vmatpush1.msra.mxu0 0.0
    %1999 = vmatprep.subr.mxu0 0.0
    %2000 = vmatpush1.msra.mxu0 0.0
    %2001 = vmatprep.subr.mxu0 0.0
    %2002 = vmatpush1.msra.mxu0 0.0
    %2003 = vmatprep.subr.mxu0 0.0
    %2004 = vmatpush1.msra.mxu0 0.0
    %2005 = vmatprep.subr.mxu0 0.0
    %2006 = vmatpush1.msra.mxu0 0.0
    %2007 = vmatprep.subr.mxu0 0.0
    %2008 = vmatpush1.msra.mxu0 0.0
    %2009 = vmatprep.subr.mxu0 0.0
    %2010 = vmatpush1.msra.mxu0 0.0
    %2011 = vmatprep.subr.mxu0 0.0
    %2012 = vmatpush1.msra.mxu0 0.0
    %2013 = vmatprep.subr.mxu0 0.0
    %2014 = vmatpush1.msra.mxu0 0.0
    %2015 = vmatprep.subr.mxu0 0.0
    %2016 = vmatpush1.msra.mxu0 0.0
    %2017 = vmatprep.subr.mxu0 0.0
    %2018 = vmatpush1.msra.mxu0 0.0
    %2019 = vmatprep.subr.mxu0 0.0
    %2020 = vmatpush1.msra.mxu0 0.0
    %2021 = vmatprep.subr.mxu0 0.0
    %2022 = vmatpush1.msra.mxu0 0.0
    %2023 = vmatprep.subr.mxu0 0.0
    %2024 = vmatpush1.msra.mxu0 0.0
    %2025 = vmatprep.subr.mxu0 0.0
    %2026 = vmatpush1.msra.mxu0 0.0
    %2027 = vmatprep.subr.mxu0 0.0
    %2028 = vmatpush1.msra.mxu0 0.0
    %2029 = vmatprep.subr.mxu0 0.0
    %2030 = vmatpush1.msra.mxu0 0.0
    %2031 = vmatprep.subr.mxu0 0.0
    %2032 = vmatpush1.msra.mxu0 0.0
    %2033 = vmatprep.mubr.f32.mxu0 0.0
    %2034 = vmatmul.mubr.f32.gmra.mrb[0].mxu0 %v1967
    %v2035 = vpop.f32.mrb[0].mxu0
    %v2036 = vadd.f32 0.0, %v2035
    %v2037 = vpop.f32.mrb[0].mxu0
    %2038 = vdwg.mxu0
    %v2039 = vcombine.low %v1817, %v1963
    %v2041 = vunpack.c.l.s4 1983009808
    %v2042 = vunpack.c.0.s8 %v2041
    %v2043 = vlaneseq
    %v2044 = vshrl.u32 %v2043, 7
    %v2045 = vsub.s32 %v2042, %v2044
    %v2046 = vrot.slane %v2039, %v2045
    %v2047 = vcombine.low %v1890, %v2036
    %v2049 = vunpack.c.l.s4 1983009808
    %v2050 = vunpack.c.0.s8 %v2049
    %v2051 = vlaneseq
    %v2052 = vshrl.u32 %v2051, 7
    %v2053 = vsub.s32 %v2050, %v2052
    %v2054 = vrot.slane %v2047, %v2053
    %v2055 = vcombine.low %v2046, %v2054
    %v2057 = vunpack.c.l.s4 1934713408
    %v2058 = vunpack.c.0.s8 %v2057
    %v2059 = vlaneseq
    %v2060 = vshrl.u32 %v2059, 7
    %v2061 = vsub.s32 %v2058, %v2060
    %v2062 = vrot.slane %v2055, %v2061
    %v2063 = vcombine.high %v2062, 0.0
    %2065 = vrot.lane.b32.xlu0 %v2063, 32
    %v2066 = vpop.permute.xlu0 %2065
    %v2068 = vsel %vm66, %v2062, %v2066
    %v2069 = vld [vmem:[#allocation7 + $0x28] sm:$0xff]
    %v2070 = vld [vmem:[#allocation7 + $0x80] sm:$0xff]
    %v2071 = vld [vmem:[%s3 + $0x3] sm:$0x1]
    %v2072 = vlaneseq
    %v2073 = vshrl.u32 %v2072, 7
    %v2074 = vsub.s32 0, %v2073
    %v2075 = vrot.slane %v2071, %v2074
    %2077 = vbcast.lane.b32.xlu0 %v2075, 256
    %v2078 = vpop.permute.xlu0 %2077
    %s2080 = sor.u32 256, 8
    %2081 = vbcast.lane.b32.xlu0 %v2075, %s2080
    %v2082 = vpop.permute.xlu0 %2081
    %v2084 = vsel %vm387, %v2069, 0
    %v2087 = vsel %vm387, %v2070, 0
    %2089 = vmatprep.subr.mxu0 0.0
    %2090 = vmatpush1.msra.mxu0 %v1148
    %2091 = vmatprep.subr.mxu0 0.0
    %2092 = vmatpush1.msra.mxu0 0.0
    %2093 = vmatprep.subr.mxu0 0.0
    %2094 = vmatpush1.msra.mxu0 0.0
    %2095 = vmatprep.subr.mxu0 0.0
    %2096 = vmatpush1.msra.mxu0 0.0
    %2097 = vmatprep.subr.mxu0 0.0
    %2098 = vmatpush1.msra.mxu0 0.0
    %2099 = vmatprep.subr.mxu0 0.0
    %2100 = vmatpush1.msra.mxu0 0.0
    %2101 = vmatprep.subr.mxu0 0.0
    %2102 = vmatpush1.msra.mxu0 0.0
    %2103 = vmatprep.subr.mxu0 0.0
    %2104 = vmatpush1.msra.mxu0 0.0
    %2105 = vmatprep.subr.mxu0 0.0
    %2106 = vmatpush1.msra.mxu0 0.0
    %2107 = vmatprep.subr.mxu0 0.0
    %2108 = vmatpush1.msra.mxu0 0.0
    %2109 = vmatprep.subr.mxu0 0.0
    %2110 = vmatpush1.msra.mxu0 0.0
    %2111 = vmatprep.subr.mxu0 0.0
    %2112 = vmatpush1.msra.mxu0 0.0
    %2113 = vmatprep.subr.mxu0 0.0
    %2114 = vmatpush1.msra.mxu0 0.0
    %2115 = vmatprep.subr.mxu0 0.0
    %2116 = vmatpush1.msra.mxu0 0.0
    %2117 = vmatprep.subr.mxu0 0.0
    %2118 = vmatpush1.msra.mxu0 0.0
    %2119 = vmatprep.subr.mxu0 0.0
    %2120 = vmatpush1.msra.mxu0 0.0
    %2121 = vmatprep.subr.mxu0 0.0
    %2122 = vmatpush1.msra.mxu0 0.0
    %2123 = vmatprep.subr.mxu0 0.0
    %2124 = vmatpush1.msra.mxu0 0.0
    %2125 = vmatprep.subr.mxu0 0.0
    %2126 = vmatpush1.msra.mxu0 0.0
    %2127 = vmatprep.subr.mxu0 0.0
    %2128 = vmatpush1.msra.mxu0 0.0
    %2129 = vmatprep.subr.mxu0 0.0
    %2130 = vmatpush1.msra.mxu0 0.0
    %2131 = vmatprep.subr.mxu0 0.0
    %2132 = vmatpush1.msra.mxu0 0.0
    %2133 = vmatprep.subr.mxu0 0.0
    %2134 = vmatpush1.msra.mxu0 0.0
    %2135 = vmatprep.subr.mxu0 0.0
    %2136 = vmatpush1.msra.mxu0 0.0
    %2137 = vmatprep.subr.mxu0 0.0
    %2138 = vmatpush1.msra.mxu0 0.0
    %2139 = vmatprep.subr.mxu0 0.0
    %2140 = vmatpush1.msra.mxu0 0.0
    %2141 = vmatprep.subr.mxu0 0.0
    %2142 = vmatpush1.msra.mxu0 0.0
    %2143 = vmatprep.subr.mxu0 0.0
    %2144 = vmatpush1.msra.mxu0 0.0
    %2145 = vmatprep.subr.mxu0 0.0
    %2146 = vmatpush1.msra.mxu0 0.0
    %2147 = vmatprep.subr.mxu0 0.0
    %2148 = vmatpush1.msra.mxu0 0.0
    %2149 = vmatprep.subr.mxu0 0.0
    %2150 = vmatpush1.msra.mxu0 0.0
    %2151 = vmatprep.subr.mxu0 0.0
    %2152 = vmatpush1.msra.mxu0 0.0
    %2153 = vmatprep.mubr.f32.mxu0 0.0
    %2154 = vmatmul.mubr.f32.gmra.mrb[0].mxu0 %v2084
    %v2155 = vpop.f32.mrb[0].mxu0
    %v2156 = vadd.f32 %v2078, %v2155
    %v2157 = vpop.f32.mrb[0].mxu0
    %2158 = vmatprep.mubr.f32.mxu0 0.0
    %2159 = vmatmul.mubr.f32.gmra.mrb[0].mxu0 %v2087
    %v2160 = vpop.f32.mrb[0].mxu0
    %v2161 = vadd.f32 %v2082, %v2160
    %v2162 = vpop.f32.mrb[0].mxu0
    %2163 = vdwg.mxu0
    %2164 = vmatprep.subr.mxu0 0.0
    %2165 = vmatpush1.msra.mxu0 %v1153
    %2166 = vmatprep.subr.mxu0 0.0
    %2167 = vmatpush1.msra.mxu0 0.0
    %2168 = vmatprep.subr.mxu0 0.0
    %2169 = vmatpush1.msra.mxu0 0.0
    %2170 = vmatprep.subr.mxu0 0.0
    %2171 = vmatpush1.msra.mxu0 0.0
    %2172 = vmatprep.subr.mxu0 0.0
    %2173 = vmatpush1.msra.mxu0 0.0
    %2174 = vmatprep.subr.mxu0 0.0
    %2175 = vmatpush1.msra.mxu0 0.0
    %2176 = vmatprep.subr.mxu0 0.0
    %2177 = vmatpush1.msra.mxu0 0.0
    %2178 = vmatprep.subr.mxu0 0.0
    %2179 = vmatpush1.msra.mxu0 0.0
    %2180 = vmatprep.subr.mxu0 0.0
    %2181 = vmatpush1.msra.mxu0 0.0
    %2182 = vmatprep.subr.mxu0 0.0
    %2183 = vmatpush1.msra.mxu0 0.0
    %2184 = vmatprep.subr.mxu0 0.0
    %2185 = vmatpush1.msra.mxu0 0.0
    %2186 = vmatprep.subr.mxu0 0.0
    %2187 = vmatpush1.msra.mxu0 0.0
    %2188 = vmatprep.subr.mxu0 0.0
    %2189 = vmatpush1.msra.mxu0 0.0
    %2190 = vmatprep.subr.mxu0 0.0
    %2191 = vmatpush1.msra.mxu0 0.0
    %2192 = vmatprep.subr.mxu0 0.0
    %2193 = vmatpush1.msra.mxu0 0.0
    %2194 = vmatprep.subr.mxu0 0.0
    %2195 = vmatpush1.msra.mxu0 0.0
    %2196 = vmatprep.subr.mxu0 0.0
    %2197 = vmatpush1.msra.mxu0 0.0
    %2198 = vmatprep.subr.mxu0 0.0
    %2199 = vmatpush1.msra.mxu0 0.0
    %2200 = vmatprep.subr.mxu0 0.0
    %2201 = vmatpush1.msra.mxu0 0.0
    %2202 = vmatprep.subr.mxu0 0.0
    %2203 = vmatpush1.msra.mxu0 0.0
    %2204 = vmatprep.subr.mxu0 0.0
    %2205 = vmatpush1.msra.mxu0 0.0
    %2206 = vmatprep.subr.mxu0 0.0
    %2207 = vmatpush1.msra.mxu0 0.0
    %2208 = vmatprep.subr.mxu0 0.0
    %2209 = vmatpush1.msra.mxu0 0.0
    %2210 = vmatprep.subr.mxu0 0.0
    %2211 = vmatpush1.msra.mxu0 0.0
    %2212 = vmatprep.subr.mxu0 0.0
    %2213 = vmatpush1.msra.mxu0 0.0
    %2214 = vmatprep.subr.mxu0 0.0
    %2215 = vmatpush1.msra.mxu0 0.0
    %2216 = vmatprep.subr.mxu0 0.0
    %2217 = vmatpush1.msra.mxu0 0.0
    %2218 = vmatprep.subr.mxu0 0.0
    %2219 = vmatpush1.msra.mxu0 0.0
    %2220 = vmatprep.subr.mxu0 0.0
    %2221 = vmatpush1.msra.mxu0 0.0
    %2222 = vmatprep.subr.mxu0 0.0
    %2223 = vmatpush1.msra.mxu0 0.0
    %2224 = vmatprep.subr.mxu0 0.0
    %2225 = vmatpush1.msra.mxu0 0.0
    %2226 = vmatprep.subr.mxu0 0.0
    %2227 = vmatpush1.msra.mxu0 0.0
    %2228 = vmatprep.mubr.f32.mxu0 0.0
    %2229 = vmatmul.mubr.f32.gmra.mrb[0].mxu0 %v2084
    %v2230 = vpop.f32.mrb[0].mxu0
    %v2231 = vadd.f32 %v2078, %v2230
    %v2232 = vpop.f32.mrb[0].mxu0
    %2233 = vmatprep.mubr.f32.mxu0 0.0
    %2234 = vmatmul.mubr.f32.gmra.mrb[0].mxu0 %v2087
    %v2235 = vpop.f32.mrb[0].mxu0
    %v2236 = vadd.f32 %v2082, %v2235
    %v2237 = vpop.f32.mrb[0].mxu0
    %2238 = vdwg.mxu0
    %2239 = vmatprep.subr.mxu0 0.0
    %2240 = vmatpush1.msra.mxu0 %v1158
    %2241 = vmatprep.subr.mxu0 0.0
    %2242 = vmatpush1.msra.mxu0 0.0
    %2243 = vmatprep.subr.mxu0 0.0
    %2244 = vmatpush1.msra.mxu0 0.0
    %2245 = vmatprep.subr.mxu0 0.0
    %2246 = vmatpush1.msra.mxu0 0.0
    %2247 = vmatprep.subr.mxu0 0.0
    %2248 = vmatpush1.msra.mxu0 0.0
    %2249 = vmatprep.subr.mxu0 0.0
    %2250 = vmatpush1.msra.mxu0 0.0
    %2251 = vmatprep.subr.mxu0 0.0
    %2252 = vmatpush1.msra.mxu0 0.0
    %2253 = vmatprep.subr.mxu0 0.0
    %2254 = vmatpush1.msra.mxu0 0.0
    %2255 = vmatprep.subr.mxu0 0.0
    %2256 = vmatpush1.msra.mxu0 0.0
    %2257 = vmatprep.subr.mxu0 0.0
    %2258 = vmatpush1.msra.mxu0 0.0
    %2259 = vmatprep.subr.mxu0 0.0
    %2260 = vmatpush1.msra.mxu0 0.0
    %2261 = vmatprep.subr.mxu0 0.0
    %2262 = vmatpush1.msra.mxu0 0.0
    %2263 = vmatprep.subr.mxu0 0.0
    %2264 = vmatpush1.msra.mxu0 0.0
    %2265 = vmatprep.subr.mxu0 0.0
    %2266 = vmatpush1.msra.mxu0 0.0
    %2267 = vmatprep.subr.mxu0 0.0
    %2268 = vmatpush1.msra.mxu0 0.0
    %2269 = vmatprep.subr.mxu0 0.0
    %2270 = vmatpush1.msra.mxu0 0.0
    %2271 = vmatprep.subr.mxu0 0.0
    %2272 = vmatpush1.msra.mxu0 0.0
    %2273 = vmatprep.subr.mxu0 0.0
    %2274 = vmatpush1.msra.mxu0 0.0
    %2275 = vmatprep.subr.mxu0 0.0
    %2276 = vmatpush1.msra.mxu0 0.0
    %2277 = vmatprep.subr.mxu0 0.0
    %2278 = vmatpush1.msra.mxu0 0.0
    %2279 = vmatprep.subr.mxu0 0.0
    %2280 = vmatpush1.msra.mxu0 0.0
    %2281 = vmatprep.subr.mxu0 0.0
    %2282 = vmatpush1.msra.mxu0 0.0
    %2283 = vmatprep.subr.mxu0 0.0
    %2284 = vmatpush1.msra.mxu0 0.0
    %2285 = vmatprep.subr.mxu0 0.0
    %2286 = vmatpush1.msra.mxu0 0.0
    %2287 = vmatprep.subr.mxu0 0.0
    %2288 = vmatpush1.msra.mxu0 0.0
    %2289 = vmatprep.subr.mxu0 0.0
    %2290 = vmatpush1.msra.mxu0 0.0
    %2291 = vmatprep.subr.mxu0 0.0
    %2292 = vmatpush1.msra.mxu0 0.0
    %2293 = vmatprep.subr.mxu0 0.0
    %2294 = vmatpush1.msra.mxu0 0.0
    %2295 = vmatprep.subr.mxu0 0.0
    %2296 = vmatpush1.msra.mxu0 0.0
    %2297 = vmatprep.subr.mxu0 0.0
    %2298 = vmatpush1.msra.mxu0 0.0
    %2299 = vmatprep.subr.mxu0 0.0
    %2300 = vmatpush1.msra.mxu0 0.0
    %2301 = vmatprep.subr.mxu0 0.0
    %2302 = vmatpush1.msra.mxu0 0.0
    %2303 = vmatprep.mubr.f32.mxu0 0.0
    %2304 = vmatmul.mubr.f32.gmra.mrb[0].mxu0 %v2084
    %v2305 = vpop.f32.mrb[0].mxu0
    %v2306 = vadd.f32 %v2078, %v2305
    %v2307 = vpop.f32.mrb[0].mxu0
    %2308 = vmatprep.mubr.f32.mxu0 0.0
    %2309 = vmatmul.mubr.f32.gmra.mrb[0].mxu0 %v2087
    %v2310 = vpop.f32.mrb[0].mxu0
    %v2311 = vadd.f32 %v2082, %v2310
    %v2312 = vpop.f32.mrb[0].mxu0
    %2313 = vdwg.mxu0
    %2314 = vmatprep.subr.mxu0 0.0
    %2315 = vmatpush1.msra.mxu0 %v1163
    %2316 = vmatprep.subr.mxu0 0.0
    %2317 = vmatpush1.msra.mxu0 0.0
    %2318 = vmatprep.subr.mxu0 0.0
    %2319 = vmatpush1.msra.mxu0 0.0
    %2320 = vmatprep.subr.mxu0 0.0
    %2321 = vmatpush1.msra.mxu0 0.0
    %2322 = vmatprep.subr.mxu0 0.0
    %2323 = vmatpush1.msra.mxu0 0.0
    %2324 = vmatprep.subr.mxu0 0.0
    %2325 = vmatpush1.msra.mxu0 0.0
    %2326 = vmatprep.subr.mxu0 0.0
    %2327 = vmatpush1.msra.mxu0 0.0
    %2328 = vmatprep.subr.mxu0 0.0
    %2329 = vmatpush1.msra.mxu0 0.0
    %2330 = vmatprep.subr.mxu0 0.0
    %2331 = vmatpush1.msra.mxu0 0.0
    %2332 = vmatprep.subr.mxu0 0.0
    %2333 = vmatpush1.msra.mxu0 0.0
    %2334 = vmatprep.subr.mxu0 0.0
    %2335 = vmatpush1.msra.mxu0 0.0
    %2336 = vmatprep.subr.mxu0 0.0
    %2337 = vmatpush1.msra.mxu0 0.0
    %2338 = vmatprep.subr.mxu0 0.0
    %2339 = vmatpush1.msra.mxu0 0.0
    %2340 = vmatprep.subr.mxu0 0.0
    %2341 = vmatpush1.msra.mxu0 0.0
    %2342 = vmatprep.subr.mxu0 0.0
    %2343 = vmatpush1.msra.mxu0 0.0
    %2344 = vmatprep.subr.mxu0 0.0
    %2345 = vmatpush1.msra.mxu0 0.0
    %2346 = vmatprep.subr.mxu0 0.0
    %2347 = vmatpush1.msra.mxu0 0.0
    %2348 = vmatprep.subr.mxu0 0.0
    %2349 = vmatpush1.msra.mxu0 0.0
    %2350 = vmatprep.subr.mxu0 0.0
    %2351 = vmatpush1.msra.mxu0 0.0
    %2352 = vmatprep.subr.mxu0 0.0
    %2353 = vmatpush1.msra.mxu0 0.0
    %2354 = vmatprep.subr.mxu0 0.0
    %2355 = vmatpush1.msra.mxu0 0.0
    %2356 = vmatprep.subr.mxu0 0.0
    %2357 = vmatpush1.msra.mxu0 0.0
    %2358 = vmatprep.subr.mxu0 0.0
    %2359 = vmatpush1.msra.mxu0 0.0
    %2360 = vmatprep.subr.mxu0 0.0
    %2361 = vmatpush1.msra.mxu0 0.0
    %2362 = vmatprep.subr.mxu0 0.0
    %2363 = vmatpush1.msra.mxu0 0.0
    %2364 = vmatprep.subr.mxu0 0.0
    %2365 = vmatpush1.msra.mxu0 0.0
    %2366 = vmatprep.subr.mxu0 0.0
    %2367 = vmatpush1.msra.mxu0 0.0
    %2368 = vmatprep.subr.mxu0 0.0
    %2369 = vmatpush1.msra.mxu0 0.0
    %2370 = vmatprep.subr.mxu0 0.0
    %2371 = vmatpush1.msra.mxu0 0.0
    %2372 = vmatprep.subr.mxu0 0.0
    %2373 = vmatpush1.msra.mxu0 0.0
    %2374 = vmatprep.subr.mxu0 0.0
    %2375 = vmatpush1.msra.mxu0 0.0
    %2376 = vmatprep.subr.mxu0 0.0
    %2377 = vmatpush1.msra.mxu0 0.0
    %2378 = vmatprep.mubr.f32.mxu0 0.0
    %2379 = vmatmul.mubr.f32.gmra.mrb[0].mxu0 %v2084
    %v2380 = vpop.f32.mrb[0].mxu0
    %v2381 = vadd.f32 %v2078, %v2380
    %v2382 = vpop.f32.mrb[0].mxu0
    %2383 = vmatprep.mubr.f32.mxu0 0.0
    %2384 = vmatmul.mubr.f32.gmra.mrb[0].mxu0 %v2087
    %v2385 = vpop.f32.mrb[0].mxu0
    %v2386 = vadd.f32 %v2082, %v2385
    %v2387 = vpop.f32.mrb[0].mxu0
    %2388 = vdwg.mxu0
    %v2389 = vmax.f32 %v2156, 0.0
    %v2390 = vmax.f32 %v2161, 0.0
    %v2391 = vmax.f32 %v2231, 0.0
    %v2392 = vmax.f32 %v2236, 0.0
    %v2393 = vmax.f32 %v2306, 0.0
    %v2394 = vmax.f32 %v2311, 0.0
    %v2395 = vmax.f32 %v2381, 0.0
    %v2396 = vmax.f32 %v2386, 0.0
    %v2397 = vlaneseq
    %v2398 = vshrl.u32 %v2397, 7
    %v2399 = vsub.s32 0, %v2398
    %v2400 = vrot.slane %v1261, %v2399
    %s2402 = sor.u32 256, 32
    %2403 = vbcast.lane.b32.xlu0 %v2400, %s2402
    %v2404 = vpop.permute.xlu0 %2403
    %s2406 = sor.u32 256, 40
    %2407 = vbcast.lane.b32.xlu0 %v2400, %s2406
    %v2408 = vpop.permute.xlu0 %2407
    %v2409 = vlaneseq
    %v2410 = vshrl.u32 %v2409, 7
    %v2411 = vsub.s32 1, %v2410
    %v2412 = vrot.slane %v1261, %v2411
    %s2414 = sor.u32 256, 32
    %2415 = vbcast.lane.b32.xlu0 %v2412, %s2414
    %v2416 = vpop.permute.xlu0 %2415
    %s2418 = sor.u32 256, 40
    %2419 = vbcast.lane.b32.xlu0 %v2412, %s2418
    %v2420 = vpop.permute.xlu0 %2419
    %v2421 = vlaneseq
    %v2422 = vshrl.u32 %v2421, 7
    %v2423 = vsub.s32 2, %v2422
    %v2424 = vrot.slane %v1261, %v2423
    %s2426 = sor.u32 256, 32
    %2427 = vbcast.lane.b32.xlu0 %v2424, %s2426
    %v2428 = vpop.permute.xlu0 %2427
    %s2430 = sor.u32 256, 40
    %2431 = vbcast.lane.b32.xlu0 %v2424, %s2430
    %v2432 = vpop.permute.xlu0 %2431
    %v2433 = vlaneseq
    %v2434 = vshrl.u32 %v2433, 7
    %v2435 = vsub.s32 3, %v2434
    %v2436 = vrot.slane %v1261, %v2435
    %s2438 = sor.u32 256, 32
    %2439 = vbcast.lane.b32.xlu0 %v2436, %s2438
    %v2440 = vpop.permute.xlu0 %2439
    %s2442 = sor.u32 256, 40
    %2443 = vbcast.lane.b32.xlu0 %v2436, %s2442
    %v2444 = vpop.permute.xlu0 %2443
    %v2445 = vmul.f32 %v2389, %v2404
    %v2446 = vmul.f32 %v2390, %v2408
    %v2447 = vmul.f32 %v2391, %v2416
    %v2448 = vmul.f32 %v2392, %v2420
    %v2449 = vmul.f32 %v2393, %v2428
    %v2450 = vmul.f32 %v2394, %v2432
    %v2451 = vmul.f32 %v2395, %v2440
    %v2452 = vmul.f32 %v2396, %v2444
    %v2453 = vld [vmem:[#allocation7 + $0x30] sm:$0xff]
    %v2454 = vld [vmem:[#allocation7 + $0x88] sm:$0xff]
    %v2455 = vld [vmem:[%s3 + $0x5] sm:$0x1]
    %v2456 = vlaneseq
    %v2457 = vshrl.u32 %v2456, 7
    %v2458 = vsub.s32 0, %v2457
    %v2459 = vrot.slane %v2455, %v2458
    %2461 = vbcast.lane.b32.xlu0 %v2459, 256
    %v2462 = vpop.permute.xlu0 %2461
    %s2464 = sor.u32 256, 8
    %2465 = vbcast.lane.b32.xlu0 %v2459, %s2464
    %v2466 = vpop.permute.xlu0 %2465
    %v2468 = vsel %vm1168, %v2453, 0
    %v2471 = vsel %vm1168, %v2454, 0
    %2473 = vmatprep.subr.mxu0 0.0
    %2474 = vmatpush1.msra.mxu0 %v2445
    %2475 = vmatprep.subr.mxu0 0.0
    %2476 = vmatpush1.msra.mxu0 %v2446
    %2477 = vmatprep.subr.mxu0 0.0
    %2478 = vmatpush1.msra.mxu0 0.0
    %2479 = vmatprep.subr.mxu0 0.0
    %2480 = vmatpush1.msra.mxu0 0.0
    %2481 = vmatprep.subr.mxu0 0.0
    %2482 = vmatpush1.msra.mxu0 0.0
    %2483 = vmatprep.subr.mxu0 0.0
    %2484 = vmatpush1.msra.mxu0 0.0
    %2485 = vmatprep.subr.mxu0 0.0
    %2486 = vmatpush1.msra.mxu0 0.0
    %2487 = vmatprep.subr.mxu0 0.0
    %2488 = vmatpush1.msra.mxu0 0.0
    %2489 = vmatprep.subr.mxu0 0.0
    %2490 = vmatpush1.msra.mxu0 0.0
    %2491 = vmatprep.subr.mxu0 0.0
    %2492 = vmatpush1.msra.mxu0 0.0
    %2493 = vmatprep.subr.mxu0 0.0
    %2494 = vmatpush1.msra.mxu0 0.0
    %2495 = vmatprep.subr.mxu0 0.0
    %2496 = vmatpush1.msra.mxu0 0.0
    %2497 = vmatprep.subr.mxu0 0.0
    %2498 = vmatpush1.msra.mxu0 0.0
    %2499 = vmatprep.subr.mxu0 0.0
    %2500 = vmatpush1.msra.mxu0 0.0
    %2501 = vmatprep.subr.mxu0 0.0
    %2502 = vmatpush1.msra.mxu0 0.0
    %2503 = vmatprep.subr.mxu0 0.0
    %2504 = vmatpush1.msra.mxu0 0.0
    %2505 = vmatprep.subr.mxu0 0.0
    %2506 = vmatpush1.msra.mxu0 0.0
    %2507 = vmatprep.subr.mxu0 0.0
    %2508 = vmatpush1.msra.mxu0 0.0
    %2509 = vmatprep.subr.mxu0 0.0
    %2510 = vmatpush1.msra.mxu0 0.0
    %2511 = vmatprep.subr.mxu0 0.0
    %2512 = vmatpush1.msra.mxu0 0.0
    %2513 = vmatprep.subr.mxu0 0.0
    %2514 = vmatpush1.msra.mxu0 0.0
    %2515 = vmatprep.subr.mxu0 0.0
    %2516 = vmatpush1.msra.mxu0 0.0
    %2517 = vmatprep.subr.mxu0 0.0
    %2518 = vmatpush1.msra.mxu0 0.0
    %2519 = vmatprep.subr.mxu0 0.0
    %2520 = vmatpush1.msra.mxu0 0.0
    %2521 = vmatprep.subr.mxu0 0.0
    %2522 = vmatpush1.msra.mxu0 0.0
    %2523 = vmatprep.subr.mxu0 0.0
    %2524 = vmatpush1.msra.mxu0 0.0
    %2525 = vmatprep.subr.mxu0 0.0
    %2526 = vmatpush1.msra.mxu0 0.0
    %2527 = vmatprep.subr.mxu0 0.0
    %2528 = vmatpush1.msra.mxu0 0.0
    %2529 = vmatprep.subr.mxu0 0.0
    %2530 = vmatpush1.msra.mxu0 0.0
    %2531 = vmatprep.subr.mxu0 0.0
    %2532 = vmatpush1.msra.mxu0 0.0
    %2533 = vmatprep.subr.mxu0 0.0
    %2534 = vmatpush1.msra.mxu0 0.0
    %2535 = vmatprep.subr.mxu0 0.0
    %2536 = vmatpush1.msra.mxu0 0.0
    %2537 = vmatprep.mubr.f32.mxu0 0.0
    %2538 = vmatmul.mubr.f32.gmra.mrb[0].mxu0 %v2468
    %v2539 = vpop.f32.mrb[0].mxu0
    %v2540 = vadd.f32 %v2462, %v2539
    %v2541 = vpop.f32.mrb[0].mxu0
    %2542 = vmatprep.mubr.f32.mxu0 0.0
    %2543 = vmatmul.mubr.f32.gmra.mrb[0].mxu0 %v2471
    %v2544 = vpop.f32.mrb[0].mxu0
    %v2545 = vadd.f32 %v2466, %v2544
    %v2546 = vpop.f32.mrb[0].mxu0
    %2547 = vdwg.mxu0
    %2548 = vmatprep.subr.mxu0 0.0
    %2549 = vmatpush1.msra.mxu0 %v2447
    %2550 = vmatprep.subr.mxu0 0.0
    %2551 = vmatpush1.msra.mxu0 %v2448
    %2552 = vmatprep.subr.mxu0 0.0
    %2553 = vmatpush1.msra.mxu0 0.0
    %2554 = vmatprep.subr.mxu0 0.0
    %2555 = vmatpush1.msra.mxu0 0.0
    %2556 = vmatprep.subr.mxu0 0.0
    %2557 = vmatpush1.msra.mxu0 0.0
    %2558 = vmatprep.subr.mxu0 0.0
    %2559 = vmatpush1.msra.mxu0 0.0
    %2560 = vmatprep.subr.mxu0 0.0
    %2561 = vmatpush1.msra.mxu0 0.0
    %2562 = vmatprep.subr.mxu0 0.0
    %2563 = vmatpush1.msra.mxu0 0.0
    %2564 = vmatprep.subr.mxu0 0.0
    %2565 = vmatpush1.msra.mxu0 0.0
    %2566 = vmatprep.subr.mxu0 0.0
    %2567 = vmatpush1.msra.mxu0 0.0
    %2568 = vmatprep.subr.mxu0 0.0
    %2569 = vmatpush1.msra.mxu0 0.0
    %2570 = vmatprep.subr.mxu0 0.0
    %2571 = vmatpush1.msra.mxu0 0.0
    %2572 = vmatprep.subr.mxu0 0.0
    %2573 = vmatpush1.msra.mxu0 0.0
    %2574 = vmatprep.subr.mxu0 0.0
    %2575 = vmatpush1.msra.mxu0 0.0
    %2576 = vmatprep.subr.mxu0 0.0
    %2577 = vmatpush1.msra.mxu0 0.0
    %2578 = vmatprep.subr.mxu0 0.0
    %2579 = vmatpush1.msra.mxu0 0.0
    %2580 = vmatprep.subr.mxu0 0.0
    %2581 = vmatpush1.msra.mxu0 0.0
    %2582 = vmatprep.subr.mxu0 0.0
    %2583 = vmatpush1.msra.mxu0 0.0
    %2584 = vmatprep.subr.mxu0 0.0
    %2585 = vmatpush1.msra.mxu0 0.0
    %2586 = vmatprep.subr.mxu0 0.0
    %2587 = vmatpush1.msra.mxu0 0.0
    %2588 = vmatprep.subr.mxu0 0.0
    %2589 = vmatpush1.msra.mxu0 0.0
    %2590 = vmatprep.subr.mxu0 0.0
    %2591 = vmatpush1.msra.mxu0 0.0
    %2592 = vmatprep.subr.mxu0 0.0
    %2593 = vmatpush1.msra.mxu0 0.0
    %2594 = vmatprep.subr.mxu0 0.0
    %2595 = vmatpush1.msra.mxu0 0.0
    %2596 = vmatprep.subr.mxu0 0.0
    %2597 = vmatpush1.msra.mxu0 0.0
    %2598 = vmatprep.subr.mxu0 0.0
    %2599 = vmatpush1.msra.mxu0 0.0
    %2600 = vmatprep.subr.mxu0 0.0
    %2601 = vmatpush1.msra.mxu0 0.0
    %2602 = vmatprep.subr.mxu0 0.0
    %2603 = vmatpush1.msra.mxu0 0.0
    %2604 = vmatprep.subr.mxu0 0.0
    %2605 = vmatpush1.msra.mxu0 0.0
    %2606 = vmatprep.subr.mxu0 0.0
    %2607 = vmatpush1.msra.mxu0 0.0
    %2608 = vmatprep.subr.mxu0 0.0
    %2609 = vmatpush1.msra.mxu0 0.0
    %2610 = vmatprep.subr.mxu0 0.0
    %2611 = vmatpush1.msra.mxu0 0.0
    %2612 = vmatprep.mubr.f32.mxu0 0.0
    %2613 = vmatmul.mubr.f32.gmra.mrb[0].mxu0 %v2468
    %v2614 = vpop.f32.mrb[0].mxu0
    %v2615 = vadd.f32 %v2462, %v2614
    %v2616 = vpop.f32.mrb[0].mxu0
    %2617 = vmatprep.mubr.f32.mxu0 0.0
    %2618 = vmatmul.mubr.f32.gmra.mrb[0].mxu0 %v2471
    %v2619 = vpop.f32.mrb[0].mxu0
    %v2620 = vadd.f32 %v2466, %v2619
    %v2621 = vpop.f32.mrb[0].mxu0
    %2622 = vdwg.mxu0
    %2623 = vmatprep.subr.mxu0 0.0
    %2624 = vmatpush1.msra.mxu0 %v2449
    %2625 = vmatprep.subr.mxu0 0.0
    %2626 = vmatpush1.msra.mxu0 %v2450
    %2627 = vmatprep.subr.mxu0 0.0
    %2628 = vmatpush1.msra.mxu0 0.0
    %2629 = vmatprep.subr.mxu0 0.0
    %2630 = vmatpush1.msra.mxu0 0.0
    %2631 = vmatprep.subr.mxu0 0.0
    %2632 = vmatpush1.msra.mxu0 0.0
    %2633 = vmatprep.subr.mxu0 0.0
    %2634 = vmatpush1.msra.mxu0 0.0
    %2635 = vmatprep.subr.mxu0 0.0
    %2636 = vmatpush1.msra.mxu0 0.0
    %2637 = vmatprep.subr.mxu0 0.0
    %2638 = vmatpush1.msra.mxu0 0.0
    %2639 = vmatprep.subr.mxu0 0.0
    %2640 = vmatpush1.msra.mxu0 0.0
    %2641 = vmatprep.subr.mxu0 0.0
    %2642 = vmatpush1.msra.mxu0 0.0
    %2643 = vmatprep.subr.mxu0 0.0
    %2644 = vmatpush1.msra.mxu0 0.0
    %2645 = vmatprep.subr.mxu0 0.0
    %2646 = vmatpush1.msra.mxu0 0.0
    %2647 = vmatprep.subr.mxu0 0.0
    %2648 = vmatpush1.msra.mxu0 0.0
    %2649 = vmatprep.subr.mxu0 0.0
    %2650 = vmatpush1.msra.mxu0 0.0
    %2651 = vmatprep.subr.mxu0 0.0
    %2652 = vmatpush1.msra.mxu0 0.0
    %2653 = vmatprep.subr.mxu0 0.0
    %2654 = vmatpush1.msra.mxu0 0.0
    %2655 = vmatprep.subr.mxu0 0.0
    %2656 = vmatpush1.msra.mxu0 0.0
    %2657 = vmatprep.subr.mxu0 0.0
    %2658 = vmatpush1.msra.mxu0 0.0
    %2659 = vmatprep.subr.mxu0 0.0
    %2660 = vmatpush1.msra.mxu0 0.0
    %2661 = vmatprep.subr.mxu0 0.0
    %2662 = vmatpush1.msra.mxu0 0.0
    %2663 = vmatprep.subr.mxu0 0.0
    %2664 = vmatpush1.msra.mxu0 0.0
    %2665 = vmatprep.subr.mxu0 0.0
    %2666 = vmatpush1.msra.mxu0 0.0
    %2667 = vmatprep.subr.mxu0 0.0
    %2668 = vmatpush1.msra.mxu0 0.0
    %2669 = vmatprep.subr.mxu0 0.0
    %2670 = vmatpush1.msra.mxu0 0.0
    %2671 = vmatprep.subr.mxu0 0.0
    %2672 = vmatpush1.msra.mxu0 0.0
    %2673 = vmatprep.subr.mxu0 0.0
    %2674 = vmatpush1.msra.mxu0 0.0
    %2675 = vmatprep.subr.mxu0 0.0
    %2676 = vmatpush1.msra.mxu0 0.0
    %2677 = vmatprep.subr.mxu0 0.0
    %2678 = vmatpush1.msra.mxu0 0.0
    %2679 = vmatprep.subr.mxu0 0.0
    %2680 = vmatpush1.msra.mxu0 0.0
    %2681 = vmatprep.subr.mxu0 0.0
    %2682 = vmatpush1.msra.mxu0 0.0
    %2683 = vmatprep.subr.mxu0 0.0
    %2684 = vmatpush1.msra.mxu0 0.0
    %2685 = vmatprep.subr.mxu0 0.0
    %2686 = vmatpush1.msra.mxu0 0.0
    %2687 = vmatprep.mubr.f32.mxu0 0.0
    %2688 = vmatmul.mubr.f32.gmra.mrb[0].mxu0 %v2468
    %v2689 = vpop.f32.mrb[0].mxu0
    %v2690 = vadd.f32 %v2462, %v2689
    %v2691 = vpop.f32.mrb[0].mxu0
    %2692 = vmatprep.mubr.f32.mxu0 0.0
    %2693 = vmatmul.mubr.f32.gmra.mrb[0].mxu0 %v2471
    %v2694 = vpop.f32.mrb[0].mxu0
    %v2695 = vadd.f32 %v2466, %v2694
    %v2696 = vpop.f32.mrb[0].mxu0
    %2697 = vdwg.mxu0
    %2698 = vmatprep.subr.mxu0 0.0
    %2699 = vmatpush1.msra.mxu0 %v2451
    %2700 = vmatprep.subr.mxu0 0.0
    %2701 = vmatpush1.msra.mxu0 %v2452
    %2702 = vmatprep.subr.mxu0 0.0
    %2703 = vmatpush1.msra.mxu0 0.0
    %2704 = vmatprep.subr.mxu0 0.0
    %2705 = vmatpush1.msra.mxu0 0.0
    %2706 = vmatprep.subr.mxu0 0.0
    %2707 = vmatpush1.msra.mxu0 0.0
    %2708 = vmatprep.subr.mxu0 0.0
    %2709 = vmatpush1.msra.mxu0 0.0
    %2710 = vmatprep.subr.mxu0 0.0
    %2711 = vmatpush1.msra.mxu0 0.0
    %2712 = vmatprep.subr.mxu0 0.0
    %2713 = vmatpush1.msra.mxu0 0.0
    %2714 = vmatprep.subr.mxu0 0.0
    %2715 = vmatpush1.msra.mxu0 0.0
    %2716 = vmatprep.subr.mxu0 0.0
    %2717 = vmatpush1.msra.mxu0 0.0
    %2718 = vmatprep.subr.mxu0 0.0
    %2719 = vmatpush1.msra.mxu0 0.0
    %2720 = vmatprep.subr.mxu0 0.0
    %2721 = vmatpush1.msra.mxu0 0.0
    %2722 = vmatprep.subr.mxu0 0.0
    %2723 = vmatpush1.msra.mxu0 0.0
    %2724 = vmatprep.subr.mxu0 0.0
    %2725 = vmatpush1.msra.mxu0 0.0
    %2726 = vmatprep.subr.mxu0 0.0
    %2727 = vmatpush1.msra.mxu0 0.0
    %2728 = vmatprep.subr.mxu0 0.0
    %2729 = vmatpush1.msra.mxu0 0.0
    %2730 = vmatprep.subr.mxu0 0.0
    %2731 = vmatpush1.msra.mxu0 0.0
    %2732 = vmatprep.subr.mxu0 0.0
    %2733 = vmatpush1.msra.mxu0 0.0
    %2734 = vmatprep.subr.mxu0 0.0
    %2735 = vmatpush1.msra.mxu0 0.0
    %2736 = vmatprep.subr.mxu0 0.0
    %2737 = vmatpush1.msra.mxu0 0.0
    %2738 = vmatprep.subr.mxu0 0.0
    %2739 = vmatpush1.msra.mxu0 0.0
    %2740 = vmatprep.subr.mxu0 0.0
    %2741 = vmatpush1.msra.mxu0 0.0
    %2742 = vmatprep.subr.mxu0 0.0
    %2743 = vmatpush1.msra.mxu0 0.0
    %2744 = vmatprep.subr.mxu0 0.0
    %2745 = vmatpush1.msra.mxu0 0.0
    %2746 = vmatprep.subr.mxu0 0.0
    %2747 = vmatpush1.msra.mxu0 0.0
    %2748 = vmatprep.subr.mxu0 0.0
    %2749 = vmatpush1.msra.mxu0 0.0
    %2750 = vmatprep.subr.mxu0 0.0
    %2751 = vmatpush1.msra.mxu0 0.0
    %2752 = vmatprep.subr.mxu0 0.0
    %2753 = vmatpush1.msra.mxu0 0.0
    %2754 = vmatprep.subr.mxu0 0.0
    %2755 = vmatpush1.msra.mxu0 0.0
    %2756 = vmatprep.subr.mxu0 0.0
    %2757 = vmatpush1.msra.mxu0 0.0
    %2758 = vmatprep.subr.mxu0 0.0
    %2759 = vmatpush1.msra.mxu0 0.0
    %2760 = vmatprep.subr.mxu0 0.0
    %2761 = vmatpush1.msra.mxu0 0.0
    %2762 = vmatprep.mubr.f32.mxu0 0.0
    %2763 = vmatmul.mubr.f32.gmra.mrb[0].mxu0 %v2468
    %v2764 = vpop.f32.mrb[0].mxu0
    %v2765 = vadd.f32 %v2462, %v2764
    %v2766 = vpop.f32.mrb[0].mxu0
    %2767 = vmatprep.mubr.f32.mxu0 0.0
    %2768 = vmatmul.mubr.f32.gmra.mrb[0].mxu0 %v2471
    %v2769 = vpop.f32.mrb[0].mxu0
    %v2770 = vadd.f32 %v2466, %v2769
    %v2771 = vpop.f32.mrb[0].mxu0
    %2772 = vdwg.mxu0
    %v2773 = vsel %vm66, %v2540, -inf
    %2774 = vmax.xlane.f32.xlu0 %v2773
    %v2775 = vpop.xlane.xlu0 %2774
    %v2776 = vsel %vm66, %v2545, -inf
    %2777 = vmax.xlane.f32.xlu0 %v2776
    %v2778 = vpop.xlane.xlu0 %2777
    %v2779 = vsel %vm66, %v2615, -inf
    %2780 = vmax.xlane.f32.xlu0 %v2779
    %v2781 = vpop.xlane.xlu0 %2780
    %v2782 = vsel %vm66, %v2620, -inf
    %2783 = vmax.xlane.f32.xlu0 %v2782
    %v2784 = vpop.xlane.xlu0 %2783
    %v2785 = vsel %vm66, %v2690, -inf
    %2786 = vmax.xlane.f32.xlu0 %v2785
    %v2787 = vpop.xlane.xlu0 %2786
    %v2788 = vsel %vm66, %v2695, -inf
    %2789 = vmax.xlane.f32.xlu0 %v2788
    %v2790 = vpop.xlane.xlu0 %2789
    %v2791 = vsel %vm66, %v2765, -inf
    %2792 = vmax.xlane.f32.xlu0 %v2791
    %v2793 = vpop.xlane.xlu0 %2792
    %v2794 = vsel %vm66, %v2770, -inf
    %2795 = vmax.xlane.f32.xlu0 %v2794
    %v2796 = vpop.xlane.xlu0 %2795
    %v2797 = vsub.f32 %v2540, %v2775
    %v2798 = vsub.f32 %v2545, %v2778
    %v2799 = vsub.f32 %v2615, %v2781
    %v2800 = vsub.f32 %v2620, %v2784
    %v2801 = vsub.f32 %v2690, %v2787
    %v2802 = vsub.f32 %v2695, %v2790
    %v2803 = vsub.f32 %v2765, %v2793
    %v2804 = vsub.f32 %v2770, %v2796
    %v2805 = vmul.f32 %v2797, 1.442695
    %v2806 = vpow.pop %v2805
    %v2807 = vmul.f32 %v2798, 1.442695
    %v2808 = vpow.pop %v2807
    %v2809 = vmul.f32 %v2799, 1.442695
    %v2810 = vpow.pop %v2809
    %v2811 = vmul.f32 %v2800, 1.442695
    %v2812 = vpow.pop %v2811
    %v2813 = vmul.f32 %v2801, 1.442695
    %v2814 = vpow.pop %v2813
    %v2815 = vmul.f32 %v2802, 1.442695
    %v2816 = vpow.pop %v2815
    %v2817 = vmul.f32 %v2803, 1.442695
    %v2818 = vpow.pop %v2817
    %v2819 = vmul.f32 %v2804, 1.442695
    %v2820 = vpow.pop %v2819
    %v2821 = vsel %vm66, %v2806, 0.0
    %2822 = vadd.xlane.f32.xlu0 %v2821
    %v2823 = vpop.xlane.xlu0 %2822
    %v2824 = vsel %vm66, %v2808, 0.0
    %2825 = vadd.xlane.f32.xlu0 %v2824
    %v2826 = vpop.xlane.xlu0 %2825
    %v2827 = vsel %vm66, %v2810, 0.0
    %2828 = vadd.xlane.f32.xlu0 %v2827
    %v2829 = vpop.xlane.xlu0 %2828
    %v2830 = vsel %vm66, %v2812, 0.0
    %2831 = vadd.xlane.f32.xlu0 %v2830
    %v2832 = vpop.xlane.xlu0 %2831
    %v2833 = vsel %vm66, %v2814, 0.0
    %2834 = vadd.xlane.f32.xlu0 %v2833
    %v2835 = vpop.xlane.xlu0 %2834
    %v2836 = vsel %vm66, %v2816, 0.0
    %2837 = vadd.xlane.f32.xlu0 %v2836
    %v2838 = vpop.xlane.xlu0 %2837
    %v2839 = vsel %vm66, %v2818, 0.0
    %2840 = vadd.xlane.f32.xlu0 %v2839
    %v2841 = vpop.xlane.xlu0 %2840
    %v2842 = vsel %vm66, %v2820, 0.0
    %2843 = vadd.xlane.f32.xlu0 %v2842
    %v2844 = vpop.xlane.xlu0 %2843
    %v2845 = vrcp.pop %v2823
    %v2846 = vrcp.pop %v2826
    %v2847 = vrcp.pop %v2829
    %v2848 = vrcp.pop %v2832
    %v2849 = vrcp.pop %v2835
    %v2850 = vrcp.pop %v2838
    %v2851 = vrcp.pop %v2841
    %v2852 = vrcp.pop %v2844
    %v2853 = vmul.f32 %v2806, %v2845
    %v2854 = vmul.f32 %v2808, %v2846
    %v2855 = vmul.f32 %v2810, %v2847
    %v2856 = vmul.f32 %v2812, %v2848
    %v2857 = vmul.f32 %v2814, %v2849
    %v2858 = vmul.f32 %v2816, %v2850
    %v2859 = vmul.f32 %v2818, %v2851
    %v2860 = vmul.f32 %v2820, %v2852
    %v2862 = vsel %vm66, %v2853, 0
    %v2865 = vsel %vm66, %v2854, 0
    %2867 = vmatprep.subr.mxu0 0.0
    %2868 = vmatpush1.xpose.msra.mxu0 %v2862
    %2869 = vmatprep.subr.mxu0 0.0
    %2870 = vmatpush1.xpose.msra.mxu0 %v2865
    %2871 = vmatprep.subr.mxu0 0.0
    %2872 = vmatpush1.xpose.msra.mxu0 0.0
    %2873 = vmatprep.subr.mxu0 0.0
    %2874 = vmatpush1.xpose.msra.mxu0 0.0
    %2875 = vmatprep.subr.mxu0 0.0
    %2876 = vmatpush1.xpose.msra.mxu0 0.0
    %2877 = vmatprep.subr.mxu0 0.0
    %2878 = vmatpush1.xpose.msra.mxu0 0.0
    %2879 = vmatprep.subr.mxu0 0.0
    %2880 = vmatpush1.xpose.msra.mxu0 0.0
    %2881 = vmatprep.subr.mxu0 0.0
    %2882 = vmatpush1.xpose.msra.mxu0 0.0
    %2883 = vmatprep.subr.mxu0 0.0
    %2884 = vmatpush1.xpose.msra.mxu0 0.0
    %2885 = vmatprep.subr.mxu0 0.0
    %2886 = vmatpush1.xpose.msra.mxu0 0.0
    %2887 = vmatprep.subr.mxu0 0.0
    %2888 = vmatpush1.xpose.msra.mxu0 0.0
    %2889 = vmatprep.subr.mxu0 0.0
    %2890 = vmatpush1.xpose.msra.mxu0 0.0
    %2891 = vmatprep.subr.mxu0 0.0
    %2892 = vmatpush1.xpose.msra.mxu0 0.0
    %2893 = vmatprep.subr.mxu0 0.0
    %2894 = vmatpush1.xpose.msra.mxu0 0.0
    %2895 = vmatprep.subr.mxu0 0.0
    %2896 = vmatpush1.xpose.msra.mxu0 0.0
    %2897 = vmatprep.subr.mxu0 0.0
    %2898 = vmatpush1.xpose.msra.mxu0 0.0
    %2899 = vmatprep.subr.mxu0 0.0
    %2900 = vmatpush1.xpose.msra.mxu0 0.0
    %2901 = vmatprep.subr.mxu0 0.0
    %2902 = vmatpush1.xpose.msra.mxu0 0.0
    %2903 = vmatprep.subr.mxu0 0.0
    %2904 = vmatpush1.xpose.msra.mxu0 0.0
    %2905 = vmatprep.subr.mxu0 0.0
    %2906 = vmatpush1.xpose.msra.mxu0 0.0
    %2907 = vmatprep.subr.mxu0 0.0
    %2908 = vmatpush1.xpose.msra.mxu0 0.0
    %2909 = vmatprep.subr.mxu0 0.0
    %2910 = vmatpush1.xpose.msra.mxu0 0.0
    %2911 = vmatprep.subr.mxu0 0.0
    %2912 = vmatpush1.xpose.msra.mxu0 0.0
    %2913 = vmatprep.subr.mxu0 0.0
    %2914 = vmatpush1.xpose.msra.mxu0 0.0
    %2915 = vmatprep.subr.mxu0 0.0
    %2916 = vmatpush1.xpose.msra.mxu0 0.0
    %2917 = vmatprep.subr.mxu0 0.0
    %2918 = vmatpush1.xpose.msra.mxu0 0.0
    %2919 = vmatprep.subr.mxu0 0.0
    %2920 = vmatpush1.xpose.msra.mxu0 0.0
    %2921 = vmatprep.subr.mxu0 0.0
    %2922 = vmatpush1.xpose.msra.mxu0 0.0
    %2923 = vmatprep.subr.mxu0 0.0
    %2924 = vmatpush1.xpose.msra.mxu0 0.0
    %2925 = vmatprep.subr.mxu0 0.0
    %2926 = vmatpush1.xpose.msra.mxu0 0.0
    %2927 = vmatprep.subr.mxu0 0.0
    %2928 = vmatpush1.xpose.msra.mxu0 0.0
    %2929 = vmatprep.subr.mxu0 0.0
    %2930 = vmatpush1.xpose.msra.mxu0 0.0
    %2931 = vmatprep.mubr.f32.mxu0 0.0
    %2932 = vmatmul.mubr.f32.gmra.mrb[0].mxu0 %v1285
    %v2933 = vpop.f32.mrb[0].mxu0
    %v2934 = vadd.f32 0.0, %v2933
    %v2935 = vpop.f32.mrb[0].mxu0
    %2936 = vdwg.mxu0
    %v2938 = vsel %vm66, %v2855, 0
    %v2941 = vsel %vm66, %v2856, 0
    %2943 = vmatprep.subr.mxu0 0.0
    %2944 = vmatpush1.xpose.msra.mxu0 %v2938
    %2945 = vmatprep.subr.mxu0 0.0
    %2946 = vmatpush1.xpose.msra.mxu0 %v2941
    %2947 = vmatprep.subr.mxu0 0.0
    %2948 = vmatpush1.xpose.msra.mxu0 0.0
    %2949 = vmatprep.subr.mxu0 0.0
    %2950 = vmatpush1.xpose.msra.mxu0 0.0
    %2951 = vmatprep.subr.mxu0 0.0
    %2952 = vmatpush1.xpose.msra.mxu0 0.0
    %2953 = vmatprep.subr.mxu0 0.0
    %2954 = vmatpush1.xpose.msra.mxu0 0.0
    %2955 = vmatprep.subr.mxu0 0.0
    %2956 = vmatpush1.xpose.msra.mxu0 0.0
    %2957 = vmatprep.subr.mxu0 0.0
    %2958 = vmatpush1.xpose.msra.mxu0 0.0
    %2959 = vmatprep.subr.mxu0 0.0
    %2960 = vmatpush1.xpose.msra.mxu0 0.0
    %2961 = vmatprep.subr.mxu0 0.0
    %2962 = vmatpush1.xpose.msra.mxu0 0.0
    %2963 = vmatprep.subr.mxu0 0.0
    %2964 = vmatpush1.xpose.msra.mxu0 0.0
    %2965 = vmatprep.subr.mxu0 0.0
    %2966 = vmatpush1.xpose.msra.mxu0 0.0
    %2967 = vmatprep.subr.mxu0 0.0
    %2968 = vmatpush1.xpose.msra.mxu0 0.0
    %2969 = vmatprep.subr.mxu0 0.0
    %2970 = vmatpush1.xpose.msra.mxu0 0.0
    %2971 = vmatprep.subr.mxu0 0.0
    %2972 = vmatpush1.xpose.msra.mxu0 0.0
    %2973 = vmatprep.subr.mxu0 0.0
    %2974 = vmatpush1.xpose.msra.mxu0 0.0
    %2975 = vmatprep.subr.mxu0 0.0
    %2976 = vmatpush1.xpose.msra.mxu0 0.0
    %2977 = vmatprep.subr.mxu0 0.0
    %2978 = vmatpush1.xpose.msra.mxu0 0.0
    %2979 = vmatprep.subr.mxu0 0.0
    %2980 = vmatpush1.xpose.msra.mxu0 0.0
    %2981 = vmatprep.subr.mxu0 0.0
    %2982 = vmatpush1.xpose.msra.mxu0 0.0
    %2983 = vmatprep.subr.mxu0 0.0
    %2984 = vmatpush1.xpose.msra.mxu0 0.0
    %2985 = vmatprep.subr.mxu0 0.0
    %2986 = vmatpush1.xpose.msra.mxu0 0.0
    %2987 = vmatprep.subr.mxu0 0.0
    %2988 = vmatpush1.xpose.msra.mxu0 0.0
    %2989 = vmatprep.subr.mxu0 0.0
    %2990 = vmatpush1.xpose.msra.mxu0 0.0
    %2991 = vmatprep.subr.mxu0 0.0
    %2992 = vmatpush1.xpose.msra.mxu0 0.0
    %2993 = vmatprep.subr.mxu0 0.0
    %2994 = vmatpush1.xpose.msra.mxu0 0.0
    %2995 = vmatprep.subr.mxu0 0.0
    %2996 = vmatpush1.xpose.msra.mxu0 0.0
    %2997 = vmatprep.subr.mxu0 0.0
    %2998 = vmatpush1.xpose.msra.mxu0 0.0
    %2999 = vmatprep.subr.mxu0 0.0
    %3000 = vmatpush1.xpose.msra.mxu0 0.0
    %3001 = vmatprep.subr.mxu0 0.0
    %3002 = vmatpush1.xpose.msra.mxu0 0.0
    %3003 = vmatprep.subr.mxu0 0.0
    %3004 = vmatpush1.xpose.msra.mxu0 0.0
    %3005 = vmatprep.subr.mxu0 0.0
    %3006 = vmatpush1.xpose.msra.mxu0 0.0
    %3007 = vmatprep.mubr.f32.mxu0 0.0
    %3008 = vmatmul.mubr.f32.gmra.mrb[0].mxu0 %v1288
    %v3009 = vpop.f32.mrb[0].mxu0
    %v3010 = vadd.f32 0.0, %v3009
    %v3011 = vpop.f32.mrb[0].mxu0
    %3012 = vdwg.mxu0
    %v3014 = vsel %vm66, %v2857, 0
    %v3017 = vsel %vm66, %v2858, 0
    %3019 = vmatprep.subr.mxu0 0.0
    %3020 = vmatpush1.xpose.msra.mxu0 %v3014
    %3021 = vmatprep.subr.mxu0 0.0
    %3022 = vmatpush1.xpose.msra.mxu0 %v3017
    %3023 = vmatprep.subr.mxu0 0.0
    %3024 = vmatpush1.xpose.msra.mxu0 0.0
    %3025 = vmatprep.subr.mxu0 0.0
    %3026 = vmatpush1.xpose.msra.mxu0 0.0
    %3027 = vmatprep.subr.mxu0 0.0
    %3028 = vmatpush1.xpose.msra.mxu0 0.0
    %3029 = vmatprep.subr.mxu0 0.0
    %3030 = vmatpush1.xpose.msra.mxu0 0.0
    %3031 = vmatprep.subr.mxu0 0.0
    %3032 = vmatpush1.xpose.msra.mxu0 0.0
    %3033 = vmatprep.subr.mxu0 0.0
    %3034 = vmatpush1.xpose.msra.mxu0 0.0
    %3035 = vmatprep.subr.mxu0 0.0
    %3036 = vmatpush1.xpose.msra.mxu0 0.0
    %3037 = vmatprep.subr.mxu0 0.0
    %3038 = vmatpush1.xpose.msra.mxu0 0.0
    %3039 = vmatprep.subr.mxu0 0.0
    %3040 = vmatpush1.xpose.msra.mxu0 0.0
    %3041 = vmatprep.subr.mxu0 0.0
    %3042 = vmatpush1.xpose.msra.mxu0 0.0
    %3043 = vmatprep.subr.mxu0 0.0
    %3044 = vmatpush1.xpose.msra.mxu0 0.0
    %3045 = vmatprep.subr.mxu0 0.0
    %3046 = vmatpush1.xpose.msra.mxu0 0.0
    %3047 = vmatprep.subr.mxu0 0.0
    %3048 = vmatpush1.xpose.msra.mxu0 0.0
    %3049 = vmatprep.subr.mxu0 0.0
    %3050 = vmatpush1.xpose.msra.mxu0 0.0
    %3051 = vmatprep.subr.mxu0 0.0
    %3052 = vmatpush1.xpose.msra.mxu0 0.0
    %3053 = vmatprep.subr.mxu0 0.0
    %3054 = vmatpush1.xpose.msra.mxu0 0.0
    %3055 = vmatprep.subr.mxu0 0.0
    %3056 = vmatpush1.xpose.msra.mxu0 0.0
    %3057 = vmatprep.subr.mxu0 0.0
    %3058 = vmatpush1.xpose.msra.mxu0 0.0
    %3059 = vmatprep.subr.mxu0 0.0
    %3060 = vmatpush1.xpose.msra.mxu0 0.0
    %3061 = vmatprep.subr.mxu0 0.0
    %3062 = vmatpush1.xpose.msra.mxu0 0.0
    %3063 = vmatprep.subr.mxu0 0.0
    %3064 = vmatpush1.xpose.msra.mxu0 0.0
    %3065 = vmatprep.subr.mxu0 0.0
    %3066 = vmatpush1.xpose.msra.mxu0 0.0
    %3067 = vmatprep.subr.mxu0 0.0
    %3068 = vmatpush1.xpose.msra.mxu0 0.0
    %3069 = vmatprep.subr.mxu0 0.0
    %3070 = vmatpush1.xpose.msra.mxu0 0.0
    %3071 = vmatprep.subr.mxu0 0.0
    %3072 = vmatpush1.xpose.msra.mxu0 0.0
    %3073 = vmatprep.subr.mxu0 0.0
    %3074 = vmatpush1.xpose.msra.mxu0 0.0
    %3075 = vmatprep.subr.mxu0 0.0
    %3076 = vmatpush1.xpose.msra.mxu0 0.0
    %3077 = vmatprep.subr.mxu0 0.0
    %3078 = vmatpush1.xpose.msra.mxu0 0.0
    %3079 = vmatprep.subr.mxu0 0.0
    %3080 = vmatpush1.xpose.msra.mxu0 0.0
    %3081 = vmatprep.subr.mxu0 0.0
    %3082 = vmatpush1.xpose.msra.mxu0 0.0
    %3083 = vmatprep.mubr.f32.mxu0 0.0
    %3084 = vmatmul.mubr.f32.gmra.mrb[0].mxu0 %v1291
    %v3085 = vpop.f32.mrb[0].mxu0
    %v3086 = vadd.f32 0.0, %v3085
    %v3087 = vpop.f32.mrb[0].mxu0
    %3088 = vdwg.mxu0
    %v3090 = vsel %vm66, %v2859, 0
    %v3093 = vsel %vm66, %v2860, 0
    %3095 = vmatprep.subr.mxu0 0.0
    %3096 = vmatpush1.xpose.msra.mxu0 %v3090
    %3097 = vmatprep.subr.mxu0 0.0
    %3098 = vmatpush1.xpose.msra.mxu0 %v3093
    %3099 = vmatprep.subr.mxu0 0.0
    %3100 = vmatpush1.xpose.msra.mxu0 0.0
    %3101 = vmatprep.subr.mxu0 0.0
    %3102 = vmatpush1.xpose.msra.mxu0 0.0
    %3103 = vmatprep.subr.mxu0 0.0
    %3104 = vmatpush1.xpose.msra.mxu0 0.0
    %3105 = vmatprep.subr.mxu0 0.0
    %3106 = vmatpush1.xpose.msra.mxu0 0.0
    %3107 = vmatprep.subr.mxu0 0.0
    %3108 = vmatpush1.xpose.msra.mxu0 0.0
    %3109 = vmatprep.subr.mxu0 0.0
    %3110 = vmatpush1.xpose.msra.mxu0 0.0
    %3111 = vmatprep.subr.mxu0 0.0
    %3112 = vmatpush1.xpose.msra.mxu0 0.0
    %3113 = vmatprep.subr.mxu0 0.0
    %3114 = vmatpush1.xpose.msra.mxu0 0.0
    %3115 = vmatprep.subr.mxu0 0.0
    %3116 = vmatpush1.xpose.msra.mxu0 0.0
    %3117 = vmatprep.subr.mxu0 0.0
    %3118 = vmatpush1.xpose.msra.mxu0 0.0
    %3119 = vmatprep.subr.mxu0 0.0
    %3120 = vmatpush1.xpose.msra.mxu0 0.0
    %3121 = vmatprep.subr.mxu0 0.0
    %3122 = vmatpush1.xpose.msra.mxu0 0.0
    %3123 = vmatprep.subr.mxu0 0.0
    %3124 = vmatpush1.xpose.msra.mxu0 0.0
    %3125 = vmatprep.subr.mxu0 0.0
    %3126 = vmatpush1.xpose.msra.mxu0 0.0
    %3127 = vmatprep.subr.mxu0 0.0
    %3128 = vmatpush1.xpose.msra.mxu0 0.0
    %3129 = vmatprep.subr.mxu0 0.0
    %3130 = vmatpush1.xpose.msra.mxu0 0.0
    %3131 = vmatprep.subr.mxu0 0.0
    %3132 = vmatpush1.xpose.msra.mxu0 0.0
    %3133 = vmatprep.subr.mxu0 0.0
    %3134 = vmatpush1.xpose.msra.mxu0 0.0
    %3135 = vmatprep.subr.mxu0 0.0
    %3136 = vmatpush1.xpose.msra.mxu0 0.0
    %3137 = vmatprep.subr.mxu0 0.0
    %3138 = vmatpush1.xpose.msra.mxu0 0.0
    %3139 = vmatprep.subr.mxu0 0.0
    %3140 = vmatpush1.xpose.msra.mxu0 0.0
    %3141 = vmatprep.subr.mxu0 0.0
    %3142 = vmatpush1.xpose.msra.mxu0 0.0
    %3143 = vmatprep.subr.mxu0 0.0
    %3144 = vmatpush1.xpose.msra.mxu0 0.0
    %3145 = vmatprep.subr.mxu0 0.0
    %3146 = vmatpush1.xpose.msra.mxu0 0.0
    %3147 = vmatprep.subr.mxu0 0.0
    %3148 = vmatpush1.xpose.msra.mxu0 0.0
    %3149 = vmatprep.subr.mxu0 0.0
    %3150 = vmatpush1.xpose.msra.mxu0 0.0
    %3151 = vmatprep.subr.mxu0 0.0
    %3152 = vmatpush1.xpose.msra.mxu0 0.0
    %3153 = vmatprep.subr.mxu0 0.0
    %3154 = vmatpush1.xpose.msra.mxu0 0.0
    %3155 = vmatprep.subr.mxu0 0.0
    %3156 = vmatpush1.xpose.msra.mxu0 0.0
    %3157 = vmatprep.subr.mxu0 0.0
    %3158 = vmatpush1.xpose.msra.mxu0 0.0
    %3159 = vmatprep.mubr.f32.mxu0 0.0
    %3160 = vmatmul.mubr.f32.gmra.mrb[0].mxu0 %v1294
    %v3161 = vpop.f32.mrb[0].mxu0
    %v3162 = vadd.f32 0.0, %v3161
    %v3163 = vpop.f32.mrb[0].mxu0
    %3164 = vdwg.mxu0
    %v3165 = vcombine.low %v2934, %v3086
    %v3166 = vcombine.high %v2934, %v3086
    %v3168 = vunpack.c.l.s4 1983009808
    %v3169 = vunpack.c.0.s8 %v3168
    %v3170 = vlaneseq
    %v3171 = vshrl.u32 %v3170, 7
    %v3172 = vsub.s32 %v3169, %v3171
    %v3173 = vrot.slane %v3165, %v3172
    %v3175 = vunpack.c.l.s4 1983009808
    %v3176 = vunpack.c.0.s8 %v3175
    %v3177 = vlaneseq
    %v3178 = vshrl.u32 %v3177, 7
    %v3179 = vsub.s32 %v3176, %v3178
    %v3180 = vrot.slane %v3166, %v3179
    %v3181 = vcombine.low %v3010, %v3162
    %v3182 = vcombine.high %v3010, %v3162
    %v3184 = vunpack.c.l.s4 1983009808
    %v3185 = vunpack.c.0.s8 %v3184
    %v3186 = vlaneseq
    %v3187 = vshrl.u32 %v3186, 7
    %v3188 = vsub.s32 %v3185, %v3187
    %v3189 = vrot.slane %v3181, %v3188
    %v3191 = vunpack.c.l.s4 1983009808
    %v3192 = vunpack.c.0.s8 %v3191
    %v3193 = vlaneseq
    %v3194 = vshrl.u32 %v3193, 7
    %v3195 = vsub.s32 %v3192, %v3194
    %v3196 = vrot.slane %v3182, %v3195
    %v3197 = vcombine.low %v3173, %v3189
    %v3198 = vcombine.high %v3173, %v3189
    %v3200 = vunpack.c.l.s4 1934713408
    %v3201 = vunpack.c.0.s8 %v3200
    %v3202 = vlaneseq
    %v3203 = vshrl.u32 %v3202, 7
    %v3204 = vsub.s32 %v3201, %v3203
    %v3205 = vrot.slane %v3197, %v3204
    %v3207 = vunpack.c.l.s4 1934713408
    %v3208 = vunpack.c.0.s8 %v3207
    %v3209 = vlaneseq
    %v3210 = vshrl.u32 %v3209, 7
    %v3211 = vsub.s32 %v3208, %v3210
    %v3212 = vrot.slane %v3198, %v3211
    %v3213 = vcombine.low %v3180, %v3196
    %v3214 = vcombine.high %v3180, %v3196
    %v3216 = vunpack.c.l.s4 1934713408
    %v3217 = vunpack.c.0.s8 %v3216
    %v3218 = vlaneseq
    %v3219 = vshrl.u32 %v3218, 7
    %v3220 = vsub.s32 %v3217, %v3219
    %v3221 = vrot.slane %v3213, %v3220
    %v3223 = vunpack.c.l.s4 1934713408
    %v3224 = vunpack.c.0.s8 %v3223
    %v3225 = vlaneseq
    %v3226 = vshrl.u32 %v3225, 7
    %v3227 = vsub.s32 %v3224, %v3226
    %v3228 = vrot.slane %v3214, %v3227
    %v3229 = vcombine.high %v3205, 0.0
    %v3230 = vcombine.high %v3212, 0.0
    %v3231 = vcombine.high %v3221, 0.0
    %v3232 = vcombine.high %v3228, 0.0
    %3234 = vrot.lane.b32.xlu0 %v3229, 16
    %v3235 = vpop.permute.xlu0 %3234
    %3238 = vrot.lane.b32.xlu0 %v3212, 32
    %v3239 = vpop.permute.xlu0 %3238
    %3242 = vrot.lane.b32.xlu0 %v3230, 48
    %v3243 = vpop.permute.xlu0 %3242
    %3246 = vrot.lane.b32.xlu0 %v3221, 64
    %v3247 = vpop.permute.xlu0 %3246
    %3250 = vrot.lane.b32.xlu0 %v3231, 80
    %v3251 = vpop.permute.xlu0 %3250
    %3254 = vrot.lane.b32.xlu0 %v3228, 96
    %v3255 = vpop.permute.xlu0 %3254
    %3258 = vrot.lane.b32.xlu0 %v3232, 112
    %v3259 = vpop.permute.xlu0 %3258
    %v3261 = vsel %vm1168, %v3205, %v3235
    %v3262 = vsel %vm66, %v3261, %v3239
    %vm3263 = vcmask 392192
    %v3264 = vsel %vm3263, %v3262, %v3243
    %vm3265 = vcmask 523264
    %v3266 = vsel %vm3265, %v3264, %v3247
    %vm3267 = vcmask 654336
    %v3268 = vsel %vm3267, %v3266, %v3251
    %vm3269 = vcmask 785408
    %v3270 = vsel %vm3269, %v3268, %v3255
    %vm3271 = vcmask 916480
    %v3272 = vsel %vm3271, %v3270, %v3259
    %v3273 = vld [vmem:[#allocation7 + $0x38] sm:$0xff]
    %v3274 = vld [vmem:[#allocation7 + $0x90] sm:$0xff]
    %v3275 = vld [vmem:[#allocation7 + $0xe8] sm:$0xff]
    %v3276 = vld [vmem:[#allocation7 + $0x140] sm:$0xff]
    %v3277 = vld [vmem:[#allocation7 + $0x198] sm:$0xff]
    %v3278 = vld [vmem:[#allocation7 + $0x1f0] sm:$0xff]
    %v3279 = vld [vmem:[#allocation7 + $0x248] sm:$0xff]
    %v3280 = vld [vmem:[#allocation7 + $0x2a0] sm:$0xff]
    %v3281 = vld [vmem:[#allocation7 + $0x40] sm:$0xff]
    %v3282 = vld [vmem:[#allocation7 + $0x98] sm:$0xff]
    %v3283 = vld [vmem:[#allocation7 + $0xf0] sm:$0xff]
    %v3284 = vld [vmem:[#allocation7 + $0x148] sm:$0xff]
    %v3285 = vld [vmem:[#allocation7 + $0x1a0] sm:$0xff]
    %v3286 = vld [vmem:[#allocation7 + $0x1f8] sm:$0xff]
    %v3287 = vld [vmem:[#allocation7 + $0x250] sm:$0xff]
    %v3288 = vld [vmem:[#allocation7 + $0x2a8] sm:$0xff]
    %v3289 = vld [vmem:[#allocation7 + $0x300] sm:$0xff]
    %v3290 = vld [vmem:[#allocation7 + $0x358] sm:$0xff]
    %v3291 = vld [vmem:[#allocation7 + $0x3b0] sm:$0xff]
    %v3292 = vld [vmem:[#allocation7 + $0x408] sm:$0xff]
    %v3293 = vld [vmem:[#allocation7 + $0x460] sm:$0xff]
    %v3294 = vld [vmem:[#allocation7 + $0x4b8] sm:$0xff]
    %v3295 = vld [vmem:[#allocation7 + $0x510] sm:$0xff]
    %v3296 = vld [vmem:[#allocation7 + $0x568] sm:$0xff]
    %3297 = vmatprep.subr.mxu0 0.0
    %3298 = vmatpush1.msra.mxu0 %v3281
    %3299 = vmatprep.subr.mxu0 0.0
    %3300 = vmatpush1.msra.mxu0 %v3282
    %3301 = vmatprep.subr.mxu0 0.0
    %3302 = vmatpush1.msra.mxu0 %v3283
    %3303 = vmatprep.subr.mxu0 0.0
    %3304 = vmatpush1.msra.mxu0 %v3284
    %3305 = vmatprep.subr.mxu0 0.0
    %3306 = vmatpush1.msra.mxu0 %v3285
    %3307 = vmatprep.subr.mxu0 0.0
    %3308 = vmatpush1.msra.mxu0 %v3286
    %3309 = vmatprep.subr.mxu0 0.0
    %3310 = vmatpush1.msra.mxu0 %v3287
    %3311 = vmatprep.subr.mxu0 0.0
    %3312 = vmatpush1.msra.mxu0 %v3288
    %3313 = vmatprep.subr.mxu0 0.0
    %3314 = vmatpush1.msra.mxu0 %v3289
    %3315 = vmatprep.subr.mxu0 0.0
    %3316 = vmatpush1.msra.mxu0 %v3290
    %3317 = vmatprep.subr.mxu0 0.0
    %3318 = vmatpush1.msra.mxu0 %v3291
    %3319 = vmatprep.subr.mxu0 0.0
    %3320 = vmatpush1.msra.mxu0 %v3292
    %3321 = vmatprep.subr.mxu0 0.0
    %3322 = vmatpush1.msra.mxu0 %v3293
    %3323 = vmatprep.subr.mxu0 0.0
    %3324 = vmatpush1.msra.mxu0 %v3294
    %3325 = vmatprep.subr.mxu0 0.0
    %3326 = vmatpush1.msra.mxu0 %v3295
    %3327 = vmatprep.subr.mxu0 0.0
    %3328 = vmatpush1.msra.mxu0 %v3296
    %3329 = vmatprep.subr.mxu0 0.0
    %3330 = vmatpush1.msra.mxu0 0.0
    %3331 = vmatprep.subr.mxu0 0.0
    %3332 = vmatpush1.msra.mxu0 0.0
    %3333 = vmatprep.subr.mxu0 0.0
    %3334 = vmatpush1.msra.mxu0 0.0
    %3335 = vmatprep.subr.mxu0 0.0
    %3336 = vmatpush1.msra.mxu0 0.0
    %3337 = vmatprep.subr.mxu0 0.0
    %3338 = vmatpush1.msra.mxu0 0.0
    %3339 = vmatprep.subr.mxu0 0.0
    %3340 = vmatpush1.msra.mxu0 0.0
    %3341 = vmatprep.subr.mxu0 0.0
    %3342 = vmatpush1.msra.mxu0 0.0
    %3343 = vmatprep.subr.mxu0 0.0
    %3344 = vmatpush1.msra.mxu0 0.0
    %3345 = vmatprep.subr.mxu0 0.0
    %3346 = vmatpush1.msra.mxu0 0.0
    %3347 = vmatprep.subr.mxu0 0.0
    %3348 = vmatpush1.msra.mxu0 0.0
    %3349 = vmatprep.subr.mxu0 0.0
    %3350 = vmatpush1.msra.mxu0 0.0
    %3351 = vmatprep.subr.mxu0 0.0
    %3352 = vmatpush1.msra.mxu0 0.0
    %3353 = vmatprep.subr.mxu0 0.0
    %3354 = vmatpush1.msra.mxu0 0.0
    %3355 = vmatprep.subr.mxu0 0.0
    %3356 = vmatpush1.msra.mxu0 0.0
    %3357 = vmatprep.subr.mxu0 0.0
    %3358 = vmatpush1.msra.mxu0 0.0
    %3359 = vmatprep.subr.mxu0 0.0
    %3360 = vmatpush1.msra.mxu0 0.0
    %3361 = vmatprep.mubr.f32.mxu0 0.0
    %3362 = vmatmul.mubr.f32.gmra.mrb[0].mxu0 %v3272
    %v3363 = vpop.f32.mrb[0].mxu0
    %v3364 = vadd.f32 0.0, %v3363
    %v3365 = vpop.f32.mrb[0].mxu0
    %3366 = vdwg.mxu0
    %v3368 = vsel %vm3265, %v2068, 0
    %3370 = vmatprep.subr.mxu0 0.0
    %3371 = vmatpush1.msra.mxu0 %v3273
    %3372 = vmatprep.subr.mxu0 0.0
    %3373 = vmatpush1.msra.mxu0 %v3274
    %3374 = vmatprep.subr.mxu0 0.0
    %3375 = vmatpush1.msra.mxu0 %v3275
    %3376 = vmatprep.subr.mxu0 0.0
    %3377 = vmatpush1.msra.mxu0 %v3276
    %3378 = vmatprep.subr.mxu0 0.0
    %3379 = vmatpush1.msra.mxu0 %v3277
    %3380 = vmatprep.subr.mxu0 0.0
    %3381 = vmatpush1.msra.mxu0 %v3278
    %3382 = vmatprep.subr.mxu0 0.0
    %3383 = vmatpush1.msra.mxu0 %v3279
    %3384 = vmatprep.subr.mxu0 0.0
    %3385 = vmatpush1.msra.mxu0 %v3280
    %3386 = vmatprep.subr.mxu0 0.0
    %3387 = vmatpush1.msra.mxu0 0.0
    %3388 = vmatprep.subr.mxu0 0.0
    %3389 = vmatpush1.msra.mxu0 0.0
    %3390 = vmatprep.subr.mxu0 0.0
    %3391 = vmatpush1.msra.mxu0 0.0
    %3392 = vmatprep.subr.mxu0 0.0
    %3393 = vmatpush1.msra.mxu0 0.0
    %3394 = vmatprep.subr.mxu0 0.0
    %3395 = vmatpush1.msra.mxu0 0.0
    %3396 = vmatprep.subr.mxu0 0.0
    %3397 = vmatpush1.msra.mxu0 0.0
    %3398 = vmatprep.subr.mxu0 0.0
    %3399 = vmatpush1.msra.mxu0 0.0
    %3400 = vmatprep.subr.mxu0 0.0
    %3401 = vmatpush1.msra.mxu0 0.0
    %3402 = vmatprep.subr.mxu0 0.0
    %3403 = vmatpush1.msra.mxu0 0.0
    %3404 = vmatprep.subr.mxu0 0.0
    %3405 = vmatpush1.msra.mxu0 0.0
    %3406 = vmatprep.subr.mxu0 0.0
    %3407 = vmatpush1.msra.mxu0 0.0
    %3408 = vmatprep.subr.mxu0 0.0
    %3409 = vmatpush1.msra.mxu0 0.0
    %3410 = vmatprep.subr.mxu0 0.0
    %3411 = vmatpush1.msra.mxu0 0.0
    %3412 = vmatprep.subr.mxu0 0.0
    %3413 = vmatpush1.msra.mxu0 0.0
    %3414 = vmatprep.subr.mxu0 0.0
    %3415 = vmatpush1.msra.mxu0 0.0
    %3416 = vmatprep.subr.mxu0 0.0
    %3417 = vmatpush1.msra.mxu0 0.0
    %3418 = vmatprep.subr.mxu0 0.0
    %3419 = vmatpush1.msra.mxu0 0.0
    %3420 = vmatprep.subr.mxu0 0.0
    %3421 = vmatpush1.msra.mxu0 0.0
    %3422 = vmatprep.subr.mxu0 0.0
    %3423 = vmatpush1.msra.mxu0 0.0
    %3424 = vmatprep.subr.mxu0 0.0
    %3425 = vmatpush1.msra.mxu0 0.0
    %3426 = vmatprep.subr.mxu0 0.0
    %3427 = vmatpush1.msra.mxu0 0.0
    %3428 = vmatprep.subr.mxu0 0.0
    %3429 = vmatpush1.msra.mxu0 0.0
    %3430 = vmatprep.subr.mxu0 0.0
    %3431 = vmatpush1.msra.mxu0 0.0
    %3432 = vmatprep.subr.mxu0 0.0
    %3433 = vmatpush1.msra.mxu0 0.0
    %3434 = vmatprep.mubr.f32.mxu0 0.0
    %3435 = vmatmul.mubr.f32.gmra.mrb[0].mxu0 %v3368
    %v3436 = vpop.f32.mrb[0].mxu0
    %v3437 = vadd.f32 %v3364, %v3436
    %v3438 = vpop.f32.mrb[0].mxu0
    %3439 = vdwg.mxu0
    %v3440 = vld [vmem:[%s3 + $0x6] sm:$0x1]
    %v3442 = vlaneseq
    %v3443 = vshrl.u32 %v3442, 7
    %v3444 = vsub.s32 0, %v3443
    %v3445 = vrot.slane %v3440, %v3444
    %v3447 = vadd.f32 %v3437, %v3445
    %v3448 = vmax.f32 %v3447, 0.0
    %3450 = vrot.lane.b32.xlu0 %v1272, 80
    %v3451 = vpop.permute.xlu0 %3450
    %v3453 = vmul.f32 %v3448, %v3451
    %v3454 = vld [vmem:[#allocation7 + $0x48] sm:$0xff]
    %v3455 = vld [vmem:[#allocation7 + $0xa0] sm:$0xff]
    %v3456 = vld [vmem:[#allocation7 + $0xf8] sm:$0xff]
    %v3457 = vld [vmem:[#allocation7 + $0x150] sm:$0xff]
    %v3458 = vld [vmem:[%s3 + $0x8] sm:$0x1]
    %v3460 = vlaneseq
    %v3461 = vshrl.u32 %v3460, 7
    %v3462 = vsub.s32 0, %v3461
    %v3463 = vrot.slane %v3458, %v3462
    %v3466 = vsel %vm66, %v3453, 0
    %3468 = vmatprep.subr.mxu0 0.0
    %3469 = vmatpush1.msra.mxu0 %v3454
    %3470 = vmatprep.subr.mxu0 0.0
    %3471 = vmatpush1.msra.mxu0 %v3455
    %3472 = vmatprep.subr.mxu0 0.0
    %3473 = vmatpush1.msra.mxu0 %v3456
    %3474 = vmatprep.subr.mxu0 0.0
    %3475 = vmatpush1.msra.mxu0 %v3457
    %3476 = vmatprep.subr.mxu0 0.0
    %3477 = vmatpush1.msra.mxu0 0.0
    %3478 = vmatprep.subr.mxu0 0.0
    %3479 = vmatpush1.msra.mxu0 0.0
    %3480 = vmatprep.subr.mxu0 0.0
    %3481 = vmatpush1.msra.mxu0 0.0
    %3482 = vmatprep.subr.mxu0 0.0
    %3483 = vmatpush1.msra.mxu0 0.0
    %3484 = vmatprep.subr.mxu0 0.0
    %3485 = vmatpush1.msra.mxu0 0.0
    %3486 = vmatprep.subr.mxu0 0.0
    %3487 = vmatpush1.msra.mxu0 0.0
    %3488 = vmatprep.subr.mxu0 0.0
    %3489 = vmatpush1.msra.mxu0 0.0
    %3490 = vmatprep.subr.mxu0 0.0
    %3491 = vmatpush1.msra.mxu0 0.0
    %3492 = vmatprep.subr.mxu0 0.0
    %3493 = vmatpush1.msra.mxu0 0.0
    %3494 = vmatprep.subr.mxu0 0.0
    %3495 = vmatpush1.msra.mxu0 0.0
    %3496 = vmatprep.subr.mxu0 0.0
    %3497 = vmatpush1.msra.mxu0 0.0
    %3498 = vmatprep.subr.mxu0 0.0
    %3499 = vmatpush1.msra.mxu0 0.0
    %3500 = vmatprep.subr.mxu0 0.0
    %3501 = vmatpush1.msra.mxu0 0.0
    %3502 = vmatprep.subr.mxu0 0.0
    %3503 = vmatpush1.msra.mxu0 0.0
    %3504 = vmatprep.subr.mxu0 0.0
    %3505 = vmatpush1.msra.mxu0 0.0
    %3506 = vmatprep.subr.mxu0 0.0
    %3507 = vmatpush1.msra.mxu0 0.0
    %3508 = vmatprep.subr.mxu0 0.0
    %3509 = vmatpush1.msra.mxu0 0.0
    %3510 = vmatprep.subr.mxu0 0.0
    %3511 = vmatpush1.msra.mxu0 0.0
    %3512 = vmatprep.subr.mxu0 0.0
    %3513 = vmatpush1.msra.mxu0 0.0
    %3514 = vmatprep.subr.mxu0 0.0
    %3515 = vmatpush1.msra.mxu0 0.0
    %3516 = vmatprep.subr.mxu0 0.0
    %3517 = vmatpush1.msra.mxu0 0.0
    %3518 = vmatprep.subr.mxu0 0.0
    %3519 = vmatpush1.msra.mxu0 0.0
    %3520 = vmatprep.subr.mxu0 0.0
    %3521 = vmatpush1.msra.mxu0 0.0
    %3522 = vmatprep.subr.mxu0 0.0
    %3523 = vmatpush1.msra.mxu0 0.0
    %3524 = vmatprep.subr.mxu0 0.0
    %3525 = vmatpush1.msra.mxu0 0.0
    %3526 = vmatprep.subr.mxu0 0.0
    %3527 = vmatpush1.msra.mxu0 0.0
    %3528 = vmatprep.subr.mxu0 0.0
    %3529 = vmatpush1.msra.mxu0 0.0
    %3530 = vmatprep.subr.mxu0 0.0
    %3531 = vmatpush1.msra.mxu0 0.0
    %3532 = vmatprep.mubr.f32.mxu0 0.0
    %3533 = vmatmul.mubr.f32.gmra.mrb[0].mxu0 %v3466
    %v3534 = vpop.f32.mrb[0].mxu0
    %v3535 = vadd.f32 %v3463, %v3534
    %v3536 = vpop.f32.mrb[0].mxu0
    %3537 = vdwg.mxu0
    %v3538 = vmax.f32 %v3535, 0.0
    %v3539 = vld [vmem:[#allocation7 + $0x50] sm:$0xff]
    %v3540 = vld [vmem:[#allocation7 + $0xa8] sm:$0xff]
    %v3541 = vld [vmem:[#allocation7 + $0x100] sm:$0xff]
    %v3542 = vld [vmem:[#allocation7 + $0x158] sm:$0xff]
    %v3543 = vld [vmem:[%s3 + $0x9] sm:$0x1]
    %v3545 = vlaneseq
    %v3546 = vshrl.u32 %v3545, 7
    %v3547 = vsub.s32 0, %v3546
    %v3548 = vrot.slane %v3543, %v3547
    %v3551 = vsel %vm66, %v3538, 0
    %3553 = vmatprep.subr.mxu0 0.0
    %3554 = vmatpush1.msra.mxu0 %v3539
    %3555 = vmatprep.subr.mxu0 0.0
    %3556 = vmatpush1.msra.mxu0 %v3540
    %3557 = vmatprep.subr.mxu0 0.0
    %3558 = vmatpush1.msra.mxu0 %v3541
    %3559 = vmatprep.subr.mxu0 0.0
    %3560 = vmatpush1.msra.mxu0 %v3542
    %3561 = vmatprep.subr.mxu0 0.0
    %3562 = vmatpush1.msra.mxu0 0.0
    %3563 = vmatprep.subr.mxu0 0.0
    %3564 = vmatpush1.msra.mxu0 0.0
    %3565 = vmatprep.subr.mxu0 0.0
    %3566 = vmatpush1.msra.mxu0 0.0
    %3567 = vmatprep.subr.mxu0 0.0
    %3568 = vmatpush1.msra.mxu0 0.0
    %3569 = vmatprep.subr.mxu0 0.0
    %3570 = vmatpush1.msra.mxu0 0.0
    %3571 = vmatprep.subr.mxu0 0.0
    %3572 = vmatpush1.msra.mxu0 0.0
    %3573 = vmatprep.subr.mxu0 0.0
    %3574 = vmatpush1.msra.mxu0 0.0
    %3575 = vmatprep.subr.mxu0 0.0
    %3576 = vmatpush1.msra.mxu0 0.0
    %3577 = vmatprep.subr.mxu0 0.0
    %3578 = vmatpush1.msra.mxu0 0.0
    %3579 = vmatprep.subr.mxu0 0.0
    %3580 = vmatpush1.msra.mxu0 0.0
    %3581 = vmatprep.subr.mxu0 0.0
    %3582 = vmatpush1.msra.mxu0 0.0
    %3583 = vmatprep.subr.mxu0 0.0
    %3584 = vmatpush1.msra.mxu0 0.0
    %3585 = vmatprep.subr.mxu0 0.0
    %3586 = vmatpush1.msra.mxu0 0.0
    %3587 = vmatprep.subr.mxu0 0.0
    %3588 = vmatpush1.msra.mxu0 0.0
    %3589 = vmatprep.subr.mxu0 0.0
    %3590 = vmatpush1.msra.mxu0 0.0
    %3591 = vmatprep.subr.mxu0 0.0
    %3592 = vmatpush1.msra.mxu0 0.0
    %3593 = vmatprep.subr.mxu0 0.0
    %3594 = vmatpush1.msra.mxu0 0.0
    %3595 = vmatprep.subr.mxu0 0.0
    %3596 = vmatpush1.msra.mxu0 0.0
    %3597 = vmatprep.subr.mxu0 0.0
    %3598 = vmatpush1.msra.mxu0 0.0
    %3599 = vmatprep.subr.mxu0 0.0
    %3600 = vmatpush1.msra.mxu0 0.0
    %3601 = vmatprep.subr.mxu0 0.0
    %3602 = vmatpush1.msra.mxu0 0.0
    %3603 = vmatprep.subr.mxu0 0.0
    %3604 = vmatpush1.msra.mxu0 0.0
    %3605 = vmatprep.subr.mxu0 0.0
    %3606 = vmatpush1.msra.mxu0 0.0
    %3607 = vmatprep.subr.mxu0 0.0
    %3608 = vmatpush1.msra.mxu0 0.0
    %3609 = vmatprep.subr.mxu0 0.0
    %3610 = vmatpush1.msra.mxu0 0.0
    %3611 = vmatprep.subr.mxu0 0.0
    %3612 = vmatpush1.msra.mxu0 0.0
    %3613 = vmatprep.subr.mxu0 0.0
    %3614 = vmatpush1.msra.mxu0 0.0
    %3615 = vmatprep.subr.mxu0 0.0
    %3616 = vmatpush1.msra.mxu0 0.0
    %3617 = vmatprep.mubr.f32.mxu0 0.0
    %3618 = vmatmul.mubr.f32.gmra.mrb[0].mxu0 %v3551
    %v3619 = vpop.f32.mrb[0].mxu0
    %v3620 = vadd.f32 %v3548, %v3619
    %v3621 = vpop.f32.mrb[0].mxu0
    %3622 = vdwg.mxu0
    %3623 = vst [vmem:[#allocation8] sm:$0xf] %v3620
    // Predicated region
    $region30: #{tpu_custom_call.1} parent=1 // pred_check
      _
    $region31: #{tpu_custom_call.1} parent=1 // pred_check_branch
      %3625 = sbr.rel (0) target = $region33
    $region32: #{tpu_custom_call.1} parent=1 // pred_region
      %s3627 = ssub.s32 64, 64
      %3628 = vsyncadd [#allocation4], %s3627
      %s3630 = sshll.u32 [#allocation8], 4
      %s3631 = int_to_ptr.vmem [resolvable:$true] %s3630
      %3633 = dma.vmem_to_hbm [thread:$0]  %s3631, 64, %s4, [#allocation4]
    $region33: #{tpu_custom_call.1} parent=1 // pred_fallthru
      _
    // Predicated region
    $region34: #{tpu_custom_call.1} parent=1 // pred_check
      _
    $region35: #{tpu_custom_call.1} parent=1 // pred_check_branch
      %3635 = sbr.rel (0) target = $region37
    $region36: #{tpu_custom_call.1} parent=1 // pred_region
      %3636 = dma.done [#allocation4], 64
    $region37: #{tpu_custom_call.1} parent=1 // pred_fallthru
      _
    %3637 = vsyncpa [#allocation3], 1
    %3638 = vsyncpa [#allocation6], 1
    %3639 = vsyncpa [#allocation4], 1

</llo_original>
